<compile_context>
chip_gen: v5e
topology: v5e:2x2
jax: 0.10.0
libtpu: 0.0.40
codegen_flags: <defaults>
</compile_context>

<pallas_src>
from functools import partial

import jax
import jax.numpy as jnp
from jax.experimental import pallas as pl
from jax.experimental.pallas import tpu as pltpu

EXPANSION = 2      # DeconvBottleneckBlock.expansion
LANE = 128         # lane width: pad channel dims to multiples of this

_COMPILER_PARAMS = pltpu.CompilerParams(
    dimension_semantics=("parallel",),
    vmem_limit_bytes=48 * 1024 * 1024,
)


# ----------------------------------------------------------------------------
# small helpers
# ----------------------------------------------------------------------------
def _round_up(x, m):
    return (x + m - 1) // m * m


def _pick_tm(m):
    # Large tiles for HBM bandwidth, but keep >=2 grid steps so both v7x
    # TensorCores get work; never fall back to a single full-M tile when large.
    if m >= 1024:
        return 512
    if m >= 512:
        return 256
    if m >= 256:
        return 128
    return _round_up(m, 8)


def _pad_rows(a, mp):
    if a.shape[0] == mp:
        return a
    return jnp.pad(a, ((0, mp - a.shape[0]), (0, 0)))


def _pad_last(a, c):
    pad = [(0, 0)] * a.ndim
    pad[-1] = (0, c - a.shape[-1])
    return jnp.pad(a, pad)


def _pad2(a, r, c):
    return jnp.pad(a, ((0, r - a.shape[0]), (0, c - a.shape[1])))


def _bn_fold(gamma, beta, mean, var, eps=1e-5):
    s = gamma / jnp.sqrt(var + eps)
    return s, beta - mean * s


# ----------------------------------------------------------------------------
# Pallas kernels
# ----------------------------------------------------------------------------
def _mm_bias_kernel(x_ref, w_ref, b_ref, o_ref, *, relu):
    """(tm, K) @ (K, N) + bias -> optional ReLU. (BN scale folded into w.)"""
    y = jnp.dot(x_ref[...], w_ref[...], preferred_element_type=jnp.float32)
    y = y + b_ref[...]
    if relu:
        y = jnp.maximum(y, 0.0)
    o_ref[...] = y.astype(o_ref.dtype)


def _make_fused_deconv_kernel(phase_plan, n_slabs, n_w, short_mode, coutp):
    """One fused kernel computing EVERY output phase of
         grouped ConvT(3x3)+bn2+relu -> conv3+bn3 (+shortcut) -> relu
       for a row tile.  `phase_plan[p]` is the tuple of slab indices feeding
       phase p; the flattened per-tap (block-diagonal) weights follow the same
       order.  Phase p writes columns [p*coutp, (p+1)*coutp) of the output.

       Arg order: slabs..., tap_weights..., b2, w3, b3, [xs, ws] | [xs], out.
    """
    def kernel(*refs):
        o_ref = refs[-1]
        slab_refs = refs[:n_slabs]
        w2_refs = refs[n_slabs:n_slabs + n_w]
        b2_ref, w3_ref, b3_ref = refs[n_slabs + n_w:n_slabs + n_w + 3]
        extra = refs[n_slabs + n_w + 3:-1]
        tm = o_ref.shape[0]

        w_i = 0
        for p, taps in enumerate(phase_plan):
            if taps:
                acc = None
                for s_idx in taps:
                    d = jnp.dot(slab_refs[s_idx][...], w2_refs[w_i][...],
                                preferred_element_type=jnp.float32)
                    w_i += 1
                    acc = d if acc is None else acc + d
                y2 = jnp.maximum(acc + b2_ref[...], 0.0)
                y3 = jnp.dot(y2.astype(w3_ref.dtype), w3_ref[...],
                             preferred_element_type=jnp.float32) + b3_ref[...]
            else:
                # Only possible for stride >= 4: these output pixels see no
                # input pixel, so they are a per-channel constant.
                y2c = jnp.maximum(b2_ref[...], 0.0)
                y3c = jnp.dot(y2c.astype(w3_ref.dtype), w3_ref[...],
                              preferred_element_type=jnp.float32) + b3_ref[...]
                y3 = jnp.broadcast_to(y3c, (tm, coutp))
            if p == 0:  # the shortcut only lands on the (0,0) phase
                if short_mode == "proj":
                    xs_ref, ws_ref = extra
                    y3 = y3 + jnp.dot(xs_ref[...], ws_ref[...],
                                      preferred_element_type=jnp.float32)
                elif short_mode == "ident":
                    (xs_ref,) = extra
                    y3 = y3 + xs_ref[...]
            # static, 128-aligned column slice -> unmasked lane-dense store
            o_ref[:, p * coutp:(p + 1) * coutp] = (
                jnp.maximum(y3, 0.0).astype(o_ref.dtype))

    return kernel


# ----------------------------------------------------------------------------
# pallas_call plumbing
# ----------------------------------------------------------------------------
def _call_rowtiled(kernel, inputs, row_flags, out_cols, out_dtype):
    """Run `kernel` over row tiles.  Inputs flagged True are (M, C) row slabs
    (tiled over M, zero-padded to a tile multiple); the rest are whole-array
    constants broadcast to every grid step."""
    M = next(a.shape[0] for a, r in zip(inputs, row_flags) if r)
    tm = _pick_tm(M)
    Mp = _round_up(M, tm)

    ins, specs = [], []
    for a, is_row in zip(inputs, row_flags):
        if is_row:
            ins.append(_pad_rows(a, Mp))
            specs.append(pl.BlockSpec((tm, a.shape[1]), lambda i: (i, 0)))
        else:
            ins.append(a)
            specs.append(pl.BlockSpec(a.shape, lambda i: (0, 0)))

    out = pl.pallas_call(
        kernel,
        out_shape=jax.ShapeDtypeStruct((Mp, out_cols), out_dtype),
        grid_spec=pltpu.PrefetchScalarGridSpec(
            num_scalar_prefetch=0,
            grid=(Mp // tm,),
            in_specs=specs,
            out_specs=pl.BlockSpec((tm, out_cols), lambda i: (i, 0)),
        ),
        compiler_params=_COMPILER_PARAMS,
    )(*ins)
    return out[:M]


def fused_mm_bias(x2d, w, b, *, relu, out_dtype, use_pallas=True):
    if not use_pallas:  # identical math, plain JAX
        y = jnp.dot(x2d, w, preferred_element_type=jnp.float32) + b
        if relu:
            y = jnp.maximum(y, 0.0)
        return y.astype(out_dtype)
    return _call_rowtiled(partial(_mm_bias_kernel, relu=relu),
                          [x2d, w, b], [True, False, False],
                          w.shape[1], out_dtype)


def fused_deconv_all_phases(slabs, tap_ws, b2, w3, b3, *, phase_plan,
                            short_xs=None, short_ws=None, identity_xs=None,
                            use_pallas=True, out_dtype=jnp.float32):
    """All s*s output phases of grouped ConvT(3x3)+bn2+relu + conv3+bn3 +
    shortcut + relu, as one row-tiled call.  Returns (M, n_phases*Coutp)."""
    n_slabs = len(slabs)
    coutp = w3.shape[1]
    short_mode = ("proj" if short_xs is not None
                  else ("ident" if identity_xs is not None else "none"))

    if not use_pallas:  # identical math, plain JAX reference
        M = slabs[0].shape[0]
        outs, w_i = [], 0
        for p, taps in enumerate(phase_plan):
            if taps:
                acc = None
                for s_idx in taps:
                    d = jnp.dot(slabs[s_idx], tap_ws[w_i],
                                preferred_element_type=jnp.float32)
                    w_i += 1
                    acc = d if acc is None else acc + d
                y2 = jnp.maximum(acc + b2, 0.0)
                y3 = jnp.dot(y2.astype(w3.dtype), w3,
                             preferred_element_type=jnp.float32) + b3
            else:
                y2c = jnp.maximum(b2, 0.0)
                y3c = jnp.dot(y2c.astype(w3.dtype), w3,
                              preferred_element_type=jnp.float32) + b3
                y3 = jnp.broadcast_to(y3c, (M, coutp))
            if p == 0:
                if short_mode == "proj":
                    y3 = y3 + jnp.dot(short_xs, short_ws,
                                      preferred_element_type=jnp.float32)
                elif short_mode == "ident":
                    y3 = y3 + identity_xs
            outs.append(jnp.maximum(y3, 0.0).astype(out_dtype))
        return jnp.concatenate(outs, axis=-1)

    inputs = list(slabs) + list(tap_ws) + [b2, w3, b3]
    row_flags = [True] * n_slabs + [False] * len(tap_ws) + [False] * 3
    if short_mode == "proj":
        inputs += [short_xs, short_ws]
        row_flags += [True, False]
    elif short_mode == "ident":
        inputs += [identity_xs]
        row_flags += [True]
    kernel = _make_fused_deconv_kernel(phase_plan, n_slabs, len(tap_ws),
                                       short_mode, coutp)
    return _call_rowtiled(kernel, inputs, row_flags,
                          len(phase_plan) * coutp, out_dtype)


# ----------------------------------------------------------------------------
# transposed-conv phase decomposition
# ----------------------------------------------------------------------------
def _phase_taps(stride):
    """For a k=3, pad=1, output_pad=s-1 ConvTranspose2d, output position
    (qy*s+ry, qx*s+rx) only receives taps (ky,kx) with (r+1-k) % s == 0, from
    input pixel (qy+dy, qx+dx) with d = (r+1-k)//s.  Returns per-phase lists of
    (ky, kx, dy, dx)."""
    taps = {}
    for ry in range(stride):
        ky_list = [(ky, (ry + 1 - ky) // stride) for ky in range(3)
                   if (ry + 1 - ky) % stride == 0]
        for rx in range(stride):
            kx_list = [(kx, (rx + 1 - kx) // stride) for kx in range(3)
                       if (rx + 1 - kx) % stride == 0]
            taps[(ry, rx)] = [(ky, kx, dy, dx)
                              for (ky, dy) in ky_list for (kx, dx) in kx_list]
    return taps


# ----------------------------------------------------------------------------
# forward pass
# ----------------------------------------------------------------------------
def bottleneck_forward(x_nchw, prep, *, stride, out_channels, use_pallas=True):
    N, Cin, H, W = x_nchw.shape
    Cinp = prep["w1"].shape[0]
    Cbp = prep["w1"].shape[1]
    Coutp = prep["w3"].shape[1]
    has_proj = prep["ws"] is not None
    if not has_proj and stride != 1:
        raise ValueError("identity shortcut requires stride == 1 "
                         "(same constraint as the PyTorch module)")

    # NHWC, channels zero-padded to a lane multiple, matmul operands in bf16.
    x_nhwc_f32 = jnp.transpose(x_nchw, (0, 2, 3, 1))
    x_nhwc = _pad_last(x_nhwc_f32, Cinp).astype(jnp.bfloat16)
    M = N * H * W
    x2d = x_nhwc.reshape(M, Cinp)

    # conv1 (1x1) + bn1 + relu  (bf16 activations feed the next matmuls)
    y1 = fused_mm_bias(x2d, prep["w1"], prep["b1"], relu=True,
                       out_dtype=jnp.bfloat16, use_pallas=use_pallas)
    y1 = y1.reshape(N, H, W, Cbp)
    y1h = jnp.pad(y1, ((0, 0), (1, 1), (1, 1), (0, 0)))  # 1-pixel halo for taps

    # Build the phase plan: distinct spatial shifts (shared between phases) and
    # the flattened per-tap weight order.
    taps_map = _phase_taps(stride)
    shifts = sorted({(dy, dx) for tl in taps_map.values()
                     for (_, _, dy, dx) in tl})
    shift_idx = {sh: i for i, sh in enumerate(shifts)}
    phase_plan, tap_ws = [], []
    for ry in range(stride):
        for rx in range(stride):
            plan = []
            for (ky, kx, dy, dx) in taps_map[(ry, rx)]:
                plan.append(shift_idx[(dy, dx)])
                tap_ws.append(prep["w2"][ky, kx])
            phase_plan.append(tuple(plan))
    slabs = [y1h[:, 1 + dy:1 + dy + H, 1 + dx:1 + dx + W, :].reshape(M, Cbp)
             for (dy, dx) in shifts]

    if has_proj:
        short_kwargs = dict(short_xs=x2d, short_ws=prep["ws"])
    else:
        # identity residual added in f32 for fidelity to the PyTorch module
        short_kwargs = dict(
            identity_xs=_pad_last(x_nhwc_f32, Coutp).reshape(M, Coutp))

    # single fused call: all s*s phases + bn2/relu + conv3/bn3 + shortcut + relu
    out2d = fused_deconv_all_phases(
        slabs, tap_ws, prep["b2"], prep["w3"], prep["b3"],
        phase_plan=phase_plan, use_pallas=use_pallas, **short_kwargs)

    # Interleave phases: out[n, qy*s+ry, qx*s+rx, :] = phase[ry*s+rx][n,qy,qx,:]
    out = out2d.reshape(N, H, W, stride, stride, Coutp)
    out = out.transpose(0, 1, 3, 2, 4, 5).reshape(N, H * stride, W * stride,
                                                  Coutp)
    out = out[..., :out_channels]
    return jnp.transpose(out, (0, 3, 1, 2))             # back to NCHW


# ----------------------------------------------------------------------------
# parameter init (raw, torch-like) and preparation (fold BN, block-diag, pad)
# ----------------------------------------------------------------------------
def init_params(key, in_ch, out_ch, cardinality):
    Cb = cardinality * out_ch // EXPANSION
    cg = Cb // cardinality
    ks = iter(jax.random.split(key, 24))

    def bn(c):
        gamma = jax.random.uniform(next(ks), (c,), minval=0.5, maxval=1.5)
        beta = 0.1 * jax.random.normal(next(ks), (c,))
        mean = 0.1 * jax.random.normal(next(ks), (c,))
        var = jax.random.uniform(next(ks), (c,), minval=0.5, maxval=1.5)
        return gamma, beta, mean, var

    raw = {}
    raw["w1"] = 0.2 * jax.random.normal(next(ks), (in_ch, Cb))          # 1x1
    raw["bn1"] = bn(Cb)
    raw["w2"] = 0.2 * jax.random.normal(next(ks), (cardinality, 3, 3, cg, cg))
    raw["bn2"] = bn(Cb)
    raw["w3"] = 0.2 * jax.random.normal(next(ks), (Cb, out_ch))         # 1x1
    raw["bn3"] = bn(out_ch)
    if in_ch != out_ch:
        raw["ws"] = 0.2 * jax.random.normal(next(ks), (in_ch, out_ch))  # 1x1
        raw["bns"] = bn(out_ch)
    return raw


def prepare_params(raw, in_ch, out_ch, cardinality):
    Cb = cardinality * out_ch // EXPANSION
    cg = Cb // cardinality
    Cinp = _round_up(in_ch, LANE)
    Cbp = _round_up(Cb, LANE)
    Coutp = _round_up(out_ch, LANE)

    s1, b1 = _bn_fold(*raw["bn1"])
    s2, b2 = _bn_fold(*raw["bn2"])
    s3, b3 = _bn_fold(*raw["bn3"])

    # block-diagonal per-tap conv2 weights with BN2 scale folded in
    w2 = jnp.zeros((3, 3, Cbp, Cbp), jnp.float32)
    for ky in range(3):
        for kx in range(3):
            for g in range(cardinality):
                blk = raw["w2"][g, ky, kx] * s2[g * cg:(g + 1) * cg][None, :]
                w2 = w2.at[ky, kx,
                           g * cg:(g + 1) * cg,
                           g * cg:(g + 1) * cg].set(blk)

    prep = {
        "w1": _pad2(raw["w1"] * s1[None, :], Cinp, Cbp).astype(jnp.bfloat16),
        "b1": _pad2(b1[None, :], 1, Cbp),
        "w2": w2.astype(jnp.bfloat16),
        "b2": _pad2(b2[None, :], 1, Cbp),
        "w3": _pad2(raw["w3"] * s3[None, :], Cbp, Coutp).astype(jnp.bfloat16),
    }
    if "ws" in raw:
        ss, bs = _bn_fold(*raw["bns"])
        prep["ws"] = _pad2(raw["ws"] * ss[None, :], Cinp, Coutp).astype(jnp.bfloat16)
        b3_total = b3 + bs      # shortcut BN bias lands on every output pixel
    else:
        prep["ws"] = None
        b3_total = b3
    prep["b3"] = _pad2(b3_total[None, :], 1, Coutp)
    return prep


# ----------------------------------------------------------------------------
# main
# ----------------------------------------------------------------------------
if __name__ == "__main__":
    def run_case(N, in_ch, out_ch, H, W, stride, cardinality, key):
        kx, kp = jax.random.split(key)
        x = jax.random.normal(kx, (N, in_ch, H, W), dtype=jnp.float32)
        raw = init_params(kp, in_ch, out_ch, cardinality)
        prep = prepare_params(raw, in_ch, out_ch, cardinality)
        fwd = partial(bottleneck_forward, stride=stride, out_channels=out_ch)

        out = jax.jit(partial(fwd, use_pallas=True))(x, prep)
        out = jax.block_until_ready(out)
        ref = jax.jit(partial(fwd, use_pallas=False))(x, prep)
        ref = jax.block_until_ready(ref)

        assert out.shape == (N, out_ch, H * stride, W * stride), out.shape
        assert bool(jnp.allclose(out, ref, atol=2e-3, rtol=2e-3)), \
            float(jnp.max(jnp.abs(out - ref)))

    key = jax.random.PRNGKey(0)
    k1, k2 = jax.random.split(key)
    # DeconvBottleneckBlock(8, 16, stride=2, cardinality=4): projection shortcut,
    # 2x spatial upsampling (transposed conv).
    run_case(2, 8, 16, 16, 16, 2, 4, k1)
    # DeconvBottleneckBlock(16, 16, stride=1, cardinality=4): identity shortcut.
    run_case(2, 16, 16, 16, 16, 1, 4, k2)

    print("KERNEL_OK")
</pallas_src>

<mosaic_0001>
module attributes {stable_mosaic.version = 11 : i64} {
  func.func @_mm_bias_kernel(%arg0: i32, %arg1: memref<256x128xbf16, #tpu.memory_space<vmem>>, %arg2: memref<128x128xbf16, #tpu.memory_space<vmem>>, %arg3: memref<1x128xf32, #tpu.memory_space<vmem>>, %arg4: memref<256x128xbf16, #tpu.memory_space<vmem>>) attributes {dimension_semantics = [#tpu.dimension_semantics<parallel>], iteration_bounds = array<i64: 2>, scalar_prefetch = 0 : i64, scratch_operands = 0 : i64, tpu.core_type = #tpu.core_type<tc>, window_params = [{transform_indices = @transform_0, window_bounds = array<i64: 256, 128>}, {pipeline_mode = #tpu.pipeline_mode<synchronous>, transform_indices = @transform_1, window_bounds = array<i64: 128, 128>}, {pipeline_mode = #tpu.pipeline_mode<synchronous>, transform_indices = @transform_2, window_bounds = array<i64: 1, 128>}, {transform_indices = @transform_3, window_bounds = array<i64: 256, 128>}]} {
    %c0 = arith.constant 0 : index
    %c0_0 = arith.constant 0 : index
    %0 = vector.load %arg1[%c0, %c0_0] : memref<256x128xbf16, #tpu.memory_space<vmem>>, vector<256x128xbf16>
    %c0_1 = arith.constant 0 : index
    %c0_2 = arith.constant 0 : index
    %1 = vector.load %arg2[%c0_1, %c0_2] : memref<128x128xbf16, #tpu.memory_space<vmem>>, vector<128x128xbf16>
    %cst = arith.constant dense<0.000000e+00> : vector<256x128xf32>
    %2 = tpu.matmul %0, %1, %cst {dimension_numbers = #tpu.dot_dimension_numbers<[1], [0], [0], [1], [0, 0, 1, 1], [], []>} : vector<256x128xbf16>, vector<128x128xbf16>, vector<256x128xf32> -> vector<256x128xf32>
    %c0_3 = arith.constant 0 : index
    %c0_4 = arith.constant 0 : index
    %3 = vector.load %arg3[%c0_3, %c0_4] : memref<1x128xf32, #tpu.memory_space<vmem>>, vector<1x128xf32>
    %4 = vector.broadcast %3 : vector<1x128xf32> to vector<256x128xf32>
    %5 = arith.addf %2, %4 : vector<256x128xf32>
    %cst_5 = arith.constant 0.000000e+00 : f32
    %6 = vector.broadcast %cst_5 : f32 to vector<256x128xf32>
    %7 = arith.maximumf %5, %6 : vector<256x128xf32>
    %8 = arith.truncf %7 : vector<256x128xf32> to vector<256x128xbf16>
    %c0_6 = arith.constant 0 : index
    %c0_7 = arith.constant 0 : index
    %9 = vector.load %arg4[%c0_6, %c0_7] : memref<256x128xbf16, #tpu.memory_space<vmem>>, vector<256x128xbf16>
    tpu.vector_store %arg4[%c0_6, %c0_7], %8 {strides = array<i32>} : memref<256x128xbf16, #tpu.memory_space<vmem>>, vector<256x128xbf16>,
    return
  }
  func.func @transform_0(%arg0: i32) -> (i32, i32) {
    %c0_i32 = arith.constant 0 : i32
    %c0_i32_0 = arith.constant 0 : i32
    return %arg0, %c0_i32 : i32, i32
  }
  func.func @transform_1(%arg0: i32) -> (i32, i32) {
    %c0_i32 = arith.constant 0 : i32
    %c0_i32_0 = arith.constant 0 : i32
    %c0_i32_1 = arith.constant 0 : i32
    return %c0_i32, %c0_i32_0 : i32, i32
  }
  func.func @transform_2(%arg0: i32) -> (i32, i32) {
    %c0_i32 = arith.constant 0 : i32
    %c0_i32_0 = arith.constant 0 : i32
    %c0_i32_1 = arith.constant 0 : i32
    return %c0_i32, %c0_i32_0 : i32, i32
  }
  func.func @transform_3(%arg0: i32) -> (i32, i32) {
    %c0_i32 = arith.constant 0 : i32
    %c0_i32_0 = arith.constant 0 : i32
    return %arg0, %c0_i32 : i32, i32
  }
}

module attributes {stable_mosaic.version = 11 : i64} {
  func.func @kernel(%arg0: i32, %arg1: memref<256x128xbf16, #tpu.memory_space<vmem>>, %arg2: memref<256x128xbf16, #tpu.memory_space<vmem>>, %arg3: memref<256x128xbf16, #tpu.memory_space<vmem>>, %arg4: memref<256x128xbf16, #tpu.memory_space<vmem>>, %arg5: memref<128x128xbf16, #tpu.memory_space<vmem>>, %arg6: memref<128x128xbf16, #tpu.memory_space<vmem>>, %arg7: memref<128x128xbf16, #tpu.memory_space<vmem>>, %arg8: memref<128x128xbf16, #tpu.memory_space<vmem>>, %arg9: memref<128x128xbf16, #tpu.memory_space<vmem>>, %arg10: memref<128x128xbf16, #tpu.memory_space<vmem>>, %arg11: memref<128x128xbf16, #tpu.memory_space<vmem>>, %arg12: memref<128x128xbf16, #tpu.memory_space<vmem>>, %arg13: memref<128x128xbf16, #tpu.memory_space<vmem>>, %arg14: memref<1x128xf32, #tpu.memory_space<vmem>>, %arg15: memref<128x128xbf16, #tpu.memory_space<vmem>>, %arg16: memref<1x128xf32, #tpu.memory_space<vmem>>, %arg17: memref<256x128xbf16, #tpu.memory_space<vmem>>, %arg18: memref<128x128xbf16, #tpu.memory_space<vmem>>, %arg19: memref<256x512xf32, #tpu.memory_space<vmem>>) attributes {dimension_semantics = [#tpu.dimension_semantics<parallel>], iteration_bounds = array<i64: 2>, scalar_prefetch = 0 : i64, scratch_operands = 0 : i64, tpu.core_type = #tpu.core_type<tc>, window_params = [{transform_indices = @transform_0, window_bounds = array<i64: 256, 128>}, {transform_indices = @transform_1, window_bounds = array<i64: 256, 128>}, {transform_indices = @transform_2, window_bounds = array<i64: 256, 128>}, {transform_indices = @transform_3, window_bounds = array<i64: 256, 128>}, {pipeline_mode = #tpu.pipeline_mode<synchronous>, transform_indices = @transform_4, window_bounds = array<i64: 128, 128>}, {pipeline_mode = #tpu.pipeline_mode<synchronous>, transform_indices = @transform_5, window_bounds = array<i64: 128, 128>}, {pipeline_mode = #tpu.pipeline_mode<synchronous>, transform_indices = @transform_6, window_bounds = array<i64: 128, 128>}, {pipeline_mode = #tpu.pipeline_mode<synchronous>, transform_indices = @transform_7, window_bounds = array<i64: 128, 128>}, {pipeline_mode = #tpu.pipeline_mode<synchronous>, transform_indices = @transform_8, window_bounds = array<i64: 128, 128>}, {pipeline_mode = #tpu.pipeline_mode<synchronous>, transform_indices = @transform_9, window_bounds = array<i64: 128, 128>}, {pipeline_mode = #tpu.pipeline_mode<synchronous>, transform_indices = @transform_10, window_bounds = array<i64: 128, 128>}, {pipeline_mode = #tpu.pipeline_mode<synchronous>, transform_indices = @transform_11, window_bounds = array<i64: 128, 128>}, {pipeline_mode = #tpu.pipeline_mode<synchronous>, transform_indices = @transform_12, window_bounds = array<i64: 128, 128>}, {pipeline_mode = #tpu.pipeline_mode<synchronous>, transform_indices = @transform_13, window_bounds = array<i64: 1, 128>}, {pipeline_mode = #tpu.pipeline_mode<synchronous>, transform_indices = @transform_14, window_bounds = array<i64: 128, 128>}, {pipeline_mode = #tpu.pipeline_mode<synchronous>, transform_indices = @transform_15, window_bounds = array<i64: 1, 128>}, {transform_indices = @transform_16, window_bounds = array<i64: 256, 128>}, {pipeline_mode = #tpu.pipeline_mode<synchronous>, transform_indices = @transform_17, window_bounds = array<i64: 128, 128>}, {transform_indices = @transform_18, window_bounds = array<i64: 256, 512>}]} {
    %c0 = arith.constant 0 : index
    %c0_0 = arith.constant 0 : index
    %0 = vector.load %arg1[%c0, %c0_0] : memref<256x128xbf16, #tpu.memory_space<vmem>>, vector<256x128xbf16>
    %c0_1 = arith.constant 0 : index
    %c0_2 = arith.constant 0 : index
    %1 = vector.load %arg5[%c0_1, %c0_2] : memref<128x128xbf16, #tpu.memory_space<vmem>>, vector<128x128xbf16>
    %cst = arith.constant dense<0.000000e+00> : vector<256x128xf32>
    %2 = tpu.matmul %0, %1, %cst {dimension_numbers = #tpu.dot_dimension_numbers<[1], [0], [0], [1], [0, 0, 1, 1], [], []>} : vector<256x128xbf16>, vector<128x128xbf16>, vector<256x128xf32> -> vector<256x128xf32>
    %c0_3 = arith.constant 0 : index
    %c0_4 = arith.constant 0 : index
    %3 = vector.load %arg14[%c0_3, %c0_4] : memref<1x128xf32, #tpu.memory_space<vmem>>, vector<1x128xf32>
    %4 = vector.broadcast %3 : vector<1x128xf32> to vector<256x128xf32>
    %5 = arith.addf %2, %4 : vector<256x128xf32>
    %cst_5 = arith.constant 0.000000e+00 : f32
    %6 = vector.broadcast %cst_5 : f32 to vector<256x128xf32>
    %7 = arith.maximumf %5, %6 : vector<256x128xf32>
    %8 = arith.truncf %7 : vector<256x128xf32> to vector<256x128xbf16>
    %c0_6 = arith.constant 0 : index
    %c0_7 = arith.constant 0 : index
    %9 = vector.load %arg15[%c0_6, %c0_7] : memref<128x128xbf16, #tpu.memory_space<vmem>>, vector<128x128xbf16>
    %cst_8 = arith.constant dense<0.000000e+00> : vector<256x128xf32>
    %10 = tpu.matmul %8, %9, %cst_8 {dimension_numbers = #tpu.dot_dimension_numbers<[1], [0], [0], [1], [0, 0, 1, 1], [], []>} : vector<256x128xbf16>, vector<128x128xbf16>, vector<256x128xf32> -> vector<256x128xf32>
    %c0_9 = arith.constant 0 : index
    %c0_10 = arith.constant 0 : index
    %11 = vector.load %arg16[%c0_9, %c0_10] : memref<1x128xf32, #tpu.memory_space<vmem>>, vector<1x128xf32>
    %12 = vector.broadcast %11 : vector<1x128xf32> to vector<256x128xf32>
    %13 = arith.addf %10, %12 : vector<256x128xf32>
    %c0_11 = arith.constant 0 : index
    %c0_12 = arith.constant 0 : index
    %14 = vector.load %arg17[%c0_11, %c0_12] : memref<256x128xbf16, #tpu.memory_space<vmem>>, vector<256x128xbf16>
    %c0_13 = arith.constant 0 : index
    %c0_14 = arith.constant 0 : index
    %15 = vector.load %arg18[%c0_13, %c0_14] : memref<128x128xbf16, #tpu.memory_space<vmem>>, vector<128x128xbf16>
    %cst_15 = arith.constant dense<0.000000e+00> : vector<256x128xf32>
    %16 = tpu.matmul %14, %15, %cst_15 {dimension_numbers = #tpu.dot_dimension_numbers<[1], [0], [0], [1], [0, 0, 1, 1], [], []>} : vector<256x128xbf16>, vector<128x128xbf16>, vector<256x128xf32> -> vector<256x128xf32>
    %17 = arith.addf %13, %16 : vector<256x128xf32>
    %cst_16 = arith.constant 0.000000e+00 : f32
    %18 = vector.broadcast %cst_16 : f32 to vector<256x128xf32>
    %19 = arith.maximumf %17, %18 : vector<256x128xf32>
    %c0_17 = arith.constant 0 : index
    %c0_18 = arith.constant 0 : index
    %20 = vector.load %arg19[%c0_17, %c0_18] : memref<256x512xf32, #tpu.memory_space<vmem>>, vector<256x128xf32>
    tpu.vector_store %arg19[%c0_17, %c0_18], %19 {strides = array<i32>} : memref<256x512xf32, #tpu.memory_space<vmem>>, vector<256x128xf32>,
    %c0_19 = arith.constant 0 : index
    %c0_20 = arith.constant 0 : index
    %21 = vector.load %arg2[%c0_19, %c0_20] : memref<256x128xbf16, #tpu.memory_space<vmem>>, vector<256x128xbf16>
    %c0_21 = arith.constant 0 : index
    %c0_22 = arith.constant 0 : index
    %22 = vector.load %arg6[%c0_21, %c0_22] : memref<128x128xbf16, #tpu.memory_space<vmem>>, vector<128x128xbf16>
    %cst_23 = arith.constant dense<0.000000e+00> : vector<256x128xf32>
    %23 = tpu.matmul %21, %22, %cst_23 {dimension_numbers = #tpu.dot_dimension_numbers<[1], [0], [0], [1], [0, 0, 1, 1], [], []>} : vector<256x128xbf16>, vector<128x128xbf16>, vector<256x128xf32> -> vector<256x128xf32>
    %c0_24 = arith.constant 0 : index
    %c0_25 = arith.constant 0 : index
    %24 = vector.load %arg1[%c0_24, %c0_25] : memref<256x128xbf16, #tpu.memory_space<vmem>>, vector<256x128xbf16>
    %c0_26 = arith.constant 0 : index
    %c0_27 = arith.constant 0 : index
    %25 = vector.load %arg7[%c0_26, %c0_27] : memref<128x128xbf16, #tpu.memory_space<vmem>>, vector<128x128xbf16>
    %cst_28 = arith.constant dense<0.000000e+00> : vector<256x128xf32>
    %26 = tpu.matmul %24, %25, %cst_28 {dimension_numbers = #tpu.dot_dimension_numbers<[1], [0], [0], [1], [0, 0, 1, 1], [], []>} : vector<256x128xbf16>, vector<128x128xbf16>, vector<256x128xf32> -> vector<256x128xf32>
    %27 = arith.addf %23, %26 : vector<256x128xf32>
    %c0_29 = arith.constant 0 : index
    %c0_30 = arith.constant 0 : index
    %28 = vector.load %arg14[%c0_29, %c0_30] : memref<1x128xf32, #tpu.memory_space<vmem>>, vector<1x128xf32>
    %29 = vector.broadcast %28 : vector<1x128xf32> to vector<256x128xf32>
    %30 = arith.addf %27, %29 : vector<256x128xf32>
    %cst_31 = arith.constant 0.000000e+00 : f32
    %31 = vector.broadcast %cst_31 : f32 to vector<256x128xf32>
    %32 = arith.maximumf %30, %31 : vector<256x128xf32>
    %33 = arith.truncf %32 : vector<256x128xf32> to vector<256x128xbf16>
    %c0_32 = arith.constant 0 : index
    %c0_33 = arith.constant 0 : index
    %34 = vector.load %arg15[%c0_32, %c0_33] : memref<128x128xbf16, #tpu.memory_space<vmem>>, vector<128x128xbf16>
    %cst_34 = arith.constant dense<0.000000e+00> : vector<256x128xf32>
    %35 = tpu.matmul %33, %34, %cst_34 {dimension_numbers = #tpu.dot_dimension_numbers<[1], [0], [0], [1], [0, 0, 1, 1], [], []>} : vector<256x128xbf16>, vector<128x128xbf16>, vector<256x128xf32> -> vector<256x128xf32>
    %c0_35 = arith.constant 0 : index
    %c0_36 = arith.constant 0 : index
    %36 = vector.load %arg16[%c0_35, %c0_36] : memref<1x128xf32, #tpu.memory_space<vmem>>, vector<1x128xf32>
    %37 = vector.broadcast %36 : vector<1x128xf32> to vector<256x128xf32>
    %38 = arith.addf %35, %37 : vector<256x128xf32>
    %cst_37 = arith.constant 0.000000e+00 : f32
    %39 = vector.broadcast %cst_37 : f32 to vector<256x128xf32>
    %40 = arith.maximumf %38, %39 : vector<256x128xf32>
    %c0_38 = arith.constant 0 : index
    %c128 = arith.constant 128 : index
    %41 = vector.load %arg19[%c0_38, %c128] : memref<256x512xf32, #tpu.memory_space<vmem>>, vector<256x128xf32>
    tpu.vector_store %arg19[%c0_38, %c128], %40 {strides = array<i32>} : memref<256x512xf32, #tpu.memory_space<vmem>>, vector<256x128xf32>,
    %c0_39 = arith.constant 0 : index
    %c0_40 = arith.constant 0 : index
    %42 = vector.load %arg3[%c0_39, %c0_40] : memref<256x128xbf16, #tpu.memory_space<vmem>>, vector<256x128xbf16>
    %c0_41 = arith.constant 0 : index
    %c0_42 = arith.constant 0 : index
    %43 = vector.load %arg8[%c0_41, %c0_42] : memref<128x128xbf16, #tpu.memory_space<vmem>>, vector<128x128xbf16>
    %cst_43 = arith.constant dense<0.000000e+00> : vector<256x128xf32>
    %44 = tpu.matmul %42, %43, %cst_43 {dimension_numbers = #tpu.dot_dimension_numbers<[1], [0], [0], [1], [0, 0, 1, 1], [], []>} : vector<256x128xbf16>, vector<128x128xbf16>, vector<256x128xf32> -> vector<256x128xf32>
    %c0_44 = arith.constant 0 : index
    %c0_45 = arith.constant 0 : index
    %45 = vector.load %arg1[%c0_44, %c0_45] : memref<256x128xbf16, #tpu.memory_space<vmem>>, vector<256x128xbf16>
    %c0_46 = arith.constant 0 : index
    %c0_47 = arith.constant 0 : index
    %46 = vector.load %arg9[%c0_46, %c0_47] : memref<128x128xbf16, #tpu.memory_space<vmem>>, vector<128x128xbf16>
    %cst_48 = arith.constant dense<0.000000e+00> : vector<256x128xf32>
    %47 = tpu.matmul %45, %46, %cst_48 {dimension_numbers = #tpu.dot_dimension_numbers<[1], [0], [0], [1], [0, 0, 1, 1], [], []>} : vector<256x128xbf16>, vector<128x128xbf16>, vector<256x128xf32> -> vector<256x128xf32>
    %48 = arith.addf %44, %47 : vector<256x128xf32>
    %c0_49 = arith.constant 0 : index
    %c0_50 = arith.constant 0 : index
    %49 = vector.load %arg14[%c0_49, %c0_50] : memref<1x128xf32, #tpu.memory_space<vmem>>, vector<1x128xf32>
    %50 = vector.broadcast %49 : vector<1x128xf32> to vector<256x128xf32>
    %51 = arith.addf %48, %50 : vector<256x128xf32>
    %cst_51 = arith.constant 0.000000e+00 : f32
    %52 = vector.broadcast %cst_51 : f32 to vector<256x128xf32>
    %53 = arith.maximumf %51, %52 : vector<256x128xf32>
    %54 = arith.truncf %53 : vector<256x128xf32> to vector<256x128xbf16>
    %c0_52 = arith.constant 0 : index
    %c0_53 = arith.constant 0 : index
    %55 = vector.load %arg15[%c0_52, %c0_53] : memref<128x128xbf16, #tpu.memory_space<vmem>>, vector<128x128xbf16>
    %cst_54 = arith.constant dense<0.000000e+00> : vector<256x128xf32>
    %56 = tpu.matmul %54, %55, %cst_54 {dimension_numbers = #tpu.dot_dimension_numbers<[1], [0], [0], [1], [0, 0, 1, 1], [], []>} : vector<256x128xbf16>, vector<128x128xbf16>, vector<256x128xf32> -> vector<256x128xf32>
    %c0_55 = arith.constant 0 : index
    %c0_56 = arith.constant 0 : index
    %57 = vector.load %arg16[%c0_55, %c0_56] : memref<1x128xf32, #tpu.memory_space<vmem>>, vector<1x128xf32>
    %58 = vector.broadcast %57 : vector<1x128xf32> to vector<256x128xf32>
    %59 = arith.addf %56, %58 : vector<256x128xf32>
    %cst_57 = arith.constant 0.000000e+00 : f32
    %60 = vector.broadcast %cst_57 : f32 to vector<256x128xf32>
    %61 = arith.maximumf %59, %60 : vector<256x128xf32>
    %c0_58 = arith.constant 0 : index
    %c256 = arith.constant 256 : index
    %62 = vector.load %arg19[%c0_58, %c256] : memref<256x512xf32, #tpu.memory_space<vmem>>, vector<256x128xf32>
    tpu.vector_store %arg19[%c0_58, %c256], %61 {strides = array<i32>} : memref<256x512xf32, #tpu.memory_space<vmem>>, vector<256x128xf32>,
    %c0_59 = arith.constant 0 : index
    %c0_60 = arith.constant 0 : index
    %63 = vector.load %arg4[%c0_59, %c0_60] : memref<256x128xbf16, #tpu.memory_space<vmem>>, vector<256x128xbf16>
    %c0_61 = arith.constant 0 : index
    %c0_62 = arith.constant 0 : index
    %64 = vector.load %arg10[%c0_61, %c0_62] : memref<128x128xbf16, #tpu.memory_space<vmem>>, vector<128x128xbf16>
    %cst_63 = arith.constant dense<0.000000e+00> : vector<256x128xf32>
    %65 = tpu.matmul %63, %64, %cst_63 {dimension_numbers = #tpu.dot_dimension_numbers<[1], [0], [0], [1], [0, 0, 1, 1], [], []>} : vector<256x128xbf16>, vector<128x128xbf16>, vector<256x128xf32> -> vector<256x128xf32>
    %c0_64 = arith.constant 0 : index
    %c0_65 = arith.constant 0 : index
    %66 = vector.load %arg3[%c0_64, %c0_65] : memref<256x128xbf16, #tpu.memory_space<vmem>>, vector<256x128xbf16>
    %c0_66 = arith.constant 0 : index
    %c0_67 = arith.constant 0 : index
    %67 = vector.load %arg11[%c0_66, %c0_67] : memref<128x128xbf16, #tpu.memory_space<vmem>>, vector<128x128xbf16>
    %cst_68 = arith.constant dense<0.000000e+00> : vector<256x128xf32>
    %68 = tpu.matmul %66, %67, %cst_68 {dimension_numbers = #tpu.dot_dimension_numbers<[1], [0], [0], [1], [0, 0, 1, 1], [], []>} : vector<256x128xbf16>, vector<128x128xbf16>, vector<256x128xf32> -> vector<256x128xf32>
    %69 = arith.addf %65, %68 : vector<256x128xf32>
    %c0_69 = arith.constant 0 : index
    %c0_70 = arith.constant 0 : index
    %70 = vector.load %arg2[%c0_69, %c0_70] : memref<256x128xbf16, #tpu.memory_space<vmem>>, vector<256x128xbf16>
    %c0_71 = arith.constant 0 : index
    %c0_72 = arith.constant 0 : index
    %71 = vector.load %arg12[%c0_71, %c0_72] : memref<128x128xbf16, #tpu.memory_space<vmem>>, vector<128x128xbf16>
    %cst_73 = arith.constant dense<0.000000e+00> : vector<256x128xf32>
    %72 = tpu.matmul %70, %71, %cst_73 {dimension_numbers = #tpu.dot_dimension_numbers<[1], [0], [0], [1], [0, 0, 1, 1], [], []>} : vector<256x128xbf16>, vector<128x128xbf16>, vector<256x128xf32> -> vector<256x128xf32>
    %73 = arith.addf %69, %72 : vector<256x128xf32>
    %c0_74 = arith.constant 0 : index
    %c0_75 = arith.constant 0 : index
    %74 = vector.load %arg1[%c0_74, %c0_75] : memref<256x128xbf16, #tpu.memory_space<vmem>>, vector<256x128xbf16>
    %c0_76 = arith.constant 0 : index
    %c0_77 = arith.constant 0 : index
    %75 = vector.load %arg13[%c0_76, %c0_77] : memref<128x128xbf16, #tpu.memory_space<vmem>>, vector<128x128xbf16>
    %cst_78 = arith.constant dense<0.000000e+00> : vector<256x128xf32>
    %76 = tpu.matmul %74, %75, %cst_78 {dimension_numbers = #tpu.dot_dimension_numbers<[1], [0], [0], [1], [0, 0, 1, 1], [], []>} : vector<256x128xbf16>, vector<128x128xbf16>, vector<256x128xf32> -> vector<256x128xf32>
    %77 = arith.addf %73, %76 : vector<256x128xf32>
    %c0_79 = arith.constant 0 : index
    %c0_80 = arith.constant 0 : index
    %78 = vector.load %arg14[%c0_79, %c0_80] : memref<1x128xf32, #tpu.memory_space<vmem>>, vector<1x128xf32>
    %79 = vector.broadcast %78 : vector<1x128xf32> to vector<256x128xf32>
    %80 = arith.addf %77, %79 : vector<256x128xf32>
    %cst_81 = arith.constant 0.000000e+00 : f32
    %81 = vector.broadcast %cst_81 : f32 to vector<256x128xf32>
    %82 = arith.maximumf %80, %81 : vector<256x128xf32>
    %83 = arith.truncf %82 : vector<256x128xf32> to vector<256x128xbf16>
    %c0_82 = arith.constant 0 : index
    %c0_83 = arith.constant 0 : index
    %84 = vector.load %arg15[%c0_82, %c0_83] : memref<128x128xbf16, #tpu.memory_space<vmem>>, vector<128x128xbf16>
    %cst_84 = arith.constant dense<0.000000e+00> : vector<256x128xf32>
    %85 = tpu.matmul %83, %84, %cst_84 {dimension_numbers = #tpu.dot_dimension_numbers<[1], [0], [0], [1], [0, 0, 1, 1], [], []>} : vector<256x128xbf16>, vector<128x128xbf16>, vector<256x128xf32> -> vector<256x128xf32>
    %c0_85 = arith.constant 0 : index
    %c0_86 = arith.constant 0 : index
    %86 = vector.load %arg16[%c0_85, %c0_86] : memref<1x128xf32, #tpu.memory_space<vmem>>, vector<1x128xf32>
    %87 = vector.broadcast %86 : vector<1x128xf32> to vector<256x128xf32>
    %88 = arith.addf %85, %87 : vector<256x128xf32>
    %cst_87 = arith.constant 0.000000e+00 : f32
    %89 = vector.broadcast %cst_87 : f32 to vector<256x128xf32>
    %90 = arith.maximumf %88, %89 : vector<256x128xf32>
    %c0_88 = arith.constant 0 : index
    %c384 = arith.constant 384 : index
    %91 = vector.load %arg19[%c0_88, %c384] : memref<256x512xf32, #tpu.memory_space<vmem>>, vector<256x128xf32>
    tpu.vector_store %arg19[%c0_88, %c384], %90 {strides = array<i32>} : memref<256x512xf32, #tpu.memory_space<vmem>>, vector<256x128xf32>,
    return
  }
  func.func @transform_0(%arg0: i32) -> (i32, i32) {
    %c0_i32 = arith.constant 0 : i32
    %c0_i32_0 = arith.constant 0 : i32
    return %arg0, %c0_i32 : i32, i32
  }
  func.func @transform_1(%arg0: i32) -> (i32, i32) {
    %c0_i32 = arith.constant 0 : i32
    %c0_i32_0 = arith.constant 0 : i32
    return %arg0, %c0_i32 : i32, i32
  }
  func.func @transform_2(%arg0: i32) -> (i32, i32) {
    %c0_i32 = arith.constant 0 : i32
    %c0_i32_0 = arith.constant 0 : i32
    return %arg0, %c0_i32 : i32, i32
  }
  func.func @transform_3(%arg0: i32) -> (i32, i32) {
    %c0_i32 = arith.constant 0 : i32
    %c0_i32_0 = arith.constant 0 : i32
    return %arg0, %c0_i32 : i32, i32
  }
  func.func @transform_4(%arg0: i32) -> (i32, i32) {
    %c0_i32 = arith.constant 0 : i32
    %c0_i32_0 = arith.constant 0 : i32
    %c0_i32_1 = arith.constant 0 : i32
    return %c0_i32, %c0_i32_0 : i32, i32
  }
  func.func @transform_5(%arg0: i32) -> (i32, i32) {
    %c0_i32 = arith.constant 0 : i32
    %c0_i32_0 = arith.constant 0 : i32
    %c0_i32_1 = arith.constant 0 : i32
    return %c0_i32, %c0_i32_0 : i32, i32
  }
  func.func @transform_6(%arg0: i32) -> (i32, i32) {
    %c0_i32 = arith.constant 0 : i32
    %c0_i32_0 = arith.constant 0 : i32
    %c0_i32_1 = arith.constant 0 : i32
    return %c0_i32, %c0_i32_0 : i32, i32
  }
  func.func @transform_7(%arg0: i32) -> (i32, i32) {
    %c0_i32 = arith.constant 0 : i32
    %c0_i32_0 = arith.constant 0 : i32
    %c0_i32_1 = arith.constant 0 : i32
    return %c0_i32, %c0_i32_0 : i32, i32
  }
  func.func @transform_8(%arg0: i32) -> (i32, i32) {
    %c0_i32 = arith.constant 0 : i32
    %c0_i32_0 = arith.constant 0 : i32
    %c0_i32_1 = arith.constant 0 : i32
    return %c0_i32, %c0_i32_0 : i32, i32
  }
  func.func @transform_9(%arg0: i32) -> (i32, i32) {
    %c0_i32 = arith.constant 0 : i32
    %c0_i32_0 = arith.constant 0 : i32
    %c0_i32_1 = arith.constant 0 : i32
    return %c0_i32, %c0_i32_0 : i32, i32
  }
  func.func @transform_10(%arg0: i32) -> (i32, i32) {
    %c0_i32 = arith.constant 0 : i32
    %c0_i32_0 = arith.constant 0 : i32
    %c0_i32_1 = arith.constant 0 : i32
    return %c0_i32, %c0_i32_0 : i32, i32
  }
  func.func @transform_11(%arg0: i32) -> (i32, i32) {
    %c0_i32 = arith.constant 0 : i32
    %c0_i32_0 = arith.constant 0 : i32
    %c0_i32_1 = arith.constant 0 : i32
    return %c0_i32, %c0_i32_0 : i32, i32
  }
  func.func @transform_12(%arg0: i32) -> (i32, i32) {
    %c0_i32 = arith.constant 0 : i32
    %c0_i32_0 = arith.constant 0 : i32
    %c0_i32_1 = arith.constant 0 : i32
    return %c0_i32, %c0_i32_0 : i32, i32
  }
  func.func @transform_13(%arg0: i32) -> (i32, i32) {
    %c0_i32 = arith.constant 0 : i32
    %c0_i32_0 = arith.constant 0 : i32
    %c0_i32_1 = arith.constant 0 : i32
    return %c0_i32, %c0_i32_0 : i32, i32
  }
  func.func @transform_14(%arg0: i32) -> (i32, i32) {
    %c0_i32 = arith.constant 0 : i32
    %c0_i32_0 = arith.constant 0 : i32
    %c0_i32_1 = arith.constant 0 : i32
    return %c0_i32, %c0_i32_0 : i32, i32
  }
  func.func @transform_15(%arg0: i32) -> (i32, i32) {
    %c0_i32 = arith.constant 0 : i32
    %c0_i32_0 = arith.constant 0 : i32
    %c0_i32_1 = arith.constant 0 : i32
    return %c0_i32, %c0_i32_0 : i32, i32
  }
  func.func @transform_16(%arg0: i32) -> (i32, i32) {
    %c0_i32 = arith.constant 0 : i32
    %c0_i32_0 = arith.constant 0 : i32
    return %arg0, %c0_i32 : i32, i32
  }
  func.func @transform_17(%arg0: i32) -> (i32, i32) {
    %c0_i32 = arith.constant 0 : i32
    %c0_i32_0 = arith.constant 0 : i32
    %c0_i32_1 = arith.constant 0 : i32
    return %c0_i32, %c0_i32_0 : i32, i32
  }
  func.func @transform_18(%arg0: i32) -> (i32, i32) {
    %c0_i32 = arith.constant 0 : i32
    %c0_i32_0 = arith.constant 0 : i32
    return %arg0, %c0_i32 : i32, i32
  }
}

</mosaic_0001>

<llo_original>
// kernel: bottleneck_forward.2
$region0: #{bottleneck_forward.2}
  #allocation0 [shape = 'u32[]', space=smem, size = 0x4, offset = 0x4, fixed_abs, tag = 'smem constant byte address 0x4 - core index']
  #allocation1 [shape = 'u32[72,128]{1,0:T(1,128)}', space=vmem, size = 0x9000, scoped, tag = 'internal scratch']
  %s0 = inlined_call_operand.vmem [shape: bf16[512,128], index: 0, kind: input, shape index: {}]
  %s1 = inlined_call_operand.vmem [shape: bf16[128,128], index: 1, kind: input, shape index: {}]
  %s2 = inlined_call_operand.vmem [shape: f32[1,128], index: 2, kind: input, shape index: {}]
  %s3 = inlined_call_operand.vmem [shape: bf16[512,128], index: 3, kind: output, shape index: {}]
  %s4 = sld [smem:[#allocation0]]
  $region45: #{bottleneck_forward.2} parent=0
    _
  %s6 = ssub.s32 1, %s4
  %s7 = scalar_select 0, %s6, %s4
  loop: start=0, step=1, limit=4
  $region2: #{bottleneck_forward.2} parent=0 // loop_pre_header
    _
  $region3: #{bottleneck_forward.2} parent=0 // loop_header
    %s9 = sphi 0, %s13
    %p10 = scmp.ge.s32.totalorder %s9, 4
    %s19 = sphi 0, %s21
    %s22 = sphi 0, %s19
    %s23 = sphi 0, %s22
    %s39 = sphi 0, %s23
    %s43 = sphi 0, %s43
    %s45 = sphi 0, %s43
    %s46 = sphi 0, %s45
    %s60 = sphi 0, %s46
    %s64 = sphi 0, %s64
    %s66 = sphi 0, %s64
    %s67 = sphi 0, %s66
    %s81 = sphi 0, %s67
    %s87 = sphi 0, %s89
    %s90 = sphi 0, %s87
    %s91 = sphi 0, %s90
    %s107 = sphi 0, %s91
  $region4: #{bottleneck_forward.2} parent=0 // loop_header_branch
    %12 = sbr.rel (%p10) target = $region8
  $region5: #{bottleneck_forward.2} parent=0 // loop_body
    %s14 = ssub.s32 %s9, 1
    %s15 = ssub.s32 %s9, 2
    %s16 = sadd.s32 %s9, 1
    %s17 = ssub.s32 %s9, %s16
    %p18 = scmp.eq.s32.totalorder %s17, 0
    %s20 = sadd.s32 %s19, 1
    %s21 = scalar_select %p18, %s19, %s20
    %p24 = pneg %p18
    %p25 = scmp.eq.s32.totalorder %s9, 1
    %p26 = por %p24, %p25
    %p27 = scmp.ne.s32.totalorder %s19, %s22
    %p28 = scmp.eq.s32.totalorder %s9, 0
    %p29 = por %p27, %p28
    %p30 = scmp.ne.s32.totalorder %s19, %s22
    %p31 = scmp.eq.s32.totalorder %s14, 1
    %p32 = por %p30, %p31
    %p33 = scmp.ne.s32.totalorder %s22, %s23
    %p34 = scmp.eq.s32.totalorder %s14, 0
    %p35 = por %p33, %p34
    %p36 = scmp.ne.s32.totalorder %s22, %s23
    %p37 = scmp.eq.s32.totalorder %s15, 1
    %p38 = por %p36, %p37
    %p40 = scmp.ne.s32.totalorder %s23, %s39
    %p41 = scmp.eq.s32.totalorder %s15, 0
    %p42 = por %p40, %p41
    %s44 = sadd.s32 %s43, 1
    %p47 = scmp.eq.s32.totalorder %s9, 1
    %p48 = scmp.ne.s32.totalorder %s43, %s45
    %p49 = scmp.eq.s32.totalorder %s9, 0
    %p50 = por %p48, %p49
    %p51 = scmp.ne.s32.totalorder %s43, %s45
    %p52 = scmp.eq.s32.totalorder %s14, 1
    %p53 = por %p51, %p52
    %p54 = scmp.ne.s32.totalorder %s45, %s46
    %p55 = scmp.eq.s32.totalorder %s14, 0
    %p56 = por %p54, %p55
    %p57 = scmp.ne.s32.totalorder %s45, %s46
    %p58 = scmp.eq.s32.totalorder %s15, 1
    %p59 = por %p57, %p58
    %p61 = scmp.ne.s32.totalorder %s46, %s60
    %p62 = scmp.eq.s32.totalorder %s15, 0
    %p63 = por %p61, %p62
    %s65 = sadd.s32 %s64, 1
    %p68 = scmp.eq.s32.totalorder %s9, 1
    %p69 = scmp.ne.s32.totalorder %s64, %s66
    %p70 = scmp.eq.s32.totalorder %s9, 0
    %p71 = por %p69, %p70
    %p72 = scmp.ne.s32.totalorder %s64, %s66
    %p73 = scmp.eq.s32.totalorder %s14, 1
    %p74 = por %p72, %p73
    %p75 = scmp.ne.s32.totalorder %s66, %s67
    %p76 = scmp.eq.s32.totalorder %s14, 0
    %p77 = por %p75, %p76
    %p78 = scmp.ne.s32.totalorder %s66, %s67
    %p79 = scmp.eq.s32.totalorder %s15, 1
    %p80 = por %p78, %p79
    %p82 = scmp.ne.s32.totalorder %s67, %s81
    %p83 = scmp.eq.s32.totalorder %s15, 0
    %p84 = por %p82, %p83
    %s85 = ssub.s32 %s9, %s16
    %p86 = scmp.eq.s32.totalorder %s85, 0
    %s88 = sadd.s32 %s87, 1
    %s89 = scalar_select %p86, %s87, %s88
    %p92 = pneg %p86
    %p93 = scmp.eq.s32.totalorder %s9, 1
    %p94 = por %p92, %p93
    %p95 = scmp.ne.s32.totalorder %s87, %s90
    %p96 = scmp.eq.s32.totalorder %s9, 0
    %p97 = por %p95, %p96
    %p98 = scmp.ne.s32.totalorder %s87, %s90
    %p99 = scmp.eq.s32.totalorder %s14, 1
    %p100 = por %p98, %p99
    %p101 = scmp.ne.s32.totalorder %s90, %s91
    %p102 = scmp.eq.s32.totalorder %s14, 0
    %p103 = por %p101, %p102
    %p104 = scmp.ne.s32.totalorder %s90, %s91
    %p105 = scmp.eq.s32.totalorder %s15, 1
    %p106 = por %p104, %p105
    %p108 = scmp.ne.s32.totalorder %s91, %s107
    %p109 = scmp.eq.s32.totalorder %s15, 0
    %p110 = por %p108, %p109
    %p111 = scmp.le.s32.totalorder 1, %s9
    %p112 = scmp.lt.s32.totalorder %s9, 3
    %p113 = pnand %p111, %p112
    %p114 = pneg %p113
    // Predicated region
    $region9: #{bottleneck_forward.2} parent=5 // pred_check
      _
    $region10: #{bottleneck_forward.2} parent=5 // pred_check_branch
      %116 = sbr.rel (%p113) target = $region12
    $region11: #{bottleneck_forward.2} parent=5 // pred_region
      %s117 = ssub.s32 %s9, 1
      // Predicated region
      $region13: #{bottleneck_forward.2} parent=11 // pred_check
        %p118 = pneg %p56
      $region14: #{bottleneck_forward.2} parent=11 // pred_check_branch
        %120 = sbr.rel (%p118) target = $region16
      $region15: #{bottleneck_forward.2} parent=11 // pred_region
        _
      $region16: #{bottleneck_forward.2} parent=11 // pred_fallthru
        _
      // Predicated region
      $region17: #{bottleneck_forward.2} parent=11 // pred_check
        %p121 = pneg %p77
      $region18: #{bottleneck_forward.2} parent=11 // pred_check_branch
        %123 = sbr.rel (%p121) target = $region20
      $region19: #{bottleneck_forward.2} parent=11 // pred_region
        _
      $region20: #{bottleneck_forward.2} parent=11 // pred_fallthru
        _
    $region12: #{bottleneck_forward.2} parent=5 // pred_fallthru
      _
    %p124 = scmp.lt.s32.totalorder %s9, 2
    // Predicated region
    $region21: #{bottleneck_forward.2} parent=5 // pred_check
      %p125 = pneg %p124
    $region22: #{bottleneck_forward.2} parent=5 // pred_check_branch
      %127 = sbr.rel (%p125) target = $region24
    $region23: #{bottleneck_forward.2} parent=5 // pred_region
      // Predicated region
      $region25: #{bottleneck_forward.2} parent=23 // pred_check
        %p128 = pneg %p29
      $region26: #{bottleneck_forward.2} parent=23 // pred_check_branch
        %130 = sbr.rel (%p128) target = $region28
      $region27: #{bottleneck_forward.2} parent=23 // pred_region
        %s131 = smul.u32 32, %s9
        %p132 = scmp.lt.s32.totalorder %s131, 63
        %s133 = scalar_select %p132, %s131, 63
        %s134 = smul.addr %s133, 4
        %s135 = scalar_lea.vmem %s0, %s134
        %s136 = smul.u32 32, %s9
      $region28: #{bottleneck_forward.2} parent=23 // pred_fallthru
        _
    $region24: #{bottleneck_forward.2} parent=5 // pred_fallthru
      _
    %p137 = scmp.le.s32.totalorder 1, %s9
    %p138 = scmp.lt.s32.totalorder %s9, 3
    %p139 = pnand %p137, %p138
    %p140 = pneg %p139
    // Predicated region
    $region29: #{bottleneck_forward.2} parent=5 // pred_check
      _
    $region30: #{bottleneck_forward.2} parent=5 // pred_check_branch
      %142 = sbr.rel (%p139) target = $region32
    $region31: #{bottleneck_forward.2} parent=5 // pred_region
      %s143 = ssub.s32 %s9, 1
      %s144 = smul.u32 32, %s14
      %p145 = scmp.lt.s32.totalorder %s144, 63
      %s146 = scalar_select %p145, %s144, 63
      %s147 = smul.addr %s146, 4
      %s148 = scalar_lea.vmem %s0, %s147
      %p149 = pneg %p35
      %p150 = pneg %p32
      %p151 = pneg %p56
      %p152 = pneg %p53
      %p153 = pneg %p77
      %p154 = pneg %p74
      %p155 = pneg %p103
      %p156 = pneg %p100
      %s157 = smul.u32 32, %s14
      %p158 = scmp.lt.s32.totalorder %s157, 63
      %s159 = scalar_select %p158, %s157, 63
      %s160 = smul.addr %s159, 4
      %s161 = scalar_lea.vmem %s3, %s160
      %s162 = smul.u32 32, %s14
      %p163 = scmp.lt.s32.totalorder %s162, 63
      %s164 = scalar_select %p163, %s162, 63
      %s165 = smul.addr %s164, 4
      %s166 = scalar_lea.vmem %s0, %s165
      %s167 = smul.u32 32, %s14
      %s168 = smul.u32 32, %s14
      %p169 = scmp.lt.s32.totalorder %s168, 63
      %s170 = scalar_select %p169, %s168, 63
      %s171 = smul.addr %s170, 4
      %s172 = scalar_lea.vmem %s3, %s171
      %s173 = smul.u32 32, %s14
      %v174 = vld [vmem:[%s166] sm:$0xf]
      %v175 = vld [vmem:[%s166 + $0x4] sm:$0xf]
      %v176 = vld [vmem:[%s166 + $0x8] sm:$0xf]
      %v177 = vld [vmem:[%s166 + $0xc] sm:$0xf]
      %v178 = vld [vmem:[%s166 + $0x10] sm:$0xf]
      %v179 = vld [vmem:[%s166 + $0x14] sm:$0xf]
      %v180 = vld [vmem:[%s166 + $0x18] sm:$0xf]
      %v181 = vld [vmem:[%s166 + $0x1c] sm:$0xf]
      %v182 = vld [vmem:[%s166 + $0x20] sm:$0xf]
      %v183 = vld [vmem:[%s166 + $0x24] sm:$0xf]
      %v184 = vld [vmem:[%s166 + $0x28] sm:$0xf]
      %v185 = vld [vmem:[%s166 + $0x2c] sm:$0xf]
      %v186 = vld [vmem:[%s166 + $0x30] sm:$0xf]
      %v187 = vld [vmem:[%s166 + $0x34] sm:$0xf]
      %v188 = vld [vmem:[%s166 + $0x38] sm:$0xf]
      %v189 = vld [vmem:[%s166 + $0x3c] sm:$0xf]
      %v190 = vld [vmem:[%s166 + $0x40] sm:$0xf]
      %v191 = vld [vmem:[%s166 + $0x44] sm:$0xf]
      %v192 = vld [vmem:[%s166 + $0x48] sm:$0xf]
      %v193 = vld [vmem:[%s166 + $0x4c] sm:$0xf]
      %v194 = vld [vmem:[%s166 + $0x50] sm:$0xf]
      %v195 = vld [vmem:[%s166 + $0x54] sm:$0xf]
      %v196 = vld [vmem:[%s166 + $0x58] sm:$0xf]
      %v197 = vld [vmem:[%s166 + $0x5c] sm:$0xf]
      %v198 = vld [vmem:[%s166 + $0x60] sm:$0xf]
      %v199 = vld [vmem:[%s166 + $0x64] sm:$0xf]
      %v200 = vld [vmem:[%s166 + $0x68] sm:$0xf]
      %v201 = vld [vmem:[%s166 + $0x6c] sm:$0xf]
      %v202 = vld [vmem:[%s166 + $0x70] sm:$0xf]
      %v203 = vld [vmem:[%s166 + $0x74] sm:$0xf]
      %v204 = vld [vmem:[%s166 + $0x78] sm:$0xf]
      %v205 = vld [vmem:[%s166 + $0x7c] sm:$0xf]
      %v206 = vld [vmem:[%s1] sm:$0xf]
      %v207 = vld [vmem:[%s1 + $0x4] sm:$0xf]
      %v208 = vld [vmem:[%s1 + $0x8] sm:$0xf]
      %v209 = vld [vmem:[%s1 + $0xc] sm:$0xf]
      %v210 = vld [vmem:[%s1 + $0x10] sm:$0xf]
      %v211 = vld [vmem:[%s1 + $0x14] sm:$0xf]
      %v212 = vld [vmem:[%s1 + $0x18] sm:$0xf]
      %v213 = vld [vmem:[%s1 + $0x1c] sm:$0xf]
      %v214 = vld [vmem:[%s1 + $0x20] sm:$0xf]
      %v215 = vld [vmem:[%s1 + $0x24] sm:$0xf]
      %v216 = vld [vmem:[%s1 + $0x28] sm:$0xf]
      %v217 = vld [vmem:[%s1 + $0x2c] sm:$0xf]
      %v218 = vld [vmem:[%s1 + $0x30] sm:$0xf]
      %v219 = vld [vmem:[%s1 + $0x34] sm:$0xf]
      %v220 = vld [vmem:[%s1 + $0x38] sm:$0xf]
      %v221 = vld [vmem:[%s1 + $0x3c] sm:$0xf]
      %v222 = vld [vmem:[%s2] sm:$0x1]
      %v224 = vperm.slane %v222, 0
      %v258 = vunpack.c.l.b16 %v174
      %v259 = vunpack.c.l.b16 %v175
      %v260 = vunpack.c.l.b16 %v176
      %v261 = vunpack.c.l.b16 %v177
      %v262 = vunpack.c.l.b16 %v178
      %v263 = vunpack.c.l.b16 %v179
      %v264 = vunpack.c.l.b16 %v180
      %v265 = vunpack.c.l.b16 %v181
      %v266 = vunpack.c.l.b16 %v182
      %v267 = vunpack.c.l.b16 %v183
      %v268 = vunpack.c.l.b16 %v184
      %v269 = vunpack.c.l.b16 %v185
      %v270 = vunpack.c.l.b16 %v186
      %v271 = vunpack.c.l.b16 %v187
      %v272 = vunpack.c.l.b16 %v188
      %v273 = vunpack.c.l.b16 %v189
      %v274 = vunpack.c.l.b16 %v190
      %v275 = vunpack.c.l.b16 %v191
      %v276 = vunpack.c.l.b16 %v192
      %v277 = vunpack.c.l.b16 %v193
      %v278 = vunpack.c.l.b16 %v194
      %v279 = vunpack.c.l.b16 %v195
      %v280 = vunpack.c.l.b16 %v196
      %v281 = vunpack.c.l.b16 %v197
      %v282 = vunpack.c.l.b16 %v198
      %v283 = vunpack.c.l.b16 %v199
      %v284 = vunpack.c.l.b16 %v200
      %v285 = vunpack.c.l.b16 %v201
      %v286 = vunpack.c.l.b16 %v202
      %v287 = vunpack.c.l.b16 %v203
      %v288 = vunpack.c.l.b16 %v204
      %v289 = vunpack.c.l.b16 %v205
      %v290 = vpack.c.b16 %v259, %v258
      %v291 = vpack.c.b16 %v261, %v260
      %v292 = vpack.c.b16 %v263, %v262
      %v293 = vpack.c.b16 %v265, %v264
      %v294 = vpack.c.b16 %v267, %v266
      %v295 = vpack.c.b16 %v269, %v268
      %v296 = vpack.c.b16 %v271, %v270
      %v297 = vpack.c.b16 %v273, %v272
      %v298 = vpack.c.b16 %v275, %v274
      %v299 = vpack.c.b16 %v277, %v276
      %v300 = vpack.c.b16 %v279, %v278
      %v301 = vpack.c.b16 %v281, %v280
      %v302 = vpack.c.b16 %v283, %v282
      %v303 = vpack.c.b16 %v285, %v284
      %v304 = vpack.c.b16 %v287, %v286
      %v305 = vpack.c.b16 %v289, %v288
      %v338 = vunpack.c.l.b16 %v206
      %v339 = vunpack.c.l.b16 %v207
      %v340 = vunpack.c.l.b16 %v208
      %v341 = vunpack.c.l.b16 %v209
      %v342 = vunpack.c.l.b16 %v210
      %v343 = vunpack.c.l.b16 %v211
      %v344 = vunpack.c.l.b16 %v212
      %v345 = vunpack.c.l.b16 %v213
      %v346 = vunpack.c.l.b16 %v214
      %v347 = vunpack.c.l.b16 %v215
      %v348 = vunpack.c.l.b16 %v216
      %v349 = vunpack.c.l.b16 %v217
      %v350 = vunpack.c.l.b16 %v218
      %v351 = vunpack.c.l.b16 %v219
      %v352 = vunpack.c.l.b16 %v220
      %v353 = vunpack.c.l.b16 %v221
      %v354 = vpack.c.b16 %v339, %v338
      %v355 = vpack.c.b16 %v341, %v340
      %v356 = vpack.c.b16 %v343, %v342
      %v357 = vpack.c.b16 %v345, %v344
      %v358 = vpack.c.b16 %v347, %v346
      %v359 = vpack.c.b16 %v349, %v348
      %v360 = vpack.c.b16 %v351, %v350
      %v361 = vpack.c.b16 %v353, %v352
      %370 = vmatpush.bf16.msra.mxu0 %v361
      %371 = vmatpush.bf16.msra.mxu0 %v360
      %372 = vmatpush.bf16.msra.mxu0 %v359
      %373 = vmatpush.bf16.msra.mxu0 %v358
      %374 = vmatpush.bf16.msra.mxu0 %v357
      %375 = vmatpush.bf16.msra.mxu0 %v356
      %376 = vmatpush.bf16.msra.mxu0 %v355
      %377 = vmatpush.bf16.msra.mxu0 %v354
      %378 = vmatmul.bf16.gmra.mxu0 %v290
      %v379 = vpop.f32.mrf.mxu0
      %v380 = vadd.f32 %v224, %v379
      %v381 = vpop.f32.mrf.mxu0
      %v382 = vadd.f32 %v224, %v381
      %383 = vmatmul.bf16.gmra.mxu0 %v291
      %v384 = vpop.f32.mrf.mxu0
      %v385 = vadd.f32 %v224, %v384
      %v386 = vpop.f32.mrf.mxu0
      %v387 = vadd.f32 %v224, %v386
      %388 = vmatmul.bf16.gmra.mxu0 %v292
      %v389 = vpop.f32.mrf.mxu0
      %v390 = vadd.f32 %v224, %v389
      %v391 = vpop.f32.mrf.mxu0
      %v392 = vadd.f32 %v224, %v391
      %393 = vmatmul.bf16.gmra.mxu0 %v293
      %v394 = vpop.f32.mrf.mxu0
      %v395 = vadd.f32 %v224, %v394
      %v396 = vpop.f32.mrf.mxu0
      %v397 = vadd.f32 %v224, %v396
      %398 = vmatmul.bf16.gmra.mxu0 %v294
      %v399 = vpop.f32.mrf.mxu0
      %v400 = vadd.f32 %v224, %v399
      %v401 = vpop.f32.mrf.mxu0
      %v402 = vadd.f32 %v224, %v401
      %403 = vmatmul.bf16.gmra.mxu0 %v295
      %v404 = vpop.f32.mrf.mxu0
      %v405 = vadd.f32 %v224, %v404
      %v406 = vpop.f32.mrf.mxu0
      %v407 = vadd.f32 %v224, %v406
      %408 = vmatmul.bf16.gmra.mxu0 %v296
      %v409 = vpop.f32.mrf.mxu0
      %v410 = vadd.f32 %v224, %v409
      %v411 = vpop.f32.mrf.mxu0
      %v412 = vadd.f32 %v224, %v411
      %413 = vmatmul.bf16.gmra.mxu0 %v297
      %v414 = vpop.f32.mrf.mxu0
      %v415 = vadd.f32 %v224, %v414
      %v416 = vpop.f32.mrf.mxu0
      %v417 = vadd.f32 %v224, %v416
      %418 = vmatmul.bf16.gmra.mxu0 %v298
      %v419 = vpop.f32.mrf.mxu0
      %v420 = vadd.f32 %v224, %v419
      %v421 = vpop.f32.mrf.mxu0
      %v422 = vadd.f32 %v224, %v421
      %423 = vmatmul.bf16.gmra.mxu0 %v299
      %v424 = vpop.f32.mrf.mxu0
      %v425 = vadd.f32 %v224, %v424
      %v426 = vpop.f32.mrf.mxu0
      %v427 = vadd.f32 %v224, %v426
      %428 = vmatmul.bf16.gmra.mxu0 %v300
      %v429 = vpop.f32.mrf.mxu0
      %v430 = vadd.f32 %v224, %v429
      %v431 = vpop.f32.mrf.mxu0
      %v432 = vadd.f32 %v224, %v431
      %433 = vmatmul.bf16.gmra.mxu0 %v301
      %v434 = vpop.f32.mrf.mxu0
      %v435 = vadd.f32 %v224, %v434
      %v436 = vpop.f32.mrf.mxu0
      %v437 = vadd.f32 %v224, %v436
      %438 = vmatmul.bf16.gmra.mxu0 %v302
      %v439 = vpop.f32.mrf.mxu0
      %v440 = vadd.f32 %v224, %v439
      %v441 = vpop.f32.mrf.mxu0
      %v442 = vadd.f32 %v224, %v441
      %443 = vmatmul.bf16.gmra.mxu0 %v303
      %v444 = vpop.f32.mrf.mxu0
      %v445 = vadd.f32 %v224, %v444
      %v446 = vpop.f32.mrf.mxu0
      %v447 = vadd.f32 %v224, %v446
      %448 = vmatmul.bf16.gmra.mxu0 %v304
      %v449 = vpop.f32.mrf.mxu0
      %v450 = vadd.f32 %v224, %v449
      %v451 = vpop.f32.mrf.mxu0
      %v452 = vadd.f32 %v224, %v451
      %453 = vmatmul.bf16.gmra.mxu0 %v305
      %v454 = vpop.f32.mrf.mxu0
      %v455 = vadd.f32 %v224, %v454
      %v456 = vpop.f32.mrf.mxu0
      %v457 = vadd.f32 %v224, %v456
      %458 = vdwg.mxu0
      %v459 = vmax.f32 %v380, 0.0
      %v460 = vmax.f32 %v382, 0.0
      %v461 = vmax.f32 %v385, 0.0
      %v462 = vmax.f32 %v387, 0.0
      %v463 = vmax.f32 %v390, 0.0
      %v464 = vmax.f32 %v392, 0.0
      %v465 = vmax.f32 %v395, 0.0
      %v466 = vmax.f32 %v397, 0.0
      %v467 = vmax.f32 %v400, 0.0
      %v468 = vmax.f32 %v402, 0.0
      %v469 = vmax.f32 %v405, 0.0
      %v470 = vmax.f32 %v407, 0.0
      %v471 = vmax.f32 %v410, 0.0
      %v472 = vmax.f32 %v412, 0.0
      %v473 = vmax.f32 %v415, 0.0
      %v474 = vmax.f32 %v417, 0.0
      %v475 = vmax.f32 %v420, 0.0
      %v476 = vmax.f32 %v422, 0.0
      %v477 = vmax.f32 %v425, 0.0
      %v478 = vmax.f32 %v427, 0.0
      %v479 = vmax.f32 %v430, 0.0
      %v480 = vmax.f32 %v432, 0.0
      %v481 = vmax.f32 %v435, 0.0
      %v482 = vmax.f32 %v437, 0.0
      %v483 = vmax.f32 %v440, 0.0
      %v484 = vmax.f32 %v442, 0.0
      %v485 = vmax.f32 %v445, 0.0
      %v486 = vmax.f32 %v447, 0.0
      %v487 = vmax.f32 %v450, 0.0
      %v488 = vmax.f32 %v452, 0.0
      %v489 = vmax.f32 %v455, 0.0
      %v490 = vmax.f32 %v457, 0.0
      %v491 = vpack.c.bf16 %v459, %v459
      %v492 = vpack.c.bf16 %v460, %v460
      %v493 = vpack.c.bf16 %v461, %v461
      %v494 = vpack.c.bf16 %v462, %v462
      %v495 = vpack.c.bf16 %v463, %v463
      %v496 = vpack.c.bf16 %v464, %v464
      %v497 = vpack.c.bf16 %v465, %v465
      %v498 = vpack.c.bf16 %v466, %v466
      %v499 = vpack.c.bf16 %v467, %v467
      %v500 = vpack.c.bf16 %v468, %v468
      %v501 = vpack.c.bf16 %v469, %v469
      %v502 = vpack.c.bf16 %v470, %v470
      %v503 = vpack.c.bf16 %v471, %v471
      %v504 = vpack.c.bf16 %v472, %v472
      %v505 = vpack.c.bf16 %v473, %v473
      %v506 = vpack.c.bf16 %v474, %v474
      %v507 = vpack.c.bf16 %v475, %v475
      %v508 = vpack.c.bf16 %v476, %v476
      %v509 = vpack.c.bf16 %v477, %v477
      %v510 = vpack.c.bf16 %v478, %v478
      %v511 = vpack.c.bf16 %v479, %v479
      %v512 = vpack.c.bf16 %v480, %v480
      %v513 = vpack.c.bf16 %v481, %v481
      %v514 = vpack.c.bf16 %v482, %v482
      %v515 = vpack.c.bf16 %v483, %v483
      %v516 = vpack.c.bf16 %v484, %v484
      %v517 = vpack.c.bf16 %v485, %v485
      %v518 = vpack.c.bf16 %v486, %v486
      %v519 = vpack.c.bf16 %v487, %v487
      %v520 = vpack.c.bf16 %v488, %v488
      %v521 = vpack.c.bf16 %v489, %v489
      %v522 = vpack.c.bf16 %v490, %v490
      %523 = vst [vmem:[%s172] sm:$0xf] %v491
      %524 = vst [vmem:[%s172 + $0x4] sm:$0xf] %v492
      %525 = vst [vmem:[%s172 + $0x8] sm:$0xf] %v493
      %526 = vst [vmem:[%s172 + $0xc] sm:$0xf] %v494
      %527 = vst [vmem:[%s172 + $0x10] sm:$0xf] %v495
      %528 = vst [vmem:[%s172 + $0x14] sm:$0xf] %v496
      %529 = vst [vmem:[%s172 + $0x18] sm:$0xf] %v497
      %530 = vst [vmem:[%s172 + $0x1c] sm:$0xf] %v498
      %531 = vst [vmem:[%s172 + $0x20] sm:$0xf] %v499
      %532 = vst [vmem:[%s172 + $0x24] sm:$0xf] %v500
      %533 = vst [vmem:[%s172 + $0x28] sm:$0xf] %v501
      %534 = vst [vmem:[%s172 + $0x2c] sm:$0xf] %v502
      %535 = vst [vmem:[%s172 + $0x30] sm:$0xf] %v503
      %536 = vst [vmem:[%s172 + $0x34] sm:$0xf] %v504
      %537 = vst [vmem:[%s172 + $0x38] sm:$0xf] %v505
      %538 = vst [vmem:[%s172 + $0x3c] sm:$0xf] %v506
      %539 = vst [vmem:[%s172 + $0x40] sm:$0xf] %v507
      %540 = vst [vmem:[%s172 + $0x44] sm:$0xf] %v508
      %541 = vst [vmem:[%s172 + $0x48] sm:$0xf] %v509
      %542 = vst [vmem:[%s172 + $0x4c] sm:$0xf] %v510
      %543 = vst [vmem:[%s172 + $0x50] sm:$0xf] %v511
      %544 = vst [vmem:[%s172 + $0x54] sm:$0xf] %v512
      %545 = vst [vmem:[%s172 + $0x58] sm:$0xf] %v513
      %546 = vst [vmem:[%s172 + $0x5c] sm:$0xf] %v514
      %547 = vst [vmem:[%s172 + $0x60] sm:$0xf] %v515
      %548 = vst [vmem:[%s172 + $0x64] sm:$0xf] %v516
      %549 = vst [vmem:[%s172 + $0x68] sm:$0xf] %v517
      %550 = vst [vmem:[%s172 + $0x6c] sm:$0xf] %v518
      %551 = vst [vmem:[%s172 + $0x70] sm:$0xf] %v519
      %552 = vst [vmem:[%s172 + $0x74] sm:$0xf] %v520
      %553 = vst [vmem:[%s172 + $0x78] sm:$0xf] %v521
      %554 = vst [vmem:[%s172 + $0x7c] sm:$0xf] %v522
      %s555 = smul.u32 32, %s14
      %p556 = scmp.lt.s32.totalorder %s555, 63
      %s557 = scalar_select %p556, %s555, 63
      %s558 = smul.addr %s557, 4
      %s559 = scalar_lea.vmem %s3, %s558
      // Predicated region
      $region33: #{bottleneck_forward.2} parent=31 // pred_check
        %p560 = pneg %p100
      $region34: #{bottleneck_forward.2} parent=31 // pred_check_branch
        %562 = sbr.rel (%p560) target = $region36
      $region35: #{bottleneck_forward.2} parent=31 // pred_region
        %s563 = smul.u32 32, %s14
      $region36: #{bottleneck_forward.2} parent=31 // pred_fallthru
        _
    $region32: #{bottleneck_forward.2} parent=5 // pred_fallthru
      _
    %p564 = scmp.le.s32.totalorder 2, %s9
    // Predicated region
    $region37: #{bottleneck_forward.2} parent=5 // pred_check
      %p565 = pneg %p564
    $region38: #{bottleneck_forward.2} parent=5 // pred_check_branch
      %567 = sbr.rel (%p565) target = $region40
    $region39: #{bottleneck_forward.2} parent=5 // pred_region
      %s568 = ssub.s32 %s9, 2
      // Predicated region
      $region41: #{bottleneck_forward.2} parent=39 // pred_check
        %p569 = pneg %p106
      $region42: #{bottleneck_forward.2} parent=39 // pred_check_branch
        %571 = sbr.rel (%p569) target = $region44
      $region43: #{bottleneck_forward.2} parent=39 // pred_region
        %s572 = smul.u32 32, %s15
        %p573 = scmp.lt.s32.totalorder %s572, 63
        %s574 = scalar_select %p573, %s572, 63
        %s575 = smul.addr %s574, 4
        %s576 = scalar_lea.vmem %s3, %s575
      $region44: #{bottleneck_forward.2} parent=39 // pred_fallthru
        _
    $region40: #{bottleneck_forward.2} parent=5 // pred_fallthru
      _
  $region6: #{bottleneck_forward.2} parent=0 // loop_footer
    %s13 = sadd.s32 1, %s9
  $region7: #{bottleneck_forward.2} parent=0 // loop_footer_branch
    %8 = sbr.rel target = $region3
  $region8: #{bottleneck_forward.2} parent=0 // loop_exit
    _

// kernel: bottleneck_forward.3
$region0: #{bottleneck_forward.3}
  #allocation0 [shape = 'u32[]', space=smem, size = 0x4, offset = 0x4, fixed_abs, tag = 'smem constant byte address 0x4 - core index']
  #allocation1 [shape = 'u32[72,128]{1,0:T(1,128)}', space=vmem, size = 0x9000, scoped, tag = 'internal scratch']
  %s0 = inlined_call_operand.vmem [shape: bf16[512,128], index: 0, kind: input, shape index: {}]
  %s1 = inlined_call_operand.vmem [shape: bf16[512,128], index: 1, kind: input, shape index: {}]
  %s2 = inlined_call_operand.vmem [shape: bf16[512,128], index: 2, kind: input, shape index: {}]
  %s3 = inlined_call_operand.vmem [shape: bf16[512,128], index: 3, kind: input, shape index: {}]
  %s4 = inlined_call_operand.vmem [shape: bf16[128,128], index: 4, kind: input, shape index: {}]
  %s5 = inlined_call_operand.vmem [shape: bf16[128,128], index: 5, kind: input, shape index: {}]
  %s6 = inlined_call_operand.vmem [shape: bf16[128,128], index: 6, kind: input, shape index: {}]
  %s7 = inlined_call_operand.vmem [shape: bf16[128,128], index: 7, kind: input, shape index: {}]
  %s8 = inlined_call_operand.vmem [shape: bf16[128,128], index: 8, kind: input, shape index: {}]
  %s9 = inlined_call_operand.vmem [shape: bf16[128,128], index: 9, kind: input, shape index: {}]
  %s10 = inlined_call_operand.vmem [shape: bf16[128,128], index: 10, kind: input, shape index: {}]
  %s11 = inlined_call_operand.vmem [shape: bf16[128,128], index: 11, kind: input, shape index: {}]
  %s12 = inlined_call_operand.vmem [shape: bf16[128,128], index: 12, kind: input, shape index: {}]
  %s13 = inlined_call_operand.vmem [shape: f32[1,128], index: 13, kind: input, shape index: {}]
  %s14 = inlined_call_operand.vmem [shape: bf16[128,128], index: 14, kind: input, shape index: {}]
  %s15 = inlined_call_operand.vmem [shape: f32[1,128], index: 15, kind: input, shape index: {}]
  %s16 = inlined_call_operand.vmem [shape: bf16[512,128], index: 16, kind: input, shape index: {}]
  %s17 = inlined_call_operand.vmem [shape: bf16[128,128], index: 17, kind: input, shape index: {}]
  %s18 = inlined_call_operand.vmem [shape: f32[512,512], index: 18, kind: output, shape index: {}]
  %s19 = sld [smem:[#allocation0]]
  $region105: #{bottleneck_forward.3} parent=0
    _
  %s21 = ssub.s32 1, %s19
  %s22 = scalar_select 0, %s21, %s19
  loop: start=0, step=1, limit=4
  $region2: #{bottleneck_forward.3} parent=0 // loop_pre_header
    _
  $region3: #{bottleneck_forward.3} parent=0 // loop_header
    %s24 = sphi 0, %s28
    %p25 = scmp.ge.s32.totalorder %s24, 4
    %s34 = sphi 0, %s36
    %s37 = sphi 0, %s34
    %s38 = sphi 0, %s37
    %s54 = sphi 0, %s38
    %s60 = sphi 0, %s62
    %s63 = sphi 0, %s60
    %s64 = sphi 0, %s63
    %s80 = sphi 0, %s64
    %s86 = sphi 0, %s88
    %s89 = sphi 0, %s86
    %s90 = sphi 0, %s89
    %s106 = sphi 0, %s90
    %s112 = sphi 0, %s114
    %s115 = sphi 0, %s112
    %s116 = sphi 0, %s115
    %s132 = sphi 0, %s116
    %s136 = sphi 0, %s136
    %s138 = sphi 0, %s136
    %s139 = sphi 0, %s138
    %s153 = sphi 0, %s139
    %s157 = sphi 0, %s157
    %s159 = sphi 0, %s157
    %s160 = sphi 0, %s159
    %s174 = sphi 0, %s160
    %s178 = sphi 0, %s178
    %s180 = sphi 0, %s178
    %s181 = sphi 0, %s180
    %s195 = sphi 0, %s181
    %s199 = sphi 0, %s199
    %s201 = sphi 0, %s199
    %s202 = sphi 0, %s201
    %s216 = sphi 0, %s202
    %s220 = sphi 0, %s220
    %s222 = sphi 0, %s220
    %s223 = sphi 0, %s222
    %s237 = sphi 0, %s223
    %s241 = sphi 0, %s241
    %s243 = sphi 0, %s241
    %s244 = sphi 0, %s243
    %s258 = sphi 0, %s244
    %s262 = sphi 0, %s262
    %s264 = sphi 0, %s262
    %s265 = sphi 0, %s264
    %s279 = sphi 0, %s265
    %s283 = sphi 0, %s283
    %s285 = sphi 0, %s283
    %s286 = sphi 0, %s285
    %s300 = sphi 0, %s286
    %s304 = sphi 0, %s304
    %s306 = sphi 0, %s304
    %s307 = sphi 0, %s306
    %s321 = sphi 0, %s307
    %s325 = sphi 0, %s325
    %s327 = sphi 0, %s325
    %s328 = sphi 0, %s327
    %s342 = sphi 0, %s328
    %s346 = sphi 0, %s346
    %s348 = sphi 0, %s346
    %s349 = sphi 0, %s348
    %s363 = sphi 0, %s349
    %s367 = sphi 0, %s367
    %s369 = sphi 0, %s367
    %s370 = sphi 0, %s369
    %s384 = sphi 0, %s370
    %s390 = sphi 0, %s392
    %s393 = sphi 0, %s390
    %s394 = sphi 0, %s393
    %s410 = sphi 0, %s394
    %s414 = sphi 0, %s414
    %s416 = sphi 0, %s414
    %s417 = sphi 0, %s416
    %s431 = sphi 0, %s417
    %s437 = sphi 0, %s439
    %s440 = sphi 0, %s437
    %s441 = sphi 0, %s440
    %s457 = sphi 0, %s441
  $region4: #{bottleneck_forward.3} parent=0 // loop_header_branch
    %27 = sbr.rel (%p25) target = $region8
  $region5: #{bottleneck_forward.3} parent=0 // loop_body
    %s29 = ssub.s32 %s24, 1
    %s30 = ssub.s32 %s24, 2
    %s31 = sadd.s32 %s24, 1
    %s32 = ssub.s32 %s24, %s31
    %p33 = scmp.eq.s32.totalorder %s32, 0
    %s35 = sadd.s32 %s34, 1
    %s36 = scalar_select %p33, %s34, %s35
    %p39 = pneg %p33
    %p40 = scmp.eq.s32.totalorder %s24, 1
    %p41 = por %p39, %p40
    %p42 = scmp.ne.s32.totalorder %s34, %s37
    %p43 = scmp.eq.s32.totalorder %s24, 0
    %p44 = por %p42, %p43
    %p45 = scmp.ne.s32.totalorder %s34, %s37
    %p46 = scmp.eq.s32.totalorder %s29, 1
    %p47 = por %p45, %p46
    %p48 = scmp.ne.s32.totalorder %s37, %s38
    %p49 = scmp.eq.s32.totalorder %s29, 0
    %p50 = por %p48, %p49
    %p51 = scmp.ne.s32.totalorder %s37, %s38
    %p52 = scmp.eq.s32.totalorder %s30, 1
    %p53 = por %p51, %p52
    %p55 = scmp.ne.s32.totalorder %s38, %s54
    %p56 = scmp.eq.s32.totalorder %s30, 0
    %p57 = por %p55, %p56
    %s58 = ssub.s32 %s24, %s31
    %p59 = scmp.eq.s32.totalorder %s58, 0
    %s61 = sadd.s32 %s60, 1
    %s62 = scalar_select %p59, %s60, %s61
    %p65 = pneg %p59
    %p66 = scmp.eq.s32.totalorder %s24, 1
    %p67 = por %p65, %p66
    %p68 = scmp.ne.s32.totalorder %s60, %s63
    %p69 = scmp.eq.s32.totalorder %s24, 0
    %p70 = por %p68, %p69
    %p71 = scmp.ne.s32.totalorder %s60, %s63
    %p72 = scmp.eq.s32.totalorder %s29, 1
    %p73 = por %p71, %p72
    %p74 = scmp.ne.s32.totalorder %s63, %s64
    %p75 = scmp.eq.s32.totalorder %s29, 0
    %p76 = por %p74, %p75
    %p77 = scmp.ne.s32.totalorder %s63, %s64
    %p78 = scmp.eq.s32.totalorder %s30, 1
    %p79 = por %p77, %p78
    %p81 = scmp.ne.s32.totalorder %s64, %s80
    %p82 = scmp.eq.s32.totalorder %s30, 0
    %p83 = por %p81, %p82
    %s84 = ssub.s32 %s24, %s31
    %p85 = scmp.eq.s32.totalorder %s84, 0
    %s87 = sadd.s32 %s86, 1
    %s88 = scalar_select %p85, %s86, %s87
    %p91 = pneg %p85
    %p92 = scmp.eq.s32.totalorder %s24, 1
    %p93 = por %p91, %p92
    %p94 = scmp.ne.s32.totalorder %s86, %s89
    %p95 = scmp.eq.s32.totalorder %s24, 0
    %p96 = por %p94, %p95
    %p97 = scmp.ne.s32.totalorder %s86, %s89
    %p98 = scmp.eq.s32.totalorder %s29, 1
    %p99 = por %p97, %p98
    %p100 = scmp.ne.s32.totalorder %s89, %s90
    %p101 = scmp.eq.s32.totalorder %s29, 0
    %p102 = por %p100, %p101
    %p103 = scmp.ne.s32.totalorder %s89, %s90
    %p104 = scmp.eq.s32.totalorder %s30, 1
    %p105 = por %p103, %p104
    %p107 = scmp.ne.s32.totalorder %s90, %s106
    %p108 = scmp.eq.s32.totalorder %s30, 0
    %p109 = por %p107, %p108
    %s110 = ssub.s32 %s24, %s31
    %p111 = scmp.eq.s32.totalorder %s110, 0
    %s113 = sadd.s32 %s112, 1
    %s114 = scalar_select %p111, %s112, %s113
    %p117 = pneg %p111
    %p118 = scmp.eq.s32.totalorder %s24, 1
    %p119 = por %p117, %p118
    %p120 = scmp.ne.s32.totalorder %s112, %s115
    %p121 = scmp.eq.s32.totalorder %s24, 0
    %p122 = por %p120, %p121
    %p123 = scmp.ne.s32.totalorder %s112, %s115
    %p124 = scmp.eq.s32.totalorder %s29, 1
    %p125 = por %p123, %p124
    %p126 = scmp.ne.s32.totalorder %s115, %s116
    %p127 = scmp.eq.s32.totalorder %s29, 0
    %p128 = por %p126, %p127
    %p129 = scmp.ne.s32.totalorder %s115, %s116
    %p130 = scmp.eq.s32.totalorder %s30, 1
    %p131 = por %p129, %p130
    %p133 = scmp.ne.s32.totalorder %s116, %s132
    %p134 = scmp.eq.s32.totalorder %s30, 0
    %p135 = por %p133, %p134
    %s137 = sadd.s32 %s136, 1
    %p140 = scmp.eq.s32.totalorder %s24, 1
    %p141 = scmp.ne.s32.totalorder %s136, %s138
    %p142 = scmp.eq.s32.totalorder %s24, 0
    %p143 = por %p141, %p142
    %p144 = scmp.ne.s32.totalorder %s136, %s138
    %p145 = scmp.eq.s32.totalorder %s29, 1
    %p146 = por %p144, %p145
    %p147 = scmp.ne.s32.totalorder %s138, %s139
    %p148 = scmp.eq.s32.totalorder %s29, 0
    %p149 = por %p147, %p148
    %p150 = scmp.ne.s32.totalorder %s138, %s139
    %p151 = scmp.eq.s32.totalorder %s30, 1
    %p152 = por %p150, %p151
    %p154 = scmp.ne.s32.totalorder %s139, %s153
    %p155 = scmp.eq.s32.totalorder %s30, 0
    %p156 = por %p154, %p155
    %s158 = sadd.s32 %s157, 1
    %p161 = scmp.eq.s32.totalorder %s24, 1
    %p162 = scmp.ne.s32.totalorder %s157, %s159
    %p163 = scmp.eq.s32.totalorder %s24, 0
    %p164 = por %p162, %p163
    %p165 = scmp.ne.s32.totalorder %s157, %s159
    %p166 = scmp.eq.s32.totalorder %s29, 1
    %p167 = por %p165, %p166
    %p168 = scmp.ne.s32.totalorder %s159, %s160
    %p169 = scmp.eq.s32.totalorder %s29, 0
    %p170 = por %p168, %p169
    %p171 = scmp.ne.s32.totalorder %s159, %s160
    %p172 = scmp.eq.s32.totalorder %s30, 1
    %p173 = por %p171, %p172
    %p175 = scmp.ne.s32.totalorder %s160, %s174
    %p176 = scmp.eq.s32.totalorder %s30, 0
    %p177 = por %p175, %p176
    %s179 = sadd.s32 %s178, 1
    %p182 = scmp.eq.s32.totalorder %s24, 1
    %p183 = scmp.ne.s32.totalorder %s178, %s180
    %p184 = scmp.eq.s32.totalorder %s24, 0
    %p185 = por %p183, %p184
    %p186 = scmp.ne.s32.totalorder %s178, %s180
    %p187 = scmp.eq.s32.totalorder %s29, 1
    %p188 = por %p186, %p187
    %p189 = scmp.ne.s32.totalorder %s180, %s181
    %p190 = scmp.eq.s32.totalorder %s29, 0
    %p191 = por %p189, %p190
    %p192 = scmp.ne.s32.totalorder %s180, %s181
    %p193 = scmp.eq.s32.totalorder %s30, 1
    %p194 = por %p192, %p193
    %p196 = scmp.ne.s32.totalorder %s181, %s195
    %p197 = scmp.eq.s32.totalorder %s30, 0
    %p198 = por %p196, %p197
    %s200 = sadd.s32 %s199, 1
    %p203 = scmp.eq.s32.totalorder %s24, 1
    %p204 = scmp.ne.s32.totalorder %s199, %s201
    %p205 = scmp.eq.s32.totalorder %s24, 0
    %p206 = por %p204, %p205
    %p207 = scmp.ne.s32.totalorder %s199, %s201
    %p208 = scmp.eq.s32.totalorder %s29, 1
    %p209 = por %p207, %p208
    %p210 = scmp.ne.s32.totalorder %s201, %s202
    %p211 = scmp.eq.s32.totalorder %s29, 0
    %p212 = por %p210, %p211
    %p213 = scmp.ne.s32.totalorder %s201, %s202
    %p214 = scmp.eq.s32.totalorder %s30, 1
    %p215 = por %p213, %p214
    %p217 = scmp.ne.s32.totalorder %s202, %s216
    %p218 = scmp.eq.s32.totalorder %s30, 0
    %p219 = por %p217, %p218
    %s221 = sadd.s32 %s220, 1
    %p224 = scmp.eq.s32.totalorder %s24, 1
    %p225 = scmp.ne.s32.totalorder %s220, %s222
    %p226 = scmp.eq.s32.totalorder %s24, 0
    %p227 = por %p225, %p226
    %p228 = scmp.ne.s32.totalorder %s220, %s222
    %p229 = scmp.eq.s32.totalorder %s29, 1
    %p230 = por %p228, %p229
    %p231 = scmp.ne.s32.totalorder %s222, %s223
    %p232 = scmp.eq.s32.totalorder %s29, 0
    %p233 = por %p231, %p232
    %p234 = scmp.ne.s32.totalorder %s222, %s223
    %p235 = scmp.eq.s32.totalorder %s30, 1
    %p236 = por %p234, %p235
    %p238 = scmp.ne.s32.totalorder %s223, %s237
    %p239 = scmp.eq.s32.totalorder %s30, 0
    %p240 = por %p238, %p239
    %s242 = sadd.s32 %s241, 1
    %p245 = scmp.eq.s32.totalorder %s24, 1
    %p246 = scmp.ne.s32.totalorder %s241, %s243
    %p247 = scmp.eq.s32.totalorder %s24, 0
    %p248 = por %p246, %p247
    %p249 = scmp.ne.s32.totalorder %s241, %s243
    %p250 = scmp.eq.s32.totalorder %s29, 1
    %p251 = por %p249, %p250
    %p252 = scmp.ne.s32.totalorder %s243, %s244
    %p253 = scmp.eq.s32.totalorder %s29, 0
    %p254 = por %p252, %p253
    %p255 = scmp.ne.s32.totalorder %s243, %s244
    %p256 = scmp.eq.s32.totalorder %s30, 1
    %p257 = por %p255, %p256
    %p259 = scmp.ne.s32.totalorder %s244, %s258
    %p260 = scmp.eq.s32.totalorder %s30, 0
    %p261 = por %p259, %p260
    %s263 = sadd.s32 %s262, 1
    %p266 = scmp.eq.s32.totalorder %s24, 1
    %p267 = scmp.ne.s32.totalorder %s262, %s264
    %p268 = scmp.eq.s32.totalorder %s24, 0
    %p269 = por %p267, %p268
    %p270 = scmp.ne.s32.totalorder %s262, %s264
    %p271 = scmp.eq.s32.totalorder %s29, 1
    %p272 = por %p270, %p271
    %p273 = scmp.ne.s32.totalorder %s264, %s265
    %p274 = scmp.eq.s32.totalorder %s29, 0
    %p275 = por %p273, %p274
    %p276 = scmp.ne.s32.totalorder %s264, %s265
    %p277 = scmp.eq.s32.totalorder %s30, 1
    %p278 = por %p276, %p277
    %p280 = scmp.ne.s32.totalorder %s265, %s279
    %p281 = scmp.eq.s32.totalorder %s30, 0
    %p282 = por %p280, %p281
    %s284 = sadd.s32 %s283, 1
    %p287 = scmp.eq.s32.totalorder %s24, 1
    %p288 = scmp.ne.s32.totalorder %s283, %s285
    %p289 = scmp.eq.s32.totalorder %s24, 0
    %p290 = por %p288, %p289
    %p291 = scmp.ne.s32.totalorder %s283, %s285
    %p292 = scmp.eq.s32.totalorder %s29, 1
    %p293 = por %p291, %p292
    %p294 = scmp.ne.s32.totalorder %s285, %s286
    %p295 = scmp.eq.s32.totalorder %s29, 0
    %p296 = por %p294, %p295
    %p297 = scmp.ne.s32.totalorder %s285, %s286
    %p298 = scmp.eq.s32.totalorder %s30, 1
    %p299 = por %p297, %p298
    %p301 = scmp.ne.s32.totalorder %s286, %s300
    %p302 = scmp.eq.s32.totalorder %s30, 0
    %p303 = por %p301, %p302
    %s305 = sadd.s32 %s304, 1
    %p308 = scmp.eq.s32.totalorder %s24, 1
    %p309 = scmp.ne.s32.totalorder %s304, %s306
    %p310 = scmp.eq.s32.totalorder %s24, 0
    %p311 = por %p309, %p310
    %p312 = scmp.ne.s32.totalorder %s304, %s306
    %p313 = scmp.eq.s32.totalorder %s29, 1
    %p314 = por %p312, %p313
    %p315 = scmp.ne.s32.totalorder %s306, %s307
    %p316 = scmp.eq.s32.totalorder %s29, 0
    %p317 = por %p315, %p316
    %p318 = scmp.ne.s32.totalorder %s306, %s307
    %p319 = scmp.eq.s32.totalorder %s30, 1
    %p320 = por %p318, %p319
    %p322 = scmp.ne.s32.totalorder %s307, %s321
    %p323 = scmp.eq.s32.totalorder %s30, 0
    %p324 = por %p322, %p323
    %s326 = sadd.s32 %s325, 1
    %p329 = scmp.eq.s32.totalorder %s24, 1
    %p330 = scmp.ne.s32.totalorder %s325, %s327
    %p331 = scmp.eq.s32.totalorder %s24, 0
    %p332 = por %p330, %p331
    %p333 = scmp.ne.s32.totalorder %s325, %s327
    %p334 = scmp.eq.s32.totalorder %s29, 1
    %p335 = por %p333, %p334
    %p336 = scmp.ne.s32.totalorder %s327, %s328
    %p337 = scmp.eq.s32.totalorder %s29, 0
    %p338 = por %p336, %p337
    %p339 = scmp.ne.s32.totalorder %s327, %s328
    %p340 = scmp.eq.s32.totalorder %s30, 1
    %p341 = por %p339, %p340
    %p343 = scmp.ne.s32.totalorder %s328, %s342
    %p344 = scmp.eq.s32.totalorder %s30, 0
    %p345 = por %p343, %p344
    %s347 = sadd.s32 %s346, 1
    %p350 = scmp.eq.s32.totalorder %s24, 1
    %p351 = scmp.ne.s32.totalorder %s346, %s348
    %p352 = scmp.eq.s32.totalorder %s24, 0
    %p353 = por %p351, %p352
    %p354 = scmp.ne.s32.totalorder %s346, %s348
    %p355 = scmp.eq.s32.totalorder %s29, 1
    %p356 = por %p354, %p355
    %p357 = scmp.ne.s32.totalorder %s348, %s349
    %p358 = scmp.eq.s32.totalorder %s29, 0
    %p359 = por %p357, %p358
    %p360 = scmp.ne.s32.totalorder %s348, %s349
    %p361 = scmp.eq.s32.totalorder %s30, 1
    %p362 = por %p360, %p361
    %p364 = scmp.ne.s32.totalorder %s349, %s363
    %p365 = scmp.eq.s32.totalorder %s30, 0
    %p366 = por %p364, %p365
    %s368 = sadd.s32 %s367, 1
    %p371 = scmp.eq.s32.totalorder %s24, 1
    %p372 = scmp.ne.s32.totalorder %s367, %s369
    %p373 = scmp.eq.s32.totalorder %s24, 0
    %p374 = por %p372, %p373
    %p375 = scmp.ne.s32.totalorder %s367, %s369
    %p376 = scmp.eq.s32.totalorder %s29, 1
    %p377 = por %p375, %p376
    %p378 = scmp.ne.s32.totalorder %s369, %s370
    %p379 = scmp.eq.s32.totalorder %s29, 0
    %p380 = por %p378, %p379
    %p381 = scmp.ne.s32.totalorder %s369, %s370
    %p382 = scmp.eq.s32.totalorder %s30, 1
    %p383 = por %p381, %p382
    %p385 = scmp.ne.s32.totalorder %s370, %s384
    %p386 = scmp.eq.s32.totalorder %s30, 0
    %p387 = por %p385, %p386
    %s388 = ssub.s32 %s24, %s31
    %p389 = scmp.eq.s32.totalorder %s388, 0
    %s391 = sadd.s32 %s390, 1
    %s392 = scalar_select %p389, %s390, %s391
    %p395 = pneg %p389
    %p396 = scmp.eq.s32.totalorder %s24, 1
    %p397 = por %p395, %p396
    %p398 = scmp.ne.s32.totalorder %s390, %s393
    %p399 = scmp.eq.s32.totalorder %s24, 0
    %p400 = por %p398, %p399
    %p401 = scmp.ne.s32.totalorder %s390, %s393
    %p402 = scmp.eq.s32.totalorder %s29, 1
    %p403 = por %p401, %p402
    %p404 = scmp.ne.s32.totalorder %s393, %s394
    %p405 = scmp.eq.s32.totalorder %s29, 0
    %p406 = por %p404, %p405
    %p407 = scmp.ne.s32.totalorder %s393, %s394
    %p408 = scmp.eq.s32.totalorder %s30, 1
    %p409 = por %p407, %p408
    %p411 = scmp.ne.s32.totalorder %s394, %s410
    %p412 = scmp.eq.s32.totalorder %s30, 0
    %p413 = por %p411, %p412
    %s415 = sadd.s32 %s414, 1
    %p418 = scmp.eq.s32.totalorder %s24, 1
    %p419 = scmp.ne.s32.totalorder %s414, %s416
    %p420 = scmp.eq.s32.totalorder %s24, 0
    %p421 = por %p419, %p420
    %p422 = scmp.ne.s32.totalorder %s414, %s416
    %p423 = scmp.eq.s32.totalorder %s29, 1
    %p424 = por %p422, %p423
    %p425 = scmp.ne.s32.totalorder %s416, %s417
    %p426 = scmp.eq.s32.totalorder %s29, 0
    %p427 = por %p425, %p426
    %p428 = scmp.ne.s32.totalorder %s416, %s417
    %p429 = scmp.eq.s32.totalorder %s30, 1
    %p430 = por %p428, %p429
    %p432 = scmp.ne.s32.totalorder %s417, %s431
    %p433 = scmp.eq.s32.totalorder %s30, 0
    %p434 = por %p432, %p433
    %s435 = ssub.s32 %s24, %s31
    %p436 = scmp.eq.s32.totalorder %s435, 0
    %s438 = sadd.s32 %s437, 1
    %s439 = scalar_select %p436, %s437, %s438
    %p442 = pneg %p436
    %p443 = scmp.eq.s32.totalorder %s24, 1
    %p444 = por %p442, %p443
    %p445 = scmp.ne.s32.totalorder %s437, %s440
    %p446 = scmp.eq.s32.totalorder %s24, 0
    %p447 = por %p445, %p446
    %p448 = scmp.ne.s32.totalorder %s437, %s440
    %p449 = scmp.eq.s32.totalorder %s29, 1
    %p450 = por %p448, %p449
    %p451 = scmp.ne.s32.totalorder %s440, %s441
    %p452 = scmp.eq.s32.totalorder %s29, 0
    %p453 = por %p451, %p452
    %p454 = scmp.ne.s32.totalorder %s440, %s441
    %p455 = scmp.eq.s32.totalorder %s30, 1
    %p456 = por %p454, %p455
    %p458 = scmp.ne.s32.totalorder %s441, %s457
    %p459 = scmp.eq.s32.totalorder %s30, 0
    %p460 = por %p458, %p459
    %p461 = scmp.le.s32.totalorder 1, %s24
    %p462 = scmp.lt.s32.totalorder %s24, 3
    %p463 = pnand %p461, %p462
    %p464 = pneg %p463
    // Predicated region
    $region9: #{bottleneck_forward.3} parent=5 // pred_check
      _
    $region10: #{bottleneck_forward.3} parent=5 // pred_check_branch
      %466 = sbr.rel (%p463) target = $region12
    $region11: #{bottleneck_forward.3} parent=5 // pred_region
      %s467 = ssub.s32 %s24, 1
      // Predicated region
      $region13: #{bottleneck_forward.3} parent=11 // pred_check
        %p468 = pneg %p149
      $region14: #{bottleneck_forward.3} parent=11 // pred_check_branch
        %470 = sbr.rel (%p468) target = $region16
      $region15: #{bottleneck_forward.3} parent=11 // pred_region
        _
      $region16: #{bottleneck_forward.3} parent=11 // pred_fallthru
        _
      // Predicated region
      $region17: #{bottleneck_forward.3} parent=11 // pred_check
        %p471 = pneg %p170
      $region18: #{bottleneck_forward.3} parent=11 // pred_check_branch
        %473 = sbr.rel (%p471) target = $region20
      $region19: #{bottleneck_forward.3} parent=11 // pred_region
        _
      $region20: #{bottleneck_forward.3} parent=11 // pred_fallthru
        _
      // Predicated region
      $region21: #{bottleneck_forward.3} parent=11 // pred_check
        %p474 = pneg %p191
      $region22: #{bottleneck_forward.3} parent=11 // pred_check_branch
        %476 = sbr.rel (%p474) target = $region24
      $region23: #{bottleneck_forward.3} parent=11 // pred_region
        _
      $region24: #{bottleneck_forward.3} parent=11 // pred_fallthru
        _
      // Predicated region
      $region25: #{bottleneck_forward.3} parent=11 // pred_check
        %p477 = pneg %p212
      $region26: #{bottleneck_forward.3} parent=11 // pred_check_branch
        %479 = sbr.rel (%p477) target = $region28
      $region27: #{bottleneck_forward.3} parent=11 // pred_region
        _
      $region28: #{bottleneck_forward.3} parent=11 // pred_fallthru
        _
      // Predicated region
      $region29: #{bottleneck_forward.3} parent=11 // pred_check
        %p480 = pneg %p233
      $region30: #{bottleneck_forward.3} parent=11 // pred_check_branch
        %482 = sbr.rel (%p480) target = $region32
      $region31: #{bottleneck_forward.3} parent=11 // pred_region
        _
      $region32: #{bottleneck_forward.3} parent=11 // pred_fallthru
        _
      // Predicated region
      $region33: #{bottleneck_forward.3} parent=11 // pred_check
        %p483 = pneg %p254
      $region34: #{bottleneck_forward.3} parent=11 // pred_check_branch
        %485 = sbr.rel (%p483) target = $region36
      $region35: #{bottleneck_forward.3} parent=11 // pred_region
        _
      $region36: #{bottleneck_forward.3} parent=11 // pred_fallthru
        _
      // Predicated region
      $region37: #{bottleneck_forward.3} parent=11 // pred_check
        %p486 = pneg %p275
      $region38: #{bottleneck_forward.3} parent=11 // pred_check_branch
        %488 = sbr.rel (%p486) target = $region40
      $region39: #{bottleneck_forward.3} parent=11 // pred_region
        _
      $region40: #{bottleneck_forward.3} parent=11 // pred_fallthru
        _
      // Predicated region
      $region41: #{bottleneck_forward.3} parent=11 // pred_check
        %p489 = pneg %p296
      $region42: #{bottleneck_forward.3} parent=11 // pred_check_branch
        %491 = sbr.rel (%p489) target = $region44
      $region43: #{bottleneck_forward.3} parent=11 // pred_region
        _
      $region44: #{bottleneck_forward.3} parent=11 // pred_fallthru
        _
      // Predicated region
      $region45: #{bottleneck_forward.3} parent=11 // pred_check
        %p492 = pneg %p317
      $region46: #{bottleneck_forward.3} parent=11 // pred_check_branch
        %494 = sbr.rel (%p492) target = $region48
      $region47: #{bottleneck_forward.3} parent=11 // pred_region
        _
      $region48: #{bottleneck_forward.3} parent=11 // pred_fallthru
        _
      // Predicated region
      $region49: #{bottleneck_forward.3} parent=11 // pred_check
        %p495 = pneg %p338
      $region50: #{bottleneck_forward.3} parent=11 // pred_check_branch
        %497 = sbr.rel (%p495) target = $region52
      $region51: #{bottleneck_forward.3} parent=11 // pred_region
        _
      $region52: #{bottleneck_forward.3} parent=11 // pred_fallthru
        _
      // Predicated region
      $region53: #{bottleneck_forward.3} parent=11 // pred_check
        %p498 = pneg %p359
      $region54: #{bottleneck_forward.3} parent=11 // pred_check_branch
        %500 = sbr.rel (%p498) target = $region56
      $region55: #{bottleneck_forward.3} parent=11 // pred_region
        _
      $region56: #{bottleneck_forward.3} parent=11 // pred_fallthru
        _
      // Predicated region
      $region57: #{bottleneck_forward.3} parent=11 // pred_check
        %p501 = pneg %p380
      $region58: #{bottleneck_forward.3} parent=11 // pred_check_branch
        %503 = sbr.rel (%p501) target = $region60
      $region59: #{bottleneck_forward.3} parent=11 // pred_region
        _
      $region60: #{bottleneck_forward.3} parent=11 // pred_fallthru
        _
      // Predicated region
      $region61: #{bottleneck_forward.3} parent=11 // pred_check
        %p504 = pneg %p427
      $region62: #{bottleneck_forward.3} parent=11 // pred_check_branch
        %506 = sbr.rel (%p504) target = $region64
      $region63: #{bottleneck_forward.3} parent=11 // pred_region
        _
      $region64: #{bottleneck_forward.3} parent=11 // pred_fallthru
        _
    $region12: #{bottleneck_forward.3} parent=5 // pred_fallthru
      _
    %p507 = scmp.lt.s32.totalorder %s24, 2
    // Predicated region
    $region65: #{bottleneck_forward.3} parent=5 // pred_check
      %p508 = pneg %p507
    $region66: #{bottleneck_forward.3} parent=5 // pred_check_branch
      %510 = sbr.rel (%p508) target = $region68
    $region67: #{bottleneck_forward.3} parent=5 // pred_region
      // Predicated region
      $region69: #{bottleneck_forward.3} parent=67 // pred_check
        %p511 = pneg %p44
      $region70: #{bottleneck_forward.3} parent=67 // pred_check_branch
        %513 = sbr.rel (%p511) target = $region72
      $region71: #{bottleneck_forward.3} parent=67 // pred_region
        %s514 = smul.u32 32, %s24
        %p515 = scmp.lt.s32.totalorder %s514, 63
        %s516 = scalar_select %p515, %s514, 63
        %s517 = smul.addr %s516, 4
        %s518 = scalar_lea.vmem %s0, %s517
        %s519 = smul.u32 32, %s24
      $region72: #{bottleneck_forward.3} parent=67 // pred_fallthru
        _
      // Predicated region
      $region73: #{bottleneck_forward.3} parent=67 // pred_check
        %p520 = pneg %p70
      $region74: #{bottleneck_forward.3} parent=67 // pred_check_branch
        %522 = sbr.rel (%p520) target = $region76
      $region75: #{bottleneck_forward.3} parent=67 // pred_region
        %s523 = smul.u32 32, %s24
        %p524 = scmp.lt.s32.totalorder %s523, 63
        %s525 = scalar_select %p524, %s523, 63
        %s526 = smul.addr %s525, 4
        %s527 = scalar_lea.vmem %s1, %s526
        %s528 = smul.u32 32, %s24
      $region76: #{bottleneck_forward.3} parent=67 // pred_fallthru
        _
      // Predicated region
      $region77: #{bottleneck_forward.3} parent=67 // pred_check
        %p529 = pneg %p96
      $region78: #{bottleneck_forward.3} parent=67 // pred_check_branch
        %531 = sbr.rel (%p529) target = $region80
      $region79: #{bottleneck_forward.3} parent=67 // pred_region
        %s532 = smul.u32 32, %s24
        %p533 = scmp.lt.s32.totalorder %s532, 63
        %s534 = scalar_select %p533, %s532, 63
        %s535 = smul.addr %s534, 4
        %s536 = scalar_lea.vmem %s2, %s535
        %s537 = smul.u32 32, %s24
      $region80: #{bottleneck_forward.3} parent=67 // pred_fallthru
        _
      // Predicated region
      $region81: #{bottleneck_forward.3} parent=67 // pred_check
        %p538 = pneg %p122
      $region82: #{bottleneck_forward.3} parent=67 // pred_check_branch
        %540 = sbr.rel (%p538) target = $region84
      $region83: #{bottleneck_forward.3} parent=67 // pred_region
        %s541 = smul.u32 32, %s24
        %p542 = scmp.lt.s32.totalorder %s541, 63
        %s543 = scalar_select %p542, %s541, 63
        %s544 = smul.addr %s543, 4
        %s545 = scalar_lea.vmem %s3, %s544
        %s546 = smul.u32 32, %s24
      $region84: #{bottleneck_forward.3} parent=67 // pred_fallthru
        _
      // Predicated region
      $region85: #{bottleneck_forward.3} parent=67 // pred_check
        %p547 = pneg %p400
      $region86: #{bottleneck_forward.3} parent=67 // pred_check_branch
        %549 = sbr.rel (%p547) target = $region88
      $region87: #{bottleneck_forward.3} parent=67 // pred_region
        %s550 = smul.u32 32, %s24
        %p551 = scmp.lt.s32.totalorder %s550, 63
        %s552 = scalar_select %p551, %s550, 63
        %s553 = smul.addr %s552, 4
        %s554 = scalar_lea.vmem %s16, %s553
        %s555 = smul.u32 32, %s24
      $region88: #{bottleneck_forward.3} parent=67 // pred_fallthru
        _
    $region68: #{bottleneck_forward.3} parent=5 // pred_fallthru
      _
    %p556 = scmp.le.s32.totalorder 1, %s24
    %p557 = scmp.lt.s32.totalorder %s24, 3
    %p558 = pnand %p556, %p557
    %p559 = pneg %p558
    // Predicated region
    $region89: #{bottleneck_forward.3} parent=5 // pred_check
      _
    $region90: #{bottleneck_forward.3} parent=5 // pred_check_branch
      %561 = sbr.rel (%p558) target = $region92
    $region91: #{bottleneck_forward.3} parent=5 // pred_region
      %s562 = ssub.s32 %s24, 1
      %s563 = smul.u32 32, %s29
      %p564 = scmp.lt.s32.totalorder %s563, 63
      %s565 = scalar_select %p564, %s563, 63
      %s566 = smul.addr %s565, 4
      %s567 = scalar_lea.vmem %s0, %s566
      %p568 = pneg %p50
      %p569 = pneg %p47
      %s570 = smul.u32 32, %s29
      %p571 = scmp.lt.s32.totalorder %s570, 63
      %s572 = scalar_select %p571, %s570, 63
      %s573 = smul.addr %s572, 4
      %s574 = scalar_lea.vmem %s1, %s573
      %p575 = pneg %p76
      %p576 = pneg %p73
      %s577 = smul.u32 32, %s29
      %p578 = scmp.lt.s32.totalorder %s577, 63
      %s579 = scalar_select %p578, %s577, 63
      %s580 = smul.addr %s579, 4
      %s581 = scalar_lea.vmem %s2, %s580
      %p582 = pneg %p102
      %p583 = pneg %p99
      %s584 = smul.u32 32, %s29
      %p585 = scmp.lt.s32.totalorder %s584, 63
      %s586 = scalar_select %p585, %s584, 63
      %s587 = smul.addr %s586, 4
      %s588 = scalar_lea.vmem %s3, %s587
      %p589 = pneg %p128
      %p590 = pneg %p125
      %p591 = pneg %p149
      %p592 = pneg %p146
      %p593 = pneg %p170
      %p594 = pneg %p167
      %p595 = pneg %p191
      %p596 = pneg %p188
      %p597 = pneg %p212
      %p598 = pneg %p209
      %p599 = pneg %p233
      %p600 = pneg %p230
      %p601 = pneg %p254
      %p602 = pneg %p251
      %p603 = pneg %p275
      %p604 = pneg %p272
      %p605 = pneg %p296
      %p606 = pneg %p293
      %p607 = pneg %p317
      %p608 = pneg %p314
      %p609 = pneg %p338
      %p610 = pneg %p335
      %p611 = pneg %p359
      %p612 = pneg %p356
      %p613 = pneg %p380
      %p614 = pneg %p377
      %s615 = smul.u32 32, %s29
      %p616 = scmp.lt.s32.totalorder %s615, 63
      %s617 = scalar_select %p616, %s615, 63
      %s618 = smul.addr %s617, 4
      %s619 = scalar_lea.vmem %s16, %s618
      %p620 = pneg %p406
      %p621 = pneg %p403
      %p622 = pneg %p427
      %p623 = pneg %p424
      %p624 = pneg %p453
      %p625 = pneg %p450
      %s626 = smul.u32 32, %s29
      %p627 = scmp.lt.s32.totalorder %s626, 63
      %s628 = scalar_select %p627, %s626, 63
      %s629 = smul.addr %s628, 4
      %s630 = smul.addr %s629, 8
      %s631 = scalar_lea.vmem %s18, %s630
      %s632 = smul.u32 32, %s29
      %p633 = scmp.lt.s32.totalorder %s632, 63
      %s634 = scalar_select %p633, %s632, 63
      %s635 = smul.addr %s634, 4
      %s636 = scalar_lea.vmem %s0, %s635
      %s637 = smul.u32 32, %s29
      %s638 = smul.u32 32, %s29
      %p639 = scmp.lt.s32.totalorder %s638, 63
      %s640 = scalar_select %p639, %s638, 63
      %s641 = smul.addr %s640, 4
      %s642 = scalar_lea.vmem %s1, %s641
      %s643 = smul.u32 32, %s29
      %s644 = smul.u32 32, %s29
      %p645 = scmp.lt.s32.totalorder %s644, 63
      %s646 = scalar_select %p645, %s644, 63
      %s647 = smul.addr %s646, 4
      %s648 = scalar_lea.vmem %s2, %s647
      %s649 = smul.u32 32, %s29
      %s650 = smul.u32 32, %s29
      %p651 = scmp.lt.s32.totalorder %s650, 63
      %s652 = scalar_select %p651, %s650, 63
      %s653 = smul.addr %s652, 4
      %s654 = scalar_lea.vmem %s3, %s653
      %s655 = smul.u32 32, %s29
      %s656 = smul.u32 32, %s29
      %p657 = scmp.lt.s32.totalorder %s656, 63
      %s658 = scalar_select %p657, %s656, 63
      %s659 = smul.addr %s658, 4
      %s660 = scalar_lea.vmem %s16, %s659
      %s661 = smul.u32 32, %s29
      %s662 = smul.u32 32, %s29
      %p663 = scmp.lt.s32.totalorder %s662, 63
      %s664 = scalar_select %p663, %s662, 63
      %s665 = smul.addr %s664, 4
      %s666 = smul.addr %s665, 8
      %s667 = scalar_lea.vmem %s18, %s666
      %s668 = smul.u32 32, %s29
      %v669 = vld [vmem:[%s636] sm:$0xf]
      %v670 = vld [vmem:[%s636 + $0x4] sm:$0xf]
      %v671 = vld [vmem:[%s636 + $0x8] sm:$0xf]
      %v672 = vld [vmem:[%s636 + $0xc] sm:$0xf]
      %v673 = vld [vmem:[%s636 + $0x10] sm:$0xf]
      %v674 = vld [vmem:[%s636 + $0x14] sm:$0xf]
      %v675 = vld [vmem:[%s636 + $0x18] sm:$0xf]
      %v676 = vld [vmem:[%s636 + $0x1c] sm:$0xf]
      %v677 = vld [vmem:[%s636 + $0x20] sm:$0xf]
      %v678 = vld [vmem:[%s636 + $0x24] sm:$0xf]
      %v679 = vld [vmem:[%s636 + $0x28] sm:$0xf]
      %v680 = vld [vmem:[%s636 + $0x2c] sm:$0xf]
      %v681 = vld [vmem:[%s636 + $0x30] sm:$0xf]
      %v682 = vld [vmem:[%s636 + $0x34] sm:$0xf]
      %v683 = vld [vmem:[%s636 + $0x38] sm:$0xf]
      %v684 = vld [vmem:[%s636 + $0x3c] sm:$0xf]
      %v685 = vld [vmem:[%s636 + $0x40] sm:$0xf]
      %v686 = vld [vmem:[%s636 + $0x44] sm:$0xf]
      %v687 = vld [vmem:[%s636 + $0x48] sm:$0xf]
      %v688 = vld [vmem:[%s636 + $0x4c] sm:$0xf]
      %v689 = vld [vmem:[%s636 + $0x50] sm:$0xf]
      %v690 = vld [vmem:[%s636 + $0x54] sm:$0xf]
      %v691 = vld [vmem:[%s636 + $0x58] sm:$0xf]
      %v692 = vld [vmem:[%s636 + $0x5c] sm:$0xf]
      %v693 = vld [vmem:[%s636 + $0x60] sm:$0xf]
      %v694 = vld [vmem:[%s636 + $0x64] sm:$0xf]
      %v695 = vld [vmem:[%s636 + $0x68] sm:$0xf]
      %v696 = vld [vmem:[%s636 + $0x6c] sm:$0xf]
      %v697 = vld [vmem:[%s636 + $0x70] sm:$0xf]
      %v698 = vld [vmem:[%s636 + $0x74] sm:$0xf]
      %v699 = vld [vmem:[%s636 + $0x78] sm:$0xf]
      %v700 = vld [vmem:[%s636 + $0x7c] sm:$0xf]
      %v701 = vld [vmem:[%s4] sm:$0xf]
      %v702 = vld [vmem:[%s4 + $0x4] sm:$0xf]
      %v703 = vld [vmem:[%s4 + $0x8] sm:$0xf]
      %v704 = vld [vmem:[%s4 + $0xc] sm:$0xf]
      %v705 = vld [vmem:[%s4 + $0x10] sm:$0xf]
      %v706 = vld [vmem:[%s4 + $0x14] sm:$0xf]
      %v707 = vld [vmem:[%s4 + $0x18] sm:$0xf]
      %v708 = vld [vmem:[%s4 + $0x1c] sm:$0xf]
      %v709 = vld [vmem:[%s4 + $0x20] sm:$0xf]
      %v710 = vld [vmem:[%s4 + $0x24] sm:$0xf]
      %v711 = vld [vmem:[%s4 + $0x28] sm:$0xf]
      %v712 = vld [vmem:[%s4 + $0x2c] sm:$0xf]
      %v713 = vld [vmem:[%s4 + $0x30] sm:$0xf]
      %v714 = vld [vmem:[%s4 + $0x34] sm:$0xf]
      %v715 = vld [vmem:[%s4 + $0x38] sm:$0xf]
      %v716 = vld [vmem:[%s4 + $0x3c] sm:$0xf]
      %v717 = vld [vmem:[%s13] sm:$0x1]
      %v719 = vperm.slane %v717, 0
      %v753 = vunpack.c.l.b16 %v669
      %v754 = vunpack.c.l.b16 %v670
      %v755 = vunpack.c.l.b16 %v671
      %v756 = vunpack.c.l.b16 %v672
      %v757 = vunpack.c.l.b16 %v673
      %v758 = vunpack.c.l.b16 %v674
      %v759 = vunpack.c.l.b16 %v675
      %v760 = vunpack.c.l.b16 %v676
      %v761 = vunpack.c.l.b16 %v677
      %v762 = vunpack.c.l.b16 %v678
      %v763 = vunpack.c.l.b16 %v679
      %v764 = vunpack.c.l.b16 %v680
      %v765 = vunpack.c.l.b16 %v681
      %v766 = vunpack.c.l.b16 %v682
      %v767 = vunpack.c.l.b16 %v683
      %v768 = vunpack.c.l.b16 %v684
      %v769 = vunpack.c.l.b16 %v685
      %v770 = vunpack.c.l.b16 %v686
      %v771 = vunpack.c.l.b16 %v687
      %v772 = vunpack.c.l.b16 %v688
      %v773 = vunpack.c.l.b16 %v689
      %v774 = vunpack.c.l.b16 %v690
      %v775 = vunpack.c.l.b16 %v691
      %v776 = vunpack.c.l.b16 %v692
      %v777 = vunpack.c.l.b16 %v693
      %v778 = vunpack.c.l.b16 %v694
      %v779 = vunpack.c.l.b16 %v695
      %v780 = vunpack.c.l.b16 %v696
      %v781 = vunpack.c.l.b16 %v697
      %v782 = vunpack.c.l.b16 %v698
      %v783 = vunpack.c.l.b16 %v699
      %v784 = vunpack.c.l.b16 %v700
      %v785 = vpack.c.b16 %v754, %v753
      %v786 = vpack.c.b16 %v756, %v755
      %v787 = vpack.c.b16 %v758, %v757
      %v788 = vpack.c.b16 %v760, %v759
      %v789 = vpack.c.b16 %v762, %v761
      %v790 = vpack.c.b16 %v764, %v763
      %v791 = vpack.c.b16 %v766, %v765
      %v792 = vpack.c.b16 %v768, %v767
      %v793 = vpack.c.b16 %v770, %v769
      %v794 = vpack.c.b16 %v772, %v771
      %v795 = vpack.c.b16 %v774, %v773
      %v796 = vpack.c.b16 %v776, %v775
      %v797 = vpack.c.b16 %v778, %v777
      %v798 = vpack.c.b16 %v780, %v779
      %v799 = vpack.c.b16 %v782, %v781
      %v800 = vpack.c.b16 %v784, %v783
      %v833 = vunpack.c.l.b16 %v701
      %v834 = vunpack.c.l.b16 %v702
      %v835 = vunpack.c.l.b16 %v703
      %v836 = vunpack.c.l.b16 %v704
      %v837 = vunpack.c.l.b16 %v705
      %v838 = vunpack.c.l.b16 %v706
      %v839 = vunpack.c.l.b16 %v707
      %v840 = vunpack.c.l.b16 %v708
      %v841 = vunpack.c.l.b16 %v709
      %v842 = vunpack.c.l.b16 %v710
      %v843 = vunpack.c.l.b16 %v711
      %v844 = vunpack.c.l.b16 %v712
      %v845 = vunpack.c.l.b16 %v713
      %v846 = vunpack.c.l.b16 %v714
      %v847 = vunpack.c.l.b16 %v715
      %v848 = vunpack.c.l.b16 %v716
      %v849 = vpack.c.b16 %v834, %v833
      %v850 = vpack.c.b16 %v836, %v835
      %v851 = vpack.c.b16 %v838, %v837
      %v852 = vpack.c.b16 %v840, %v839
      %v853 = vpack.c.b16 %v842, %v841
      %v854 = vpack.c.b16 %v844, %v843
      %v855 = vpack.c.b16 %v846, %v845
      %v856 = vpack.c.b16 %v848, %v847
      %865 = vmatpush.bf16.msra.mxu0 %v856
      %866 = vmatpush.bf16.msra.mxu0 %v855
      %867 = vmatpush.bf16.msra.mxu0 %v854
      %868 = vmatpush.bf16.msra.mxu0 %v853
      %869 = vmatpush.bf16.msra.mxu0 %v852
      %870 = vmatpush.bf16.msra.mxu0 %v851
      %871 = vmatpush.bf16.msra.mxu0 %v850
      %872 = vmatpush.bf16.msra.mxu0 %v849
      %873 = vmatmul.bf16.gmra.mxu0 %v785
      %v874 = vpop.f32.mrf.mxu0
      %v875 = vadd.f32 %v719, %v874
      %v876 = vpop.f32.mrf.mxu0
      %v877 = vadd.f32 %v719, %v876
      %878 = vmatmul.bf16.gmra.mxu0 %v786
      %v879 = vpop.f32.mrf.mxu0
      %v880 = vadd.f32 %v719, %v879
      %v881 = vpop.f32.mrf.mxu0
      %v882 = vadd.f32 %v719, %v881
      %883 = vmatmul.bf16.gmra.mxu0 %v787
      %v884 = vpop.f32.mrf.mxu0
      %v885 = vadd.f32 %v719, %v884
      %v886 = vpop.f32.mrf.mxu0
      %v887 = vadd.f32 %v719, %v886
      %888 = vmatmul.bf16.gmra.mxu0 %v788
      %v889 = vpop.f32.mrf.mxu0
      %v890 = vadd.f32 %v719, %v889
      %v891 = vpop.f32.mrf.mxu0
      %v892 = vadd.f32 %v719, %v891
      %893 = vmatmul.bf16.gmra.mxu0 %v789
      %v894 = vpop.f32.mrf.mxu0
      %v895 = vadd.f32 %v719, %v894
      %v896 = vpop.f32.mrf.mxu0
      %v897 = vadd.f32 %v719, %v896
      %898 = vmatmul.bf16.gmra.mxu0 %v790
      %v899 = vpop.f32.mrf.mxu0
      %v900 = vadd.f32 %v719, %v899
      %v901 = vpop.f32.mrf.mxu0
      %v902 = vadd.f32 %v719, %v901
      %903 = vmatmul.bf16.gmra.mxu0 %v791
      %v904 = vpop.f32.mrf.mxu0
      %v905 = vadd.f32 %v719, %v904
      %v906 = vpop.f32.mrf.mxu0
      %v907 = vadd.f32 %v719, %v906
      %908 = vmatmul.bf16.gmra.mxu0 %v792
      %v909 = vpop.f32.mrf.mxu0
      %v910 = vadd.f32 %v719, %v909
      %v911 = vpop.f32.mrf.mxu0
      %v912 = vadd.f32 %v719, %v911
      %913 = vmatmul.bf16.gmra.mxu0 %v793
      %v914 = vpop.f32.mrf.mxu0
      %v915 = vadd.f32 %v719, %v914
      %v916 = vpop.f32.mrf.mxu0
      %v917 = vadd.f32 %v719, %v916
      %918 = vmatmul.bf16.gmra.mxu0 %v794
      %v919 = vpop.f32.mrf.mxu0
      %v920 = vadd.f32 %v719, %v919
      %v921 = vpop.f32.mrf.mxu0
      %v922 = vadd.f32 %v719, %v921
      %923 = vmatmul.bf16.gmra.mxu0 %v795
      %v924 = vpop.f32.mrf.mxu0
      %v925 = vadd.f32 %v719, %v924
      %v926 = vpop.f32.mrf.mxu0
      %v927 = vadd.f32 %v719, %v926
      %928 = vmatmul.bf16.gmra.mxu0 %v796
      %v929 = vpop.f32.mrf.mxu0
      %v930 = vadd.f32 %v719, %v929
      %v931 = vpop.f32.mrf.mxu0
      %v932 = vadd.f32 %v719, %v931
      %933 = vmatmul.bf16.gmra.mxu0 %v797
      %v934 = vpop.f32.mrf.mxu0
      %v935 = vadd.f32 %v719, %v934
      %v936 = vpop.f32.mrf.mxu0
      %v937 = vadd.f32 %v719, %v936
      %938 = vmatmul.bf16.gmra.mxu0 %v798
      %v939 = vpop.f32.mrf.mxu0
      %v940 = vadd.f32 %v719, %v939
      %v941 = vpop.f32.mrf.mxu0
      %v942 = vadd.f32 %v719, %v941
      %943 = vmatmul.bf16.gmra.mxu0 %v799
      %v944 = vpop.f32.mrf.mxu0
      %v945 = vadd.f32 %v719, %v944
      %v946 = vpop.f32.mrf.mxu0
      %v947 = vadd.f32 %v719, %v946
      %948 = vmatmul.bf16.gmra.mxu0 %v800
      %v949 = vpop.f32.mrf.mxu0
      %v950 = vadd.f32 %v719, %v949
      %v951 = vpop.f32.mrf.mxu0
      %v952 = vadd.f32 %v719, %v951
      %953 = vdwg.mxu0
      %v954 = vmax.f32 %v875, 0.0
      %v955 = vmax.f32 %v877, 0.0
      %v956 = vmax.f32 %v880, 0.0
      %v957 = vmax.f32 %v882, 0.0
      %v958 = vmax.f32 %v885, 0.0
      %v959 = vmax.f32 %v887, 0.0
      %v960 = vmax.f32 %v890, 0.0
      %v961 = vmax.f32 %v892, 0.0
      %v962 = vmax.f32 %v895, 0.0
      %v963 = vmax.f32 %v897, 0.0
      %v964 = vmax.f32 %v900, 0.0
      %v965 = vmax.f32 %v902, 0.0
      %v966 = vmax.f32 %v905, 0.0
      %v967 = vmax.f32 %v907, 0.0
      %v968 = vmax.f32 %v910, 0.0
      %v969 = vmax.f32 %v912, 0.0
      %v970 = vmax.f32 %v915, 0.0
      %v971 = vmax.f32 %v917, 0.0
      %v972 = vmax.f32 %v920, 0.0
      %v973 = vmax.f32 %v922, 0.0
      %v974 = vmax.f32 %v925, 0.0
      %v975 = vmax.f32 %v927, 0.0
      %v976 = vmax.f32 %v930, 0.0
      %v977 = vmax.f32 %v932, 0.0
      %v978 = vmax.f32 %v935, 0.0
      %v979 = vmax.f32 %v937, 0.0
      %v980 = vmax.f32 %v940, 0.0
      %v981 = vmax.f32 %v942, 0.0
      %v982 = vmax.f32 %v945, 0.0
      %v983 = vmax.f32 %v947, 0.0
      %v984 = vmax.f32 %v950, 0.0
      %v985 = vmax.f32 %v952, 0.0
      %v986 = vpack.c.bf16 %v955, %v954
      %v987 = vpack.c.bf16 %v957, %v956
      %v988 = vpack.c.bf16 %v959, %v958
      %v989 = vpack.c.bf16 %v961, %v960
      %v990 = vpack.c.bf16 %v963, %v962
      %v991 = vpack.c.bf16 %v965, %v964
      %v992 = vpack.c.bf16 %v967, %v966
      %v993 = vpack.c.bf16 %v969, %v968
      %v994 = vpack.c.bf16 %v971, %v970
      %v995 = vpack.c.bf16 %v973, %v972
      %v996 = vpack.c.bf16 %v975, %v974
      %v997 = vpack.c.bf16 %v977, %v976
      %v998 = vpack.c.bf16 %v979, %v978
      %v999 = vpack.c.bf16 %v981, %v980
      %v1000 = vpack.c.bf16 %v983, %v982
      %v1001 = vpack.c.bf16 %v985, %v984
      %v1002 = vld [vmem:[%s14] sm:$0xf]
      %v1003 = vld [vmem:[%s14 + $0x4] sm:$0xf]
      %v1004 = vld [vmem:[%s14 + $0x8] sm:$0xf]
      %v1005 = vld [vmem:[%s14 + $0xc] sm:$0xf]
      %v1006 = vld [vmem:[%s14 + $0x10] sm:$0xf]
      %v1007 = vld [vmem:[%s14 + $0x14] sm:$0xf]
      %v1008 = vld [vmem:[%s14 + $0x18] sm:$0xf]
      %v1009 = vld [vmem:[%s14 + $0x1c] sm:$0xf]
      %v1010 = vld [vmem:[%s14 + $0x20] sm:$0xf]
      %v1011 = vld [vmem:[%s14 + $0x24] sm:$0xf]
      %v1012 = vld [vmem:[%s14 + $0x28] sm:$0xf]
      %v1013 = vld [vmem:[%s14 + $0x2c] sm:$0xf]
      %v1014 = vld [vmem:[%s14 + $0x30] sm:$0xf]
      %v1015 = vld [vmem:[%s14 + $0x34] sm:$0xf]
      %v1016 = vld [vmem:[%s14 + $0x38] sm:$0xf]
      %v1017 = vld [vmem:[%s14 + $0x3c] sm:$0xf]
      %v1018 = vld [vmem:[%s15] sm:$0x1]
      %v1020 = vperm.slane %v1018, 0
      %v1038 = vunpack.c.l.b16 %v1002
      %v1039 = vunpack.c.l.b16 %v1003
      %v1040 = vunpack.c.l.b16 %v1004
      %v1041 = vunpack.c.l.b16 %v1005
      %v1042 = vunpack.c.l.b16 %v1006
      %v1043 = vunpack.c.l.b16 %v1007
      %v1044 = vunpack.c.l.b16 %v1008
      %v1045 = vunpack.c.l.b16 %v1009
      %v1046 = vunpack.c.l.b16 %v1010
      %v1047 = vunpack.c.l.b16 %v1011
      %v1048 = vunpack.c.l.b16 %v1012
      %v1049 = vunpack.c.l.b16 %v1013
      %v1050 = vunpack.c.l.b16 %v1014
      %v1051 = vunpack.c.l.b16 %v1015
      %v1052 = vunpack.c.l.b16 %v1016
      %v1053 = vunpack.c.l.b16 %v1017
      %v1054 = vpack.c.b16 %v1039, %v1038
      %v1055 = vpack.c.b16 %v1041, %v1040
      %v1056 = vpack.c.b16 %v1043, %v1042
      %v1057 = vpack.c.b16 %v1045, %v1044
      %v1058 = vpack.c.b16 %v1047, %v1046
      %v1059 = vpack.c.b16 %v1049, %v1048
      %v1060 = vpack.c.b16 %v1051, %v1050
      %v1061 = vpack.c.b16 %v1053, %v1052
      %1070 = vmatpush.bf16.msra.mxu0 %v1061
      %1071 = vmatpush.bf16.msra.mxu0 %v1060
      %1072 = vmatpush.bf16.msra.mxu0 %v1059
      %1073 = vmatpush.bf16.msra.mxu0 %v1058
      %1074 = vmatpush.bf16.msra.mxu0 %v1057
      %1075 = vmatpush.bf16.msra.mxu0 %v1056
      %1076 = vmatpush.bf16.msra.mxu0 %v1055
      %1077 = vmatpush.bf16.msra.mxu0 %v1054
      %1078 = vmatmul.bf16.gmra.mxu0 %v986
      %v1079 = vpop.f32.mrf.mxu0
      %v1080 = vadd.f32 %v1020, %v1079
      %v1081 = vpop.f32.mrf.mxu0
      %v1082 = vadd.f32 %v1020, %v1081
      %1083 = vmatmul.bf16.gmra.mxu0 %v987
      %v1084 = vpop.f32.mrf.mxu0
      %v1085 = vadd.f32 %v1020, %v1084
      %v1086 = vpop.f32.mrf.mxu0
      %v1087 = vadd.f32 %v1020, %v1086
      %1088 = vmatmul.bf16.gmra.mxu0 %v988
      %v1089 = vpop.f32.mrf.mxu0
      %v1090 = vadd.f32 %v1020, %v1089
      %v1091 = vpop.f32.mrf.mxu0
      %v1092 = vadd.f32 %v1020, %v1091
      %1093 = vmatmul.bf16.gmra.mxu0 %v989
      %v1094 = vpop.f32.mrf.mxu0
      %v1095 = vadd.f32 %v1020, %v1094
      %v1096 = vpop.f32.mrf.mxu0
      %v1097 = vadd.f32 %v1020, %v1096
      %1098 = vmatmul.bf16.gmra.mxu0 %v990
      %v1099 = vpop.f32.mrf.mxu0
      %v1100 = vadd.f32 %v1020, %v1099
      %v1101 = vpop.f32.mrf.mxu0
      %v1102 = vadd.f32 %v1020, %v1101
      %1103 = vmatmul.bf16.gmra.mxu0 %v991
      %v1104 = vpop.f32.mrf.mxu0
      %v1105 = vadd.f32 %v1020, %v1104
      %v1106 = vpop.f32.mrf.mxu0
      %v1107 = vadd.f32 %v1020, %v1106
      %1108 = vmatmul.bf16.gmra.mxu0 %v992
      %v1109 = vpop.f32.mrf.mxu0
      %v1110 = vadd.f32 %v1020, %v1109
      %v1111 = vpop.f32.mrf.mxu0
      %v1112 = vadd.f32 %v1020, %v1111
      %1113 = vmatmul.bf16.gmra.mxu0 %v993
      %v1114 = vpop.f32.mrf.mxu0
      %v1115 = vadd.f32 %v1020, %v1114
      %v1116 = vpop.f32.mrf.mxu0
      %v1117 = vadd.f32 %v1020, %v1116
      %1118 = vmatmul.bf16.gmra.mxu0 %v994
      %v1119 = vpop.f32.mrf.mxu0
      %v1120 = vadd.f32 %v1020, %v1119
      %v1121 = vpop.f32.mrf.mxu0
      %v1122 = vadd.f32 %v1020, %v1121
      %1123 = vmatmul.bf16.gmra.mxu0 %v995
      %v1124 = vpop.f32.mrf.mxu0
      %v1125 = vadd.f32 %v1020, %v1124
      %v1126 = vpop.f32.mrf.mxu0
      %v1127 = vadd.f32 %v1020, %v1126
      %1128 = vmatmul.bf16.gmra.mxu0 %v996
      %v1129 = vpop.f32.mrf.mxu0
      %v1130 = vadd.f32 %v1020, %v1129
      %v1131 = vpop.f32.mrf.mxu0
      %v1132 = vadd.f32 %v1020, %v1131
      %1133 = vmatmul.bf16.gmra.mxu0 %v997
      %v1134 = vpop.f32.mrf.mxu0
      %v1135 = vadd.f32 %v1020, %v1134
      %v1136 = vpop.f32.mrf.mxu0
      %v1137 = vadd.f32 %v1020, %v1136
      %1138 = vmatmul.bf16.gmra.mxu0 %v998
      %v1139 = vpop.f32.mrf.mxu0
      %v1140 = vadd.f32 %v1020, %v1139
      %v1141 = vpop.f32.mrf.mxu0
      %v1142 = vadd.f32 %v1020, %v1141
      %1143 = vmatmul.bf16.gmra.mxu0 %v999
      %v1144 = vpop.f32.mrf.mxu0
      %v1145 = vadd.f32 %v1020, %v1144
      %v1146 = vpop.f32.mrf.mxu0
      %v1147 = vadd.f32 %v1020, %v1146
      %1148 = vmatmul.bf16.gmra.mxu0 %v1000
      %v1149 = vpop.f32.mrf.mxu0
      %v1150 = vadd.f32 %v1020, %v1149
      %v1151 = vpop.f32.mrf.mxu0
      %v1152 = vadd.f32 %v1020, %v1151
      %1153 = vmatmul.bf16.gmra.mxu0 %v1001
      %v1154 = vpop.f32.mrf.mxu0
      %v1155 = vadd.f32 %v1020, %v1154
      %v1156 = vpop.f32.mrf.mxu0
      %v1157 = vadd.f32 %v1020, %v1156
      %1158 = vdwg.mxu0
      %v1159 = vld [vmem:[%s660] sm:$0xf]
      %v1160 = vld [vmem:[%s660 + $0x4] sm:$0xf]
      %v1161 = vld [vmem:[%s660 + $0x8] sm:$0xf]
      %v1162 = vld [vmem:[%s660 + $0xc] sm:$0xf]
      %v1163 = vld [vmem:[%s660 + $0x10] sm:$0xf]
      %v1164 = vld [vmem:[%s660 + $0x14] sm:$0xf]
      %v1165 = vld [vmem:[%s660 + $0x18] sm:$0xf]
      %v1166 = vld [vmem:[%s660 + $0x1c] sm:$0xf]
      %v1167 = vld [vmem:[%s660 + $0x20] sm:$0xf]
      %v1168 = vld [vmem:[%s660 + $0x24] sm:$0xf]
      %v1169 = vld [vmem:[%s660 + $0x28] sm:$0xf]
      %v1170 = vld [vmem:[%s660 + $0x2c] sm:$0xf]
      %v1171 = vld [vmem:[%s660 + $0x30] sm:$0xf]
      %v1172 = vld [vmem:[%s660 + $0x34] sm:$0xf]
      %v1173 = vld [vmem:[%s660 + $0x38] sm:$0xf]
      %v1174 = vld [vmem:[%s660 + $0x3c] sm:$0xf]
      %v1175 = vld [vmem:[%s660 + $0x40] sm:$0xf]
      %v1176 = vld [vmem:[%s660 + $0x44] sm:$0xf]
      %v1177 = vld [vmem:[%s660 + $0x48] sm:$0xf]
      %v1178 = vld [vmem:[%s660 + $0x4c] sm:$0xf]
      %v1179 = vld [vmem:[%s660 + $0x50] sm:$0xf]
      %v1180 = vld [vmem:[%s660 + $0x54] sm:$0xf]
      %v1181 = vld [vmem:[%s660 + $0x58] sm:$0xf]
      %v1182 = vld [vmem:[%s660 + $0x5c] sm:$0xf]
      %v1183 = vld [vmem:[%s660 + $0x60] sm:$0xf]
      %v1184 = vld [vmem:[%s660 + $0x64] sm:$0xf]
      %v1185 = vld [vmem:[%s660 + $0x68] sm:$0xf]
      %v1186 = vld [vmem:[%s660 + $0x6c] sm:$0xf]
      %v1187 = vld [vmem:[%s660 + $0x70] sm:$0xf]
      %v1188 = vld [vmem:[%s660 + $0x74] sm:$0xf]
      %v1189 = vld [vmem:[%s660 + $0x78] sm:$0xf]
      %v1190 = vld [vmem:[%s660 + $0x7c] sm:$0xf]
      %v1191 = vld [vmem:[%s17] sm:$0xf]
      %v1192 = vld [vmem:[%s17 + $0x4] sm:$0xf]
      %v1193 = vld [vmem:[%s17 + $0x8] sm:$0xf]
      %v1194 = vld [vmem:[%s17 + $0xc] sm:$0xf]
      %v1195 = vld [vmem:[%s17 + $0x10] sm:$0xf]
      %v1196 = vld [vmem:[%s17 + $0x14] sm:$0xf]
      %v1197 = vld [vmem:[%s17 + $0x18] sm:$0xf]
      %v1198 = vld [vmem:[%s17 + $0x1c] sm:$0xf]
      %v1199 = vld [vmem:[%s17 + $0x20] sm:$0xf]
      %v1200 = vld [vmem:[%s17 + $0x24] sm:$0xf]
      %v1201 = vld [vmem:[%s17 + $0x28] sm:$0xf]
      %v1202 = vld [vmem:[%s17 + $0x2c] sm:$0xf]
      %v1203 = vld [vmem:[%s17 + $0x30] sm:$0xf]
      %v1204 = vld [vmem:[%s17 + $0x34] sm:$0xf]
      %v1205 = vld [vmem:[%s17 + $0x38] sm:$0xf]
      %v1206 = vld [vmem:[%s17 + $0x3c] sm:$0xf]
      %v1239 = vunpack.c.l.b16 %v1159
      %v1240 = vunpack.c.l.b16 %v1160
      %v1241 = vunpack.c.l.b16 %v1161
      %v1242 = vunpack.c.l.b16 %v1162
      %v1243 = vunpack.c.l.b16 %v1163
      %v1244 = vunpack.c.l.b16 %v1164
      %v1245 = vunpack.c.l.b16 %v1165
      %v1246 = vunpack.c.l.b16 %v1166
      %v1247 = vunpack.c.l.b16 %v1167
      %v1248 = vunpack.c.l.b16 %v1168
      %v1249 = vunpack.c.l.b16 %v1169
      %v1250 = vunpack.c.l.b16 %v1170
      %v1251 = vunpack.c.l.b16 %v1171
      %v1252 = vunpack.c.l.b16 %v1172
      %v1253 = vunpack.c.l.b16 %v1173
      %v1254 = vunpack.c.l.b16 %v1174
      %v1255 = vunpack.c.l.b16 %v1175
      %v1256 = vunpack.c.l.b16 %v1176
      %v1257 = vunpack.c.l.b16 %v1177
      %v1258 = vunpack.c.l.b16 %v1178
      %v1259 = vunpack.c.l.b16 %v1179
      %v1260 = vunpack.c.l.b16 %v1180
      %v1261 = vunpack.c.l.b16 %v1181
      %v1262 = vunpack.c.l.b16 %v1182
      %v1263 = vunpack.c.l.b16 %v1183
      %v1264 = vunpack.c.l.b16 %v1184
      %v1265 = vunpack.c.l.b16 %v1185
      %v1266 = vunpack.c.l.b16 %v1186
      %v1267 = vunpack.c.l.b16 %v1187
      %v1268 = vunpack.c.l.b16 %v1188
      %v1269 = vunpack.c.l.b16 %v1189
      %v1270 = vunpack.c.l.b16 %v1190
      %v1271 = vpack.c.b16 %v1240, %v1239
      %v1272 = vpack.c.b16 %v1242, %v1241
      %v1273 = vpack.c.b16 %v1244, %v1243
      %v1274 = vpack.c.b16 %v1246, %v1245
      %v1275 = vpack.c.b16 %v1248, %v1247
      %v1276 = vpack.c.b16 %v1250, %v1249
      %v1277 = vpack.c.b16 %v1252, %v1251
      %v1278 = vpack.c.b16 %v1254, %v1253
      %v1279 = vpack.c.b16 %v1256, %v1255
      %v1280 = vpack.c.b16 %v1258, %v1257
      %v1281 = vpack.c.b16 %v1260, %v1259
      %v1282 = vpack.c.b16 %v1262, %v1261
      %v1283 = vpack.c.b16 %v1264, %v1263
      %v1284 = vpack.c.b16 %v1266, %v1265
      %v1285 = vpack.c.b16 %v1268, %v1267
      %v1286 = vpack.c.b16 %v1270, %v1269
      %v1319 = vunpack.c.l.b16 %v1191
      %v1320 = vunpack.c.l.b16 %v1192
      %v1321 = vunpack.c.l.b16 %v1193
      %v1322 = vunpack.c.l.b16 %v1194
      %v1323 = vunpack.c.l.b16 %v1195
      %v1324 = vunpack.c.l.b16 %v1196
      %v1325 = vunpack.c.l.b16 %v1197
      %v1326 = vunpack.c.l.b16 %v1198
      %v1327 = vunpack.c.l.b16 %v1199
      %v1328 = vunpack.c.l.b16 %v1200
      %v1329 = vunpack.c.l.b16 %v1201
      %v1330 = vunpack.c.l.b16 %v1202
      %v1331 = vunpack.c.l.b16 %v1203
      %v1332 = vunpack.c.l.b16 %v1204
      %v1333 = vunpack.c.l.b16 %v1205
      %v1334 = vunpack.c.l.b16 %v1206
      %v1335 = vpack.c.b16 %v1320, %v1319
      %v1336 = vpack.c.b16 %v1322, %v1321
      %v1337 = vpack.c.b16 %v1324, %v1323
      %v1338 = vpack.c.b16 %v1326, %v1325
      %v1339 = vpack.c.b16 %v1328, %v1327
      %v1340 = vpack.c.b16 %v1330, %v1329
      %v1341 = vpack.c.b16 %v1332, %v1331
      %v1342 = vpack.c.b16 %v1334, %v1333
      %1351 = vmatpush.bf16.msra.mxu0 %v1342
      %1352 = vmatpush.bf16.msra.mxu0 %v1341
      %1353 = vmatpush.bf16.msra.mxu0 %v1340
      %1354 = vmatpush.bf16.msra.mxu0 %v1339
      %1355 = vmatpush.bf16.msra.mxu0 %v1338
      %1356 = vmatpush.bf16.msra.mxu0 %v1337
      %1357 = vmatpush.bf16.msra.mxu0 %v1336
      %1358 = vmatpush.bf16.msra.mxu0 %v1335
      %1359 = vmatmul.bf16.gmra.mxu0 %v1271
      %v1360 = vpop.f32.mrf.mxu0
      %v1361 = vadd.f32 0.0, %v1360
      %v1362 = vpop.f32.mrf.mxu0
      %v1363 = vadd.f32 0.0, %v1362
      %1364 = vmatmul.bf16.gmra.mxu0 %v1272
      %v1365 = vpop.f32.mrf.mxu0
      %v1366 = vadd.f32 0.0, %v1365
      %v1367 = vpop.f32.mrf.mxu0
      %v1368 = vadd.f32 0.0, %v1367
      %1369 = vmatmul.bf16.gmra.mxu0 %v1273
      %v1370 = vpop.f32.mrf.mxu0
      %v1371 = vadd.f32 0.0, %v1370
      %v1372 = vpop.f32.mrf.mxu0
      %v1373 = vadd.f32 0.0, %v1372
      %1374 = vmatmul.bf16.gmra.mxu0 %v1274
      %v1375 = vpop.f32.mrf.mxu0
      %v1376 = vadd.f32 0.0, %v1375
      %v1377 = vpop.f32.mrf.mxu0
      %v1378 = vadd.f32 0.0, %v1377
      %1379 = vmatmul.bf16.gmra.mxu0 %v1275
      %v1380 = vpop.f32.mrf.mxu0
      %v1381 = vadd.f32 0.0, %v1380
      %v1382 = vpop.f32.mrf.mxu0
      %v1383 = vadd.f32 0.0, %v1382
      %1384 = vmatmul.bf16.gmra.mxu0 %v1276
      %v1385 = vpop.f32.mrf.mxu0
      %v1386 = vadd.f32 0.0, %v1385
      %v1387 = vpop.f32.mrf.mxu0
      %v1388 = vadd.f32 0.0, %v1387
      %1389 = vmatmul.bf16.gmra.mxu0 %v1277
      %v1390 = vpop.f32.mrf.mxu0
      %v1391 = vadd.f32 0.0, %v1390
      %v1392 = vpop.f32.mrf.mxu0
      %v1393 = vadd.f32 0.0, %v1392
      %1394 = vmatmul.bf16.gmra.mxu0 %v1278
      %v1395 = vpop.f32.mrf.mxu0
      %v1396 = vadd.f32 0.0, %v1395
      %v1397 = vpop.f32.mrf.mxu0
      %v1398 = vadd.f32 0.0, %v1397
      %1399 = vmatmul.bf16.gmra.mxu0 %v1279
      %v1400 = vpop.f32.mrf.mxu0
      %v1401 = vadd.f32 0.0, %v1400
      %v1402 = vpop.f32.mrf.mxu0
      %v1403 = vadd.f32 0.0, %v1402
      %1404 = vmatmul.bf16.gmra.mxu0 %v1280
      %v1405 = vpop.f32.mrf.mxu0
      %v1406 = vadd.f32 0.0, %v1405
      %v1407 = vpop.f32.mrf.mxu0
      %v1408 = vadd.f32 0.0, %v1407
      %1409 = vmatmul.bf16.gmra.mxu0 %v1281
      %v1410 = vpop.f32.mrf.mxu0
      %v1411 = vadd.f32 0.0, %v1410
      %v1412 = vpop.f32.mrf.mxu0
      %v1413 = vadd.f32 0.0, %v1412
      %1414 = vmatmul.bf16.gmra.mxu0 %v1282
      %v1415 = vpop.f32.mrf.mxu0
      %v1416 = vadd.f32 0.0, %v1415
      %v1417 = vpop.f32.mrf.mxu0
      %v1418 = vadd.f32 0.0, %v1417
      %1419 = vmatmul.bf16.gmra.mxu0 %v1283
      %v1420 = vpop.f32.mrf.mxu0
      %v1421 = vadd.f32 0.0, %v1420
      %v1422 = vpop.f32.mrf.mxu0
      %v1423 = vadd.f32 0.0, %v1422
      %1424 = vmatmul.bf16.gmra.mxu0 %v1284
      %v1425 = vpop.f32.mrf.mxu0
      %v1426 = vadd.f32 0.0, %v1425
      %v1427 = vpop.f32.mrf.mxu0
      %v1428 = vadd.f32 0.0, %v1427
      %1429 = vmatmul.bf16.gmra.mxu0 %v1285
      %v1430 = vpop.f32.mrf.mxu0
      %v1431 = vadd.f32 0.0, %v1430
      %v1432 = vpop.f32.mrf.mxu0
      %v1433 = vadd.f32 0.0, %v1432
      %1434 = vmatmul.bf16.gmra.mxu0 %v1286
      %v1435 = vpop.f32.mrf.mxu0
      %v1436 = vadd.f32 0.0, %v1435
      %v1437 = vpop.f32.mrf.mxu0
      %v1438 = vadd.f32 0.0, %v1437
      %1439 = vdwg.mxu0
      %v1440 = vadd.f32 %v1080, %v1361
      %v1441 = vadd.f32 %v1082, %v1363
      %v1442 = vadd.f32 %v1085, %v1366
      %v1443 = vadd.f32 %v1087, %v1368
      %v1444 = vadd.f32 %v1090, %v1371
      %v1445 = vadd.f32 %v1092, %v1373
      %v1446 = vadd.f32 %v1095, %v1376
      %v1447 = vadd.f32 %v1097, %v1378
      %v1448 = vadd.f32 %v1100, %v1381
      %v1449 = vadd.f32 %v1102, %v1383
      %v1450 = vadd.f32 %v1105, %v1386
      %v1451 = vadd.f32 %v1107, %v1388
      %v1452 = vadd.f32 %v1110, %v1391
      %v1453 = vadd.f32 %v1112, %v1393
      %v1454 = vadd.f32 %v1115, %v1396
      %v1455 = vadd.f32 %v1117, %v1398
      %v1456 = vadd.f32 %v1120, %v1401
      %v1457 = vadd.f32 %v1122, %v1403
      %v1458 = vadd.f32 %v1125, %v1406
      %v1459 = vadd.f32 %v1127, %v1408
      %v1460 = vadd.f32 %v1130, %v1411
      %v1461 = vadd.f32 %v1132, %v1413
      %v1462 = vadd.f32 %v1135, %v1416
      %v1463 = vadd.f32 %v1137, %v1418
      %v1464 = vadd.f32 %v1140, %v1421
      %v1465 = vadd.f32 %v1142, %v1423
      %v1466 = vadd.f32 %v1145, %v1426
      %v1467 = vadd.f32 %v1147, %v1428
      %v1468 = vadd.f32 %v1150, %v1431
      %v1469 = vadd.f32 %v1152, %v1433
      %v1470 = vadd.f32 %v1155, %v1436
      %v1471 = vadd.f32 %v1157, %v1438
      %v1472 = vmax.f32 %v1440, 0.0
      %v1473 = vmax.f32 %v1441, 0.0
      %v1474 = vmax.f32 %v1442, 0.0
      %v1475 = vmax.f32 %v1443, 0.0
      %v1476 = vmax.f32 %v1444, 0.0
      %v1477 = vmax.f32 %v1445, 0.0
      %v1478 = vmax.f32 %v1446, 0.0
      %v1479 = vmax.f32 %v1447, 0.0
      %v1480 = vmax.f32 %v1448, 0.0
      %v1481 = vmax.f32 %v1449, 0.0
      %v1482 = vmax.f32 %v1450, 0.0
      %v1483 = vmax.f32 %v1451, 0.0
      %v1484 = vmax.f32 %v1452, 0.0
      %v1485 = vmax.f32 %v1453, 0.0
      %v1486 = vmax.f32 %v1454, 0.0
      %v1487 = vmax.f32 %v1455, 0.0
      %v1488 = vmax.f32 %v1456, 0.0
      %v1489 = vmax.f32 %v1457, 0.0
      %v1490 = vmax.f32 %v1458, 0.0
      %v1491 = vmax.f32 %v1459, 0.0
      %v1492 = vmax.f32 %v1460, 0.0
      %v1493 = vmax.f32 %v1461, 0.0
      %v1494 = vmax.f32 %v1462, 0.0
      %v1495 = vmax.f32 %v1463, 0.0
      %v1496 = vmax.f32 %v1464, 0.0
      %v1497 = vmax.f32 %v1465, 0.0
      %v1498 = vmax.f32 %v1466, 0.0
      %v1499 = vmax.f32 %v1467, 0.0
      %v1500 = vmax.f32 %v1468, 0.0
      %v1501 = vmax.f32 %v1469, 0.0
      %v1502 = vmax.f32 %v1470, 0.0
      %v1503 = vmax.f32 %v1471, 0.0
      %1504 = vst [vmem:[%s667] sm:$0xff] %v1472
      %1505 = vst [vmem:[%s667 + $0x20] sm:$0xff] %v1473
      %1506 = vst [vmem:[%s667 + $0x40] sm:$0xff] %v1474
      %1507 = vst [vmem:[%s667 + $0x60] sm:$0xff] %v1475
      %1508 = vst [vmem:[%s667 + $0x80] sm:$0xff] %v1476
      %1509 = vst [vmem:[%s667 + $0xa0] sm:$0xff] %v1477
      %1510 = vst [vmem:[%s667 + $0xc0] sm:$0xff] %v1478
      %1511 = vst [vmem:[%s667 + $0xe0] sm:$0xff] %v1479
      %1512 = vst [vmem:[%s667 + $0x100] sm:$0xff] %v1480
      %1513 = vst [vmem:[%s667 + $0x120] sm:$0xff] %v1481
      %1514 = vst [vmem:[%s667 + $0x140] sm:$0xff] %v1482
      %1515 = vst [vmem:[%s667 + $0x160] sm:$0xff] %v1483
      %1516 = vst [vmem:[%s667 + $0x180] sm:$0xff] %v1484
      %1517 = vst [vmem:[%s667 + $0x1a0] sm:$0xff] %v1485
      %1518 = vst [vmem:[%s667 + $0x1c0] sm:$0xff] %v1486
      %1519 = vst [vmem:[%s667 + $0x1e0] sm:$0xff] %v1487
      %1520 = vst [vmem:[%s667 + $0x200] sm:$0xff] %v1488
      %1521 = vst [vmem:[%s667 + $0x220] sm:$0xff] %v1489
      %1522 = vst [vmem:[%s667 + $0x240] sm:$0xff] %v1490
      %1523 = vst [vmem:[%s667 + $0x260] sm:$0xff] %v1491
      %1524 = vst [vmem:[%s667 + $0x280] sm:$0xff] %v1492
      %1525 = vst [vmem:[%s667 + $0x2a0] sm:$0xff] %v1493
      %1526 = vst [vmem:[%s667 + $0x2c0] sm:$0xff] %v1494
      %1527 = vst [vmem:[%s667 + $0x2e0] sm:$0xff] %v1495
      %1528 = vst [vmem:[%s667 + $0x300] sm:$0xff] %v1496
      %1529 = vst [vmem:[%s667 + $0x320] sm:$0xff] %v1497
      %1530 = vst [vmem:[%s667 + $0x340] sm:$0xff] %v1498
      %1531 = vst [vmem:[%s667 + $0x360] sm:$0xff] %v1499
      %1532 = vst [vmem:[%s667 + $0x380] sm:$0xff] %v1500
      %1533 = vst [vmem:[%s667 + $0x3a0] sm:$0xff] %v1501
      %1534 = vst [vmem:[%s667 + $0x3c0] sm:$0xff] %v1502
      %1535 = vst [vmem:[%s667 + $0x3e0] sm:$0xff] %v1503
      %v1536 = vld [vmem:[%s642] sm:$0xf]
      %v1537 = vld [vmem:[%s642 + $0x4] sm:$0xf]
      %v1538 = vld [vmem:[%s642 + $0x8] sm:$0xf]
      %v1539 = vld [vmem:[%s642 + $0xc] sm:$0xf]
      %v1540 = vld [vmem:[%s642 + $0x10] sm:$0xf]
      %v1541 = vld [vmem:[%s642 + $0x14] sm:$0xf]
      %v1542 = vld [vmem:[%s642 + $0x18] sm:$0xf]
      %v1543 = vld [vmem:[%s642 + $0x1c] sm:$0xf]
      %v1544 = vld [vmem:[%s642 + $0x20] sm:$0xf]
      %v1545 = vld [vmem:[%s642 + $0x24] sm:$0xf]
      %v1546 = vld [vmem:[%s642 + $0x28] sm:$0xf]
      %v1547 = vld [vmem:[%s642 + $0x2c] sm:$0xf]
      %v1548 = vld [vmem:[%s642 + $0x30] sm:$0xf]
      %v1549 = vld [vmem:[%s642 + $0x34] sm:$0xf]
      %v1550 = vld [vmem:[%s642 + $0x38] sm:$0xf]
      %v1551 = vld [vmem:[%s642 + $0x3c] sm:$0xf]
      %v1552 = vld [vmem:[%s642 + $0x40] sm:$0xf]
      %v1553 = vld [vmem:[%s642 + $0x44] sm:$0xf]
      %v1554 = vld [vmem:[%s642 + $0x48] sm:$0xf]
      %v1555 = vld [vmem:[%s642 + $0x4c] sm:$0xf]
      %v1556 = vld [vmem:[%s642 + $0x50] sm:$0xf]
      %v1557 = vld [vmem:[%s642 + $0x54] sm:$0xf]
      %v1558 = vld [vmem:[%s642 + $0x58] sm:$0xf]
      %v1559 = vld [vmem:[%s642 + $0x5c] sm:$0xf]
      %v1560 = vld [vmem:[%s642 + $0x60] sm:$0xf]
      %v1561 = vld [vmem:[%s642 + $0x64] sm:$0xf]
      %v1562 = vld [vmem:[%s642 + $0x68] sm:$0xf]
      %v1563 = vld [vmem:[%s642 + $0x6c] sm:$0xf]
      %v1564 = vld [vmem:[%s642 + $0x70] sm:$0xf]
      %v1565 = vld [vmem:[%s642 + $0x74] sm:$0xf]
      %v1566 = vld [vmem:[%s642 + $0x78] sm:$0xf]
      %v1567 = vld [vmem:[%s642 + $0x7c] sm:$0xf]
      %v1568 = vld [vmem:[%s5] sm:$0xf]
      %v1569 = vld [vmem:[%s5 + $0x4] sm:$0xf]
      %v1570 = vld [vmem:[%s5 + $0x8] sm:$0xf]
      %v1571 = vld [vmem:[%s5 + $0xc] sm:$0xf]
      %v1572 = vld [vmem:[%s5 + $0x10] sm:$0xf]
      %v1573 = vld [vmem:[%s5 + $0x14] sm:$0xf]
      %v1574 = vld [vmem:[%s5 + $0x18] sm:$0xf]
      %v1575 = vld [vmem:[%s5 + $0x1c] sm:$0xf]
      %v1576 = vld [vmem:[%s5 + $0x20] sm:$0xf]
      %v1577 = vld [vmem:[%s5 + $0x24] sm:$0xf]
      %v1578 = vld [vmem:[%s5 + $0x28] sm:$0xf]
      %v1579 = vld [vmem:[%s5 + $0x2c] sm:$0xf]
      %v1580 = vld [vmem:[%s5 + $0x30] sm:$0xf]
      %v1581 = vld [vmem:[%s5 + $0x34] sm:$0xf]
      %v1582 = vld [vmem:[%s5 + $0x38] sm:$0xf]
      %v1583 = vld [vmem:[%s5 + $0x3c] sm:$0xf]
      %v1584 = vld [vmem:[%s636] sm:$0xf]
      %v1585 = vld [vmem:[%s636 + $0x4] sm:$0xf]
      %v1586 = vld [vmem:[%s636 + $0x8] sm:$0xf]
      %v1587 = vld [vmem:[%s636 + $0xc] sm:$0xf]
      %v1588 = vld [vmem:[%s636 + $0x10] sm:$0xf]
      %v1589 = vld [vmem:[%s636 + $0x14] sm:$0xf]
      %v1590 = vld [vmem:[%s636 + $0x18] sm:$0xf]
      %v1591 = vld [vmem:[%s636 + $0x1c] sm:$0xf]
      %v1592 = vld [vmem:[%s636 + $0x20] sm:$0xf]
      %v1593 = vld [vmem:[%s636 + $0x24] sm:$0xf]
      %v1594 = vld [vmem:[%s636 + $0x28] sm:$0xf]
      %v1595 = vld [vmem:[%s636 + $0x2c] sm:$0xf]
      %v1596 = vld [vmem:[%s636 + $0x30] sm:$0xf]
      %v1597 = vld [vmem:[%s636 + $0x34] sm:$0xf]
      %v1598 = vld [vmem:[%s636 + $0x38] sm:$0xf]
      %v1599 = vld [vmem:[%s636 + $0x3c] sm:$0xf]
      %v1600 = vld [vmem:[%s636 + $0x40] sm:$0xf]
      %v1601 = vld [vmem:[%s636 + $0x44] sm:$0xf]
      %v1602 = vld [vmem:[%s636 + $0x48] sm:$0xf]
      %v1603 = vld [vmem:[%s636 + $0x4c] sm:$0xf]
      %v1604 = vld [vmem:[%s636 + $0x50] sm:$0xf]
      %v1605 = vld [vmem:[%s636 + $0x54] sm:$0xf]
      %v1606 = vld [vmem:[%s636 + $0x58] sm:$0xf]
      %v1607 = vld [vmem:[%s636 + $0x5c] sm:$0xf]
      %v1608 = vld [vmem:[%s636 + $0x60] sm:$0xf]
      %v1609 = vld [vmem:[%s636 + $0x64] sm:$0xf]
      %v1610 = vld [vmem:[%s636 + $0x68] sm:$0xf]
      %v1611 = vld [vmem:[%s636 + $0x6c] sm:$0xf]
      %v1612 = vld [vmem:[%s636 + $0x70] sm:$0xf]
      %v1613 = vld [vmem:[%s636 + $0x74] sm:$0xf]
      %v1614 = vld [vmem:[%s636 + $0x78] sm:$0xf]
      %v1615 = vld [vmem:[%s636 + $0x7c] sm:$0xf]
      %v1616 = vld [vmem:[%s6] sm:$0xf]
      %v1617 = vld [vmem:[%s6 + $0x4] sm:$0xf]
      %v1618 = vld [vmem:[%s6 + $0x8] sm:$0xf]
      %v1619 = vld [vmem:[%s6 + $0xc] sm:$0xf]
      %v1620 = vld [vmem:[%s6 + $0x10] sm:$0xf]
      %v1621 = vld [vmem:[%s6 + $0x14] sm:$0xf]
      %v1622 = vld [vmem:[%s6 + $0x18] sm:$0xf]
      %v1623 = vld [vmem:[%s6 + $0x1c] sm:$0xf]
      %v1624 = vld [vmem:[%s6 + $0x20] sm:$0xf]
      %v1625 = vld [vmem:[%s6 + $0x24] sm:$0xf]
      %v1626 = vld [vmem:[%s6 + $0x28] sm:$0xf]
      %v1627 = vld [vmem:[%s6 + $0x2c] sm:$0xf]
      %v1628 = vld [vmem:[%s6 + $0x30] sm:$0xf]
      %v1629 = vld [vmem:[%s6 + $0x34] sm:$0xf]
      %v1630 = vld [vmem:[%s6 + $0x38] sm:$0xf]
      %v1631 = vld [vmem:[%s6 + $0x3c] sm:$0xf]
      %v1664 = vunpack.c.l.b16 %v1584
      %v1665 = vunpack.c.l.b16 %v1585
      %v1666 = vunpack.c.l.b16 %v1586
      %v1667 = vunpack.c.l.b16 %v1587
      %v1668 = vunpack.c.l.b16 %v1588
      %v1669 = vunpack.c.l.b16 %v1589
      %v1670 = vunpack.c.l.b16 %v1590
      %v1671 = vunpack.c.l.b16 %v1591
      %v1672 = vunpack.c.l.b16 %v1592
      %v1673 = vunpack.c.l.b16 %v1593
      %v1674 = vunpack.c.l.b16 %v1594
      %v1675 = vunpack.c.l.b16 %v1595
      %v1676 = vunpack.c.l.b16 %v1596
      %v1677 = vunpack.c.l.b16 %v1597
      %v1678 = vunpack.c.l.b16 %v1598
      %v1679 = vunpack.c.l.b16 %v1599
      %v1680 = vunpack.c.l.b16 %v1600
      %v1681 = vunpack.c.l.b16 %v1601
      %v1682 = vunpack.c.l.b16 %v1602
      %v1683 = vunpack.c.l.b16 %v1603
      %v1684 = vunpack.c.l.b16 %v1604
      %v1685 = vunpack.c.l.b16 %v1605
      %v1686 = vunpack.c.l.b16 %v1606
      %v1687 = vunpack.c.l.b16 %v1607
      %v1688 = vunpack.c.l.b16 %v1608
      %v1689 = vunpack.c.l.b16 %v1609
      %v1690 = vunpack.c.l.b16 %v1610
      %v1691 = vunpack.c.l.b16 %v1611
      %v1692 = vunpack.c.l.b16 %v1612
      %v1693 = vunpack.c.l.b16 %v1613
      %v1694 = vunpack.c.l.b16 %v1614
      %v1695 = vunpack.c.l.b16 %v1615
      %v1696 = vpack.c.b16 %v1665, %v1664
      %v1697 = vpack.c.b16 %v1667, %v1666
      %v1698 = vpack.c.b16 %v1669, %v1668
      %v1699 = vpack.c.b16 %v1671, %v1670
      %v1700 = vpack.c.b16 %v1673, %v1672
      %v1701 = vpack.c.b16 %v1675, %v1674
      %v1702 = vpack.c.b16 %v1677, %v1676
      %v1703 = vpack.c.b16 %v1679, %v1678
      %v1704 = vpack.c.b16 %v1681, %v1680
      %v1705 = vpack.c.b16 %v1683, %v1682
      %v1706 = vpack.c.b16 %v1685, %v1684
      %v1707 = vpack.c.b16 %v1687, %v1686
      %v1708 = vpack.c.b16 %v1689, %v1688
      %v1709 = vpack.c.b16 %v1691, %v1690
      %v1710 = vpack.c.b16 %v1693, %v1692
      %v1711 = vpack.c.b16 %v1695, %v1694
      %v1744 = vunpack.c.l.b16 %v1616
      %v1745 = vunpack.c.l.b16 %v1617
      %v1746 = vunpack.c.l.b16 %v1618
      %v1747 = vunpack.c.l.b16 %v1619
      %v1748 = vunpack.c.l.b16 %v1620
      %v1749 = vunpack.c.l.b16 %v1621
      %v1750 = vunpack.c.l.b16 %v1622
      %v1751 = vunpack.c.l.b16 %v1623
      %v1752 = vunpack.c.l.b16 %v1624
      %v1753 = vunpack.c.l.b16 %v1625
      %v1754 = vunpack.c.l.b16 %v1626
      %v1755 = vunpack.c.l.b16 %v1627
      %v1756 = vunpack.c.l.b16 %v1628
      %v1757 = vunpack.c.l.b16 %v1629
      %v1758 = vunpack.c.l.b16 %v1630
      %v1759 = vunpack.c.l.b16 %v1631
      %v1760 = vpack.c.b16 %v1745, %v1744
      %v1761 = vpack.c.b16 %v1747, %v1746
      %v1762 = vpack.c.b16 %v1749, %v1748
      %v1763 = vpack.c.b16 %v1751, %v1750
      %v1764 = vpack.c.b16 %v1753, %v1752
      %v1765 = vpack.c.b16 %v1755, %v1754
      %v1766 = vpack.c.b16 %v1757, %v1756
      %v1767 = vpack.c.b16 %v1759, %v1758
      %1776 = vmatpush.bf16.msra.mxu0 %v1767
      %1777 = vmatpush.bf16.msra.mxu0 %v1766
      %1778 = vmatpush.bf16.msra.mxu0 %v1765
      %1779 = vmatpush.bf16.msra.mxu0 %v1764
      %1780 = vmatpush.bf16.msra.mxu0 %v1763
      %1781 = vmatpush.bf16.msra.mxu0 %v1762
      %1782 = vmatpush.bf16.msra.mxu0 %v1761
      %1783 = vmatpush.bf16.msra.mxu0 %v1760
      %1784 = vmatmul.bf16.gmra.mxu0 %v1696
      %v1785 = vpop.f32.mrf.mxu0
      %v1786 = vadd.f32 0.0, %v1785
      %v1787 = vpop.f32.mrf.mxu0
      %v1788 = vadd.f32 0.0, %v1787
      %1789 = vmatmul.bf16.gmra.mxu0 %v1697
      %v1790 = vpop.f32.mrf.mxu0
      %v1791 = vadd.f32 0.0, %v1790
      %v1792 = vpop.f32.mrf.mxu0
      %v1793 = vadd.f32 0.0, %v1792
      %1794 = vmatmul.bf16.gmra.mxu0 %v1698
      %v1795 = vpop.f32.mrf.mxu0
      %v1796 = vadd.f32 0.0, %v1795
      %v1797 = vpop.f32.mrf.mxu0
      %v1798 = vadd.f32 0.0, %v1797
      %1799 = vmatmul.bf16.gmra.mxu0 %v1699
      %v1800 = vpop.f32.mrf.mxu0
      %v1801 = vadd.f32 0.0, %v1800
      %v1802 = vpop.f32.mrf.mxu0
      %v1803 = vadd.f32 0.0, %v1802
      %1804 = vmatmul.bf16.gmra.mxu0 %v1700
      %v1805 = vpop.f32.mrf.mxu0
      %v1806 = vadd.f32 0.0, %v1805
      %v1807 = vpop.f32.mrf.mxu0
      %v1808 = vadd.f32 0.0, %v1807
      %1809 = vmatmul.bf16.gmra.mxu0 %v1701
      %v1810 = vpop.f32.mrf.mxu0
      %v1811 = vadd.f32 0.0, %v1810
      %v1812 = vpop.f32.mrf.mxu0
      %v1813 = vadd.f32 0.0, %v1812
      %1814 = vmatmul.bf16.gmra.mxu0 %v1702
      %v1815 = vpop.f32.mrf.mxu0
      %v1816 = vadd.f32 0.0, %v1815
      %v1817 = vpop.f32.mrf.mxu0
      %v1818 = vadd.f32 0.0, %v1817
      %1819 = vmatmul.bf16.gmra.mxu0 %v1703
      %v1820 = vpop.f32.mrf.mxu0
      %v1821 = vadd.f32 0.0, %v1820
      %v1822 = vpop.f32.mrf.mxu0
      %v1823 = vadd.f32 0.0, %v1822
      %1824 = vmatmul.bf16.gmra.mxu0 %v1704
      %v1825 = vpop.f32.mrf.mxu0
      %v1826 = vadd.f32 0.0, %v1825
      %v1827 = vpop.f32.mrf.mxu0
      %v1828 = vadd.f32 0.0, %v1827
      %1829 = vmatmul.bf16.gmra.mxu0 %v1705
      %v1830 = vpop.f32.mrf.mxu0
      %v1831 = vadd.f32 0.0, %v1830
      %v1832 = vpop.f32.mrf.mxu0
      %v1833 = vadd.f32 0.0, %v1832
      %1834 = vmatmul.bf16.gmra.mxu0 %v1706
      %v1835 = vpop.f32.mrf.mxu0
      %v1836 = vadd.f32 0.0, %v1835
      %v1837 = vpop.f32.mrf.mxu0
      %v1838 = vadd.f32 0.0, %v1837
      %1839 = vmatmul.bf16.gmra.mxu0 %v1707
      %v1840 = vpop.f32.mrf.mxu0
      %v1841 = vadd.f32 0.0, %v1840
      %v1842 = vpop.f32.mrf.mxu0
      %v1843 = vadd.f32 0.0, %v1842
      %1844 = vmatmul.bf16.gmra.mxu0 %v1708
      %v1845 = vpop.f32.mrf.mxu0
      %v1846 = vadd.f32 0.0, %v1845
      %v1847 = vpop.f32.mrf.mxu0
      %v1848 = vadd.f32 0.0, %v1847
      %1849 = vmatmul.bf16.gmra.mxu0 %v1709
      %v1850 = vpop.f32.mrf.mxu0
      %v1851 = vadd.f32 0.0, %v1850
      %v1852 = vpop.f32.mrf.mxu0
      %v1853 = vadd.f32 0.0, %v1852
      %1854 = vmatmul.bf16.gmra.mxu0 %v1710
      %v1855 = vpop.f32.mrf.mxu0
      %v1856 = vadd.f32 0.0, %v1855
      %v1857 = vpop.f32.mrf.mxu0
      %v1858 = vadd.f32 0.0, %v1857
      %1859 = vmatmul.bf16.gmra.mxu0 %v1711
      %v1860 = vpop.f32.mrf.mxu0
      %v1861 = vadd.f32 0.0, %v1860
      %v1862 = vpop.f32.mrf.mxu0
      %v1863 = vadd.f32 0.0, %v1862
      %1864 = vdwg.mxu0
      %v1897 = vunpack.c.l.b16 %v1536
      %v1898 = vunpack.c.l.b16 %v1537
      %v1899 = vunpack.c.l.b16 %v1538
      %v1900 = vunpack.c.l.b16 %v1539
      %v1901 = vunpack.c.l.b16 %v1540
      %v1902 = vunpack.c.l.b16 %v1541
      %v1903 = vunpack.c.l.b16 %v1542
      %v1904 = vunpack.c.l.b16 %v1543
      %v1905 = vunpack.c.l.b16 %v1544
      %v1906 = vunpack.c.l.b16 %v1545
      %v1907 = vunpack.c.l.b16 %v1546
      %v1908 = vunpack.c.l.b16 %v1547
      %v1909 = vunpack.c.l.b16 %v1548
      %v1910 = vunpack.c.l.b16 %v1549
      %v1911 = vunpack.c.l.b16 %v1550
      %v1912 = vunpack.c.l.b16 %v1551
      %v1913 = vunpack.c.l.b16 %v1552
      %v1914 = vunpack.c.l.b16 %v1553
      %v1915 = vunpack.c.l.b16 %v1554
      %v1916 = vunpack.c.l.b16 %v1555
      %v1917 = vunpack.c.l.b16 %v1556
      %v1918 = vunpack.c.l.b16 %v1557
      %v1919 = vunpack.c.l.b16 %v1558
      %v1920 = vunpack.c.l.b16 %v1559
      %v1921 = vunpack.c.l.b16 %v1560
      %v1922 = vunpack.c.l.b16 %v1561
      %v1923 = vunpack.c.l.b16 %v1562
      %v1924 = vunpack.c.l.b16 %v1563
      %v1925 = vunpack.c.l.b16 %v1564
      %v1926 = vunpack.c.l.b16 %v1565
      %v1927 = vunpack.c.l.b16 %v1566
      %v1928 = vunpack.c.l.b16 %v1567
      %v1929 = vpack.c.b16 %v1898, %v1897
      %v1930 = vpack.c.b16 %v1900, %v1899
      %v1931 = vpack.c.b16 %v1902, %v1901
      %v1932 = vpack.c.b16 %v1904, %v1903
      %v1933 = vpack.c.b16 %v1906, %v1905
      %v1934 = vpack.c.b16 %v1908, %v1907
      %v1935 = vpack.c.b16 %v1910, %v1909
      %v1936 = vpack.c.b16 %v1912, %v1911
      %v1937 = vpack.c.b16 %v1914, %v1913
      %v1938 = vpack.c.b16 %v1916, %v1915
      %v1939 = vpack.c.b16 %v1918, %v1917
      %v1940 = vpack.c.b16 %v1920, %v1919
      %v1941 = vpack.c.b16 %v1922, %v1921
      %v1942 = vpack.c.b16 %v1924, %v1923
      %v1943 = vpack.c.b16 %v1926, %v1925
      %v1944 = vpack.c.b16 %v1928, %v1927
      %v1977 = vunpack.c.l.b16 %v1568
      %v1978 = vunpack.c.l.b16 %v1569
      %v1979 = vunpack.c.l.b16 %v1570
      %v1980 = vunpack.c.l.b16 %v1571
      %v1981 = vunpack.c.l.b16 %v1572
      %v1982 = vunpack.c.l.b16 %v1573
      %v1983 = vunpack.c.l.b16 %v1574
      %v1984 = vunpack.c.l.b16 %v1575
      %v1985 = vunpack.c.l.b16 %v1576
      %v1986 = vunpack.c.l.b16 %v1577
      %v1987 = vunpack.c.l.b16 %v1578
      %v1988 = vunpack.c.l.b16 %v1579
      %v1989 = vunpack.c.l.b16 %v1580
      %v1990 = vunpack.c.l.b16 %v1581
      %v1991 = vunpack.c.l.b16 %v1582
      %v1992 = vunpack.c.l.b16 %v1583
      %v1993 = vpack.c.b16 %v1978, %v1977
      %v1994 = vpack.c.b16 %v1980, %v1979
      %v1995 = vpack.c.b16 %v1982, %v1981
      %v1996 = vpack.c.b16 %v1984, %v1983
      %v1997 = vpack.c.b16 %v1986, %v1985
      %v1998 = vpack.c.b16 %v1988, %v1987
      %v1999 = vpack.c.b16 %v1990, %v1989
      %v2000 = vpack.c.b16 %v1992, %v1991
      %2009 = vmatpush.bf16.msra.mxu0 %v2000
      %2010 = vmatpush.bf16.msra.mxu0 %v1999
      %2011 = vmatpush.bf16.msra.mxu0 %v1998
      %2012 = vmatpush.bf16.msra.mxu0 %v1997
      %2013 = vmatpush.bf16.msra.mxu0 %v1996
      %2014 = vmatpush.bf16.msra.mxu0 %v1995
      %2015 = vmatpush.bf16.msra.mxu0 %v1994
      %2016 = vmatpush.bf16.msra.mxu0 %v1993
      %2017 = vmatmul.bf16.gmra.mxu0 %v1929
      %v2018 = vpop.f32.mrf.mxu0
      %v2019 = vadd.f32 %v1786, %v2018
      %v2020 = vpop.f32.mrf.mxu0
      %v2021 = vadd.f32 %v1788, %v2020
      %2022 = vmatmul.bf16.gmra.mxu0 %v1930
      %v2023 = vpop.f32.mrf.mxu0
      %v2024 = vadd.f32 %v1791, %v2023
      %v2025 = vpop.f32.mrf.mxu0
      %v2026 = vadd.f32 %v1793, %v2025
      %2027 = vmatmul.bf16.gmra.mxu0 %v1931
      %v2028 = vpop.f32.mrf.mxu0
      %v2029 = vadd.f32 %v1796, %v2028
      %v2030 = vpop.f32.mrf.mxu0
      %v2031 = vadd.f32 %v1798, %v2030
      %2032 = vmatmul.bf16.gmra.mxu0 %v1932
      %v2033 = vpop.f32.mrf.mxu0
      %v2034 = vadd.f32 %v1801, %v2033
      %v2035 = vpop.f32.mrf.mxu0
      %v2036 = vadd.f32 %v1803, %v2035
      %2037 = vmatmul.bf16.gmra.mxu0 %v1933
      %v2038 = vpop.f32.mrf.mxu0
      %v2039 = vadd.f32 %v1806, %v2038
      %v2040 = vpop.f32.mrf.mxu0
      %v2041 = vadd.f32 %v1808, %v2040
      %2042 = vmatmul.bf16.gmra.mxu0 %v1934
      %v2043 = vpop.f32.mrf.mxu0
      %v2044 = vadd.f32 %v1811, %v2043
      %v2045 = vpop.f32.mrf.mxu0
      %v2046 = vadd.f32 %v1813, %v2045
      %2047 = vmatmul.bf16.gmra.mxu0 %v1935
      %v2048 = vpop.f32.mrf.mxu0
      %v2049 = vadd.f32 %v1816, %v2048
      %v2050 = vpop.f32.mrf.mxu0
      %v2051 = vadd.f32 %v1818, %v2050
      %2052 = vmatmul.bf16.gmra.mxu0 %v1936
      %v2053 = vpop.f32.mrf.mxu0
      %v2054 = vadd.f32 %v1821, %v2053
      %v2055 = vpop.f32.mrf.mxu0
      %v2056 = vadd.f32 %v1823, %v2055
      %2057 = vmatmul.bf16.gmra.mxu0 %v1937
      %v2058 = vpop.f32.mrf.mxu0
      %v2059 = vadd.f32 %v1826, %v2058
      %v2060 = vpop.f32.mrf.mxu0
      %v2061 = vadd.f32 %v1828, %v2060
      %2062 = vmatmul.bf16.gmra.mxu0 %v1938
      %v2063 = vpop.f32.mrf.mxu0
      %v2064 = vadd.f32 %v1831, %v2063
      %v2065 = vpop.f32.mrf.mxu0
      %v2066 = vadd.f32 %v1833, %v2065
      %2067 = vmatmul.bf16.gmra.mxu0 %v1939
      %v2068 = vpop.f32.mrf.mxu0
      %v2069 = vadd.f32 %v1836, %v2068
      %v2070 = vpop.f32.mrf.mxu0
      %v2071 = vadd.f32 %v1838, %v2070
      %2072 = vmatmul.bf16.gmra.mxu0 %v1940
      %v2073 = vpop.f32.mrf.mxu0
      %v2074 = vadd.f32 %v1841, %v2073
      %v2075 = vpop.f32.mrf.mxu0
      %v2076 = vadd.f32 %v1843, %v2075
      %2077 = vmatmul.bf16.gmra.mxu0 %v1941
      %v2078 = vpop.f32.mrf.mxu0
      %v2079 = vadd.f32 %v1846, %v2078
      %v2080 = vpop.f32.mrf.mxu0
      %v2081 = vadd.f32 %v1848, %v2080
      %2082 = vmatmul.bf16.gmra.mxu0 %v1942
      %v2083 = vpop.f32.mrf.mxu0
      %v2084 = vadd.f32 %v1851, %v2083
      %v2085 = vpop.f32.mrf.mxu0
      %v2086 = vadd.f32 %v1853, %v2085
      %2087 = vmatmul.bf16.gmra.mxu0 %v1943
      %v2088 = vpop.f32.mrf.mxu0
      %v2089 = vadd.f32 %v1856, %v2088
      %v2090 = vpop.f32.mrf.mxu0
      %v2091 = vadd.f32 %v1858, %v2090
      %2092 = vmatmul.bf16.gmra.mxu0 %v1944
      %v2093 = vpop.f32.mrf.mxu0
      %v2094 = vadd.f32 %v1861, %v2093
      %v2095 = vpop.f32.mrf.mxu0
      %v2096 = vadd.f32 %v1863, %v2095
      %2097 = vdwg.mxu0
      %v2098 = vld [vmem:[%s13] sm:$0x1]
      %v2100 = vperm.slane %v2098, 0
      %v2102 = vadd.f32 %v2019, %v2100
      %v2103 = vadd.f32 %v2021, %v2100
      %v2104 = vadd.f32 %v2024, %v2100
      %v2105 = vadd.f32 %v2026, %v2100
      %v2106 = vadd.f32 %v2029, %v2100
      %v2107 = vadd.f32 %v2031, %v2100
      %v2108 = vadd.f32 %v2034, %v2100
      %v2109 = vadd.f32 %v2036, %v2100
      %v2110 = vadd.f32 %v2039, %v2100
      %v2111 = vadd.f32 %v2041, %v2100
      %v2112 = vadd.f32 %v2044, %v2100
      %v2113 = vadd.f32 %v2046, %v2100
      %v2114 = vadd.f32 %v2049, %v2100
      %v2115 = vadd.f32 %v2051, %v2100
      %v2116 = vadd.f32 %v2054, %v2100
      %v2117 = vadd.f32 %v2056, %v2100
      %v2118 = vadd.f32 %v2059, %v2100
      %v2119 = vadd.f32 %v2061, %v2100
      %v2120 = vadd.f32 %v2064, %v2100
      %v2121 = vadd.f32 %v2066, %v2100
      %v2122 = vadd.f32 %v2069, %v2100
      %v2123 = vadd.f32 %v2071, %v2100
      %v2124 = vadd.f32 %v2074, %v2100
      %v2125 = vadd.f32 %v2076, %v2100
      %v2126 = vadd.f32 %v2079, %v2100
      %v2127 = vadd.f32 %v2081, %v2100
      %v2128 = vadd.f32 %v2084, %v2100
      %v2129 = vadd.f32 %v2086, %v2100
      %v2130 = vadd.f32 %v2089, %v2100
      %v2131 = vadd.f32 %v2091, %v2100
      %v2132 = vadd.f32 %v2094, %v2100
      %v2133 = vadd.f32 %v2096, %v2100
      %v2134 = vmax.f32 %v2102, 0.0
      %v2135 = vmax.f32 %v2103, 0.0
      %v2136 = vmax.f32 %v2104, 0.0
      %v2137 = vmax.f32 %v2105, 0.0
      %v2138 = vmax.f32 %v2106, 0.0
      %v2139 = vmax.f32 %v2107, 0.0
      %v2140 = vmax.f32 %v2108, 0.0
      %v2141 = vmax.f32 %v2109, 0.0
      %v2142 = vmax.f32 %v2110, 0.0
      %v2143 = vmax.f32 %v2111, 0.0
      %v2144 = vmax.f32 %v2112, 0.0
      %v2145 = vmax.f32 %v2113, 0.0
      %v2146 = vmax.f32 %v2114, 0.0
      %v2147 = vmax.f32 %v2115, 0.0
      %v2148 = vmax.f32 %v2116, 0.0
      %v2149 = vmax.f32 %v2117, 0.0
      %v2150 = vmax.f32 %v2118, 0.0
      %v2151 = vmax.f32 %v2119, 0.0
      %v2152 = vmax.f32 %v2120, 0.0
      %v2153 = vmax.f32 %v2121, 0.0
      %v2154 = vmax.f32 %v2122, 0.0
      %v2155 = vmax.f32 %v2123, 0.0
      %v2156 = vmax.f32 %v2124, 0.0
      %v2157 = vmax.f32 %v2125, 0.0
      %v2158 = vmax.f32 %v2126, 0.0
      %v2159 = vmax.f32 %v2127, 0.0
      %v2160 = vmax.f32 %v2128, 0.0
      %v2161 = vmax.f32 %v2129, 0.0
      %v2162 = vmax.f32 %v2130, 0.0
      %v2163 = vmax.f32 %v2131, 0.0
      %v2164 = vmax.f32 %v2132, 0.0
      %v2165 = vmax.f32 %v2133, 0.0
      %v2166 = vpack.c.bf16 %v2135, %v2134
      %v2167 = vpack.c.bf16 %v2137, %v2136
      %v2168 = vpack.c.bf16 %v2139, %v2138
      %v2169 = vpack.c.bf16 %v2141, %v2140
      %v2170 = vpack.c.bf16 %v2143, %v2142
      %v2171 = vpack.c.bf16 %v2145, %v2144
      %v2172 = vpack.c.bf16 %v2147, %v2146
      %v2173 = vpack.c.bf16 %v2149, %v2148
      %v2174 = vpack.c.bf16 %v2151, %v2150
      %v2175 = vpack.c.bf16 %v2153, %v2152
      %v2176 = vpack.c.bf16 %v2155, %v2154
      %v2177 = vpack.c.bf16 %v2157, %v2156
      %v2178 = vpack.c.bf16 %v2159, %v2158
      %v2179 = vpack.c.bf16 %v2161, %v2160
      %v2180 = vpack.c.bf16 %v2163, %v2162
      %v2181 = vpack.c.bf16 %v2165, %v2164
      %v2182 = vld [vmem:[%s14] sm:$0xf]
      %v2183 = vld [vmem:[%s14 + $0x4] sm:$0xf]
      %v2184 = vld [vmem:[%s14 + $0x8] sm:$0xf]
      %v2185 = vld [vmem:[%s14 + $0xc] sm:$0xf]
      %v2186 = vld [vmem:[%s14 + $0x10] sm:$0xf]
      %v2187 = vld [vmem:[%s14 + $0x14] sm:$0xf]
      %v2188 = vld [vmem:[%s14 + $0x18] sm:$0xf]
      %v2189 = vld [vmem:[%s14 + $0x1c] sm:$0xf]
      %v2190 = vld [vmem:[%s14 + $0x20] sm:$0xf]
      %v2191 = vld [vmem:[%s14 + $0x24] sm:$0xf]
      %v2192 = vld [vmem:[%s14 + $0x28] sm:$0xf]
      %v2193 = vld [vmem:[%s14 + $0x2c] sm:$0xf]
      %v2194 = vld [vmem:[%s14 + $0x30] sm:$0xf]
      %v2195 = vld [vmem:[%s14 + $0x34] sm:$0xf]
      %v2196 = vld [vmem:[%s14 + $0x38] sm:$0xf]
      %v2197 = vld [vmem:[%s14 + $0x3c] sm:$0xf]
      %v2198 = vld [vmem:[%s15] sm:$0x1]
      %v2200 = vperm.slane %v2198, 0
      %v2218 = vunpack.c.l.b16 %v2182
      %v2219 = vunpack.c.l.b16 %v2183
      %v2220 = vunpack.c.l.b16 %v2184
      %v2221 = vunpack.c.l.b16 %v2185
      %v2222 = vunpack.c.l.b16 %v2186
      %v2223 = vunpack.c.l.b16 %v2187
      %v2224 = vunpack.c.l.b16 %v2188
      %v2225 = vunpack.c.l.b16 %v2189
      %v2226 = vunpack.c.l.b16 %v2190
      %v2227 = vunpack.c.l.b16 %v2191
      %v2228 = vunpack.c.l.b16 %v2192
      %v2229 = vunpack.c.l.b16 %v2193
      %v2230 = vunpack.c.l.b16 %v2194
      %v2231 = vunpack.c.l.b16 %v2195
      %v2232 = vunpack.c.l.b16 %v2196
      %v2233 = vunpack.c.l.b16 %v2197
      %v2234 = vpack.c.b16 %v2219, %v2218
      %v2235 = vpack.c.b16 %v2221, %v2220
      %v2236 = vpack.c.b16 %v2223, %v2222
      %v2237 = vpack.c.b16 %v2225, %v2224
      %v2238 = vpack.c.b16 %v2227, %v2226
      %v2239 = vpack.c.b16 %v2229, %v2228
      %v2240 = vpack.c.b16 %v2231, %v2230
      %v2241 = vpack.c.b16 %v2233, %v2232
      %2250 = vmatpush.bf16.msra.mxu0 %v2241
      %2251 = vmatpush.bf16.msra.mxu0 %v2240
      %2252 = vmatpush.bf16.msra.mxu0 %v2239
      %2253 = vmatpush.bf16.msra.mxu0 %v2238
      %2254 = vmatpush.bf16.msra.mxu0 %v2237
      %2255 = vmatpush.bf16.msra.mxu0 %v2236
      %2256 = vmatpush.bf16.msra.mxu0 %v2235
      %2257 = vmatpush.bf16.msra.mxu0 %v2234
      %2258 = vmatmul.bf16.gmra.mxu0 %v2166
      %v2259 = vpop.f32.mrf.mxu0
      %v2260 = vadd.f32 %v2200, %v2259
      %v2261 = vpop.f32.mrf.mxu0
      %v2262 = vadd.f32 %v2200, %v2261
      %2263 = vmatmul.bf16.gmra.mxu0 %v2167
      %v2264 = vpop.f32.mrf.mxu0
      %v2265 = vadd.f32 %v2200, %v2264
      %v2266 = vpop.f32.mrf.mxu0
      %v2267 = vadd.f32 %v2200, %v2266
      %2268 = vmatmul.bf16.gmra.mxu0 %v2168
      %v2269 = vpop.f32.mrf.mxu0
      %v2270 = vadd.f32 %v2200, %v2269
      %v2271 = vpop.f32.mrf.mxu0
      %v2272 = vadd.f32 %v2200, %v2271
      %2273 = vmatmul.bf16.gmra.mxu0 %v2169
      %v2274 = vpop.f32.mrf.mxu0
      %v2275 = vadd.f32 %v2200, %v2274
      %v2276 = vpop.f32.mrf.mxu0
      %v2277 = vadd.f32 %v2200, %v2276
      %2278 = vmatmul.bf16.gmra.mxu0 %v2170
      %v2279 = vpop.f32.mrf.mxu0
      %v2280 = vadd.f32 %v2200, %v2279
      %v2281 = vpop.f32.mrf.mxu0
      %v2282 = vadd.f32 %v2200, %v2281
      %2283 = vmatmul.bf16.gmra.mxu0 %v2171
      %v2284 = vpop.f32.mrf.mxu0
      %v2285 = vadd.f32 %v2200, %v2284
      %v2286 = vpop.f32.mrf.mxu0
      %v2287 = vadd.f32 %v2200, %v2286
      %2288 = vmatmul.bf16.gmra.mxu0 %v2172
      %v2289 = vpop.f32.mrf.mxu0
      %v2290 = vadd.f32 %v2200, %v2289
      %v2291 = vpop.f32.mrf.mxu0
      %v2292 = vadd.f32 %v2200, %v2291
      %2293 = vmatmul.bf16.gmra.mxu0 %v2173
      %v2294 = vpop.f32.mrf.mxu0
      %v2295 = vadd.f32 %v2200, %v2294
      %v2296 = vpop.f32.mrf.mxu0
      %v2297 = vadd.f32 %v2200, %v2296
      %2298 = vmatmul.bf16.gmra.mxu0 %v2174
      %v2299 = vpop.f32.mrf.mxu0
      %v2300 = vadd.f32 %v2200, %v2299
      %v2301 = vpop.f32.mrf.mxu0
      %v2302 = vadd.f32 %v2200, %v2301
      %2303 = vmatmul.bf16.gmra.mxu0 %v2175
      %v2304 = vpop.f32.mrf.mxu0
      %v2305 = vadd.f32 %v2200, %v2304
      %v2306 = vpop.f32.mrf.mxu0
      %v2307 = vadd.f32 %v2200, %v2306
      %2308 = vmatmul.bf16.gmra.mxu0 %v2176
      %v2309 = vpop.f32.mrf.mxu0
      %v2310 = vadd.f32 %v2200, %v2309
      %v2311 = vpop.f32.mrf.mxu0
      %v2312 = vadd.f32 %v2200, %v2311
      %2313 = vmatmul.bf16.gmra.mxu0 %v2177
      %v2314 = vpop.f32.mrf.mxu0
      %v2315 = vadd.f32 %v2200, %v2314
      %v2316 = vpop.f32.mrf.mxu0
      %v2317 = vadd.f32 %v2200, %v2316
      %2318 = vmatmul.bf16.gmra.mxu0 %v2178
      %v2319 = vpop.f32.mrf.mxu0
      %v2320 = vadd.f32 %v2200, %v2319
      %v2321 = vpop.f32.mrf.mxu0
      %v2322 = vadd.f32 %v2200, %v2321
      %2323 = vmatmul.bf16.gmra.mxu0 %v2179
      %v2324 = vpop.f32.mrf.mxu0
      %v2325 = vadd.f32 %v2200, %v2324
      %v2326 = vpop.f32.mrf.mxu0
      %v2327 = vadd.f32 %v2200, %v2326
      %2328 = vmatmul.bf16.gmra.mxu0 %v2180
      %v2329 = vpop.f32.mrf.mxu0
      %v2330 = vadd.f32 %v2200, %v2329
      %v2331 = vpop.f32.mrf.mxu0
      %v2332 = vadd.f32 %v2200, %v2331
      %2333 = vmatmul.bf16.gmra.mxu0 %v2181
      %v2334 = vpop.f32.mrf.mxu0
      %v2335 = vadd.f32 %v2200, %v2334
      %v2336 = vpop.f32.mrf.mxu0
      %v2337 = vadd.f32 %v2200, %v2336
      %2338 = vdwg.mxu0
      %v2339 = vmax.f32 %v2260, 0.0
      %v2340 = vmax.f32 %v2262, 0.0
      %v2341 = vmax.f32 %v2265, 0.0
      %v2342 = vmax.f32 %v2267, 0.0
      %v2343 = vmax.f32 %v2270, 0.0
      %v2344 = vmax.f32 %v2272, 0.0
      %v2345 = vmax.f32 %v2275, 0.0
      %v2346 = vmax.f32 %v2277, 0.0
      %v2347 = vmax.f32 %v2280, 0.0
      %v2348 = vmax.f32 %v2282, 0.0
      %v2349 = vmax.f32 %v2285, 0.0
      %v2350 = vmax.f32 %v2287, 0.0
      %v2351 = vmax.f32 %v2290, 0.0
      %v2352 = vmax.f32 %v2292, 0.0
      %v2353 = vmax.f32 %v2295, 0.0
      %v2354 = vmax.f32 %v2297, 0.0
      %v2355 = vmax.f32 %v2300, 0.0
      %v2356 = vmax.f32 %v2302, 0.0
      %v2357 = vmax.f32 %v2305, 0.0
      %v2358 = vmax.f32 %v2307, 0.0
      %v2359 = vmax.f32 %v2310, 0.0
      %v2360 = vmax.f32 %v2312, 0.0
      %v2361 = vmax.f32 %v2315, 0.0
      %v2362 = vmax.f32 %v2317, 0.0
      %v2363 = vmax.f32 %v2320, 0.0
      %v2364 = vmax.f32 %v2322, 0.0
      %v2365 = vmax.f32 %v2325, 0.0
      %v2366 = vmax.f32 %v2327, 0.0
      %v2367 = vmax.f32 %v2330, 0.0
      %v2368 = vmax.f32 %v2332, 0.0
      %v2369 = vmax.f32 %v2335, 0.0
      %v2370 = vmax.f32 %v2337, 0.0
      %2371 = vst [vmem:[%s667 + $0x8] sm:$0xff] %v2339
      %2372 = vst [vmem:[%s667 + $0x28] sm:$0xff] %v2340
      %2373 = vst [vmem:[%s667 + $0x48] sm:$0xff] %v2341
      %2374 = vst [vmem:[%s667 + $0x68] sm:$0xff] %v2342
      %2375 = vst [vmem:[%s667 + $0x88] sm:$0xff] %v2343
      %2376 = vst [vmem:[%s667 + $0xa8] sm:$0xff] %v2344
      %2377 = vst [vmem:[%s667 + $0xc8] sm:$0xff] %v2345
      %2378 = vst [vmem:[%s667 + $0xe8] sm:$0xff] %v2346
      %2379 = vst [vmem:[%s667 + $0x108] sm:$0xff] %v2347
      %2380 = vst [vmem:[%s667 + $0x128] sm:$0xff] %v2348
      %2381 = vst [vmem:[%s667 + $0x148] sm:$0xff] %v2349
      %2382 = vst [vmem:[%s667 + $0x168] sm:$0xff] %v2350
      %2383 = vst [vmem:[%s667 + $0x188] sm:$0xff] %v2351
      %2384 = vst [vmem:[%s667 + $0x1a8] sm:$0xff] %v2352
      %2385 = vst [vmem:[%s667 + $0x1c8] sm:$0xff] %v2353
      %2386 = vst [vmem:[%s667 + $0x1e8] sm:$0xff] %v2354
      %2387 = vst [vmem:[%s667 + $0x208] sm:$0xff] %v2355
      %2388 = vst [vmem:[%s667 + $0x228] sm:$0xff] %v2356
      %2389 = vst [vmem:[%s667 + $0x248] sm:$0xff] %v2357
      %2390 = vst [vmem:[%s667 + $0x268] sm:$0xff] %v2358
      %2391 = vst [vmem:[%s667 + $0x288] sm:$0xff] %v2359
      %2392 = vst [vmem:[%s667 + $0x2a8] sm:$0xff] %v2360
      %2393 = vst [vmem:[%s667 + $0x2c8] sm:$0xff] %v2361
      %2394 = vst [vmem:[%s667 + $0x2e8] sm:$0xff] %v2362
      %2395 = vst [vmem:[%s667 + $0x308] sm:$0xff] %v2363
      %2396 = vst [vmem:[%s667 + $0x328] sm:$0xff] %v2364
      %2397 = vst [vmem:[%s667 + $0x348] sm:$0xff] %v2365
      %2398 = vst [vmem:[%s667 + $0x368] sm:$0xff] %v2366
      %2399 = vst [vmem:[%s667 + $0x388] sm:$0xff] %v2367
      %2400 = vst [vmem:[%s667 + $0x3a8] sm:$0xff] %v2368
      %2401 = vst [vmem:[%s667 + $0x3c8] sm:$0xff] %v2369
      %2402 = vst [vmem:[%s667 + $0x3e8] sm:$0xff] %v2370
      %v2403 = vld [vmem:[%s648] sm:$0xf]
      %v2404 = vld [vmem:[%s648 + $0x4] sm:$0xf]
      %v2405 = vld [vmem:[%s648 + $0x8] sm:$0xf]
      %v2406 = vld [vmem:[%s648 + $0xc] sm:$0xf]
      %v2407 = vld [vmem:[%s648 + $0x10] sm:$0xf]
      %v2408 = vld [vmem:[%s648 + $0x14] sm:$0xf]
      %v2409 = vld [vmem:[%s648 + $0x18] sm:$0xf]
      %v2410 = vld [vmem:[%s648 + $0x1c] sm:$0xf]
      %v2411 = vld [vmem:[%s648 + $0x20] sm:$0xf]
      %v2412 = vld [vmem:[%s648 + $0x24] sm:$0xf]
      %v2413 = vld [vmem:[%s648 + $0x28] sm:$0xf]
      %v2414 = vld [vmem:[%s648 + $0x2c] sm:$0xf]
      %v2415 = vld [vmem:[%s648 + $0x30] sm:$0xf]
      %v2416 = vld [vmem:[%s648 + $0x34] sm:$0xf]
      %v2417 = vld [vmem:[%s648 + $0x38] sm:$0xf]
      %v2418 = vld [vmem:[%s648 + $0x3c] sm:$0xf]
      %v2419 = vld [vmem:[%s648 + $0x40] sm:$0xf]
      %v2420 = vld [vmem:[%s648 + $0x44] sm:$0xf]
      %v2421 = vld [vmem:[%s648 + $0x48] sm:$0xf]
      %v2422 = vld [vmem:[%s648 + $0x4c] sm:$0xf]
      %v2423 = vld [vmem:[%s648 + $0x50] sm:$0xf]
      %v2424 = vld [vmem:[%s648 + $0x54] sm:$0xf]
      %v2425 = vld [vmem:[%s648 + $0x58] sm:$0xf]
      %v2426 = vld [vmem:[%s648 + $0x5c] sm:$0xf]
      %v2427 = vld [vmem:[%s648 + $0x60] sm:$0xf]
      %v2428 = vld [vmem:[%s648 + $0x64] sm:$0xf]
      %v2429 = vld [vmem:[%s648 + $0x68] sm:$0xf]
      %v2430 = vld [vmem:[%s648 + $0x6c] sm:$0xf]
      %v2431 = vld [vmem:[%s648 + $0x70] sm:$0xf]
      %v2432 = vld [vmem:[%s648 + $0x74] sm:$0xf]
      %v2433 = vld [vmem:[%s648 + $0x78] sm:$0xf]
      %v2434 = vld [vmem:[%s648 + $0x7c] sm:$0xf]
      %v2435 = vld [vmem:[%s7] sm:$0xf]
      %v2436 = vld [vmem:[%s7 + $0x4] sm:$0xf]
      %v2437 = vld [vmem:[%s7 + $0x8] sm:$0xf]
      %v2438 = vld [vmem:[%s7 + $0xc] sm:$0xf]
      %v2439 = vld [vmem:[%s7 + $0x10] sm:$0xf]
      %v2440 = vld [vmem:[%s7 + $0x14] sm:$0xf]
      %v2441 = vld [vmem:[%s7 + $0x18] sm:$0xf]
      %v2442 = vld [vmem:[%s7 + $0x1c] sm:$0xf]
      %v2443 = vld [vmem:[%s7 + $0x20] sm:$0xf]
      %v2444 = vld [vmem:[%s7 + $0x24] sm:$0xf]
      %v2445 = vld [vmem:[%s7 + $0x28] sm:$0xf]
      %v2446 = vld [vmem:[%s7 + $0x2c] sm:$0xf]
      %v2447 = vld [vmem:[%s7 + $0x30] sm:$0xf]
      %v2448 = vld [vmem:[%s7 + $0x34] sm:$0xf]
      %v2449 = vld [vmem:[%s7 + $0x38] sm:$0xf]
      %v2450 = vld [vmem:[%s7 + $0x3c] sm:$0xf]
      %v2451 = vld [vmem:[%s636] sm:$0xf]
      %v2452 = vld [vmem:[%s636 + $0x4] sm:$0xf]
      %v2453 = vld [vmem:[%s636 + $0x8] sm:$0xf]
      %v2454 = vld [vmem:[%s636 + $0xc] sm:$0xf]
      %v2455 = vld [vmem:[%s636 + $0x10] sm:$0xf]
      %v2456 = vld [vmem:[%s636 + $0x14] sm:$0xf]
      %v2457 = vld [vmem:[%s636 + $0x18] sm:$0xf]
      %v2458 = vld [vmem:[%s636 + $0x1c] sm:$0xf]
      %v2459 = vld [vmem:[%s636 + $0x20] sm:$0xf]
      %v2460 = vld [vmem:[%s636 + $0x24] sm:$0xf]
      %v2461 = vld [vmem:[%s636 + $0x28] sm:$0xf]
      %v2462 = vld [vmem:[%s636 + $0x2c] sm:$0xf]
      %v2463 = vld [vmem:[%s636 + $0x30] sm:$0xf]
      %v2464 = vld [vmem:[%s636 + $0x34] sm:$0xf]
      %v2465 = vld [vmem:[%s636 + $0x38] sm:$0xf]
      %v2466 = vld [vmem:[%s636 + $0x3c] sm:$0xf]
      %v2467 = vld [vmem:[%s636 + $0x40] sm:$0xf]
      %v2468 = vld [vmem:[%s636 + $0x44] sm:$0xf]
      %v2469 = vld [vmem:[%s636 + $0x48] sm:$0xf]
      %v2470 = vld [vmem:[%s636 + $0x4c] sm:$0xf]
      %v2471 = vld [vmem:[%s636 + $0x50] sm:$0xf]
      %v2472 = vld [vmem:[%s636 + $0x54] sm:$0xf]
      %v2473 = vld [vmem:[%s636 + $0x58] sm:$0xf]
      %v2474 = vld [vmem:[%s636 + $0x5c] sm:$0xf]
      %v2475 = vld [vmem:[%s636 + $0x60] sm:$0xf]
      %v2476 = vld [vmem:[%s636 + $0x64] sm:$0xf]
      %v2477 = vld [vmem:[%s636 + $0x68] sm:$0xf]
      %v2478 = vld [vmem:[%s636 + $0x6c] sm:$0xf]
      %v2479 = vld [vmem:[%s636 + $0x70] sm:$0xf]
      %v2480 = vld [vmem:[%s636 + $0x74] sm:$0xf]
      %v2481 = vld [vmem:[%s636 + $0x78] sm:$0xf]
      %v2482 = vld [vmem:[%s636 + $0x7c] sm:$0xf]
      %v2483 = vld [vmem:[%s8] sm:$0xf]
      %v2484 = vld [vmem:[%s8 + $0x4] sm:$0xf]
      %v2485 = vld [vmem:[%s8 + $0x8] sm:$0xf]
      %v2486 = vld [vmem:[%s8 + $0xc] sm:$0xf]
      %v2487 = vld [vmem:[%s8 + $0x10] sm:$0xf]
      %v2488 = vld [vmem:[%s8 + $0x14] sm:$0xf]
      %v2489 = vld [vmem:[%s8 + $0x18] sm:$0xf]
      %v2490 = vld [vmem:[%s8 + $0x1c] sm:$0xf]
      %v2491 = vld [vmem:[%s8 + $0x20] sm:$0xf]
      %v2492 = vld [vmem:[%s8 + $0x24] sm:$0xf]
      %v2493 = vld [vmem:[%s8 + $0x28] sm:$0xf]
      %v2494 = vld [vmem:[%s8 + $0x2c] sm:$0xf]
      %v2495 = vld [vmem:[%s8 + $0x30] sm:$0xf]
      %v2496 = vld [vmem:[%s8 + $0x34] sm:$0xf]
      %v2497 = vld [vmem:[%s8 + $0x38] sm:$0xf]
      %v2498 = vld [vmem:[%s8 + $0x3c] sm:$0xf]
      %v2531 = vunpack.c.l.b16 %v2451
      %v2532 = vunpack.c.l.b16 %v2452
      %v2533 = vunpack.c.l.b16 %v2453
      %v2534 = vunpack.c.l.b16 %v2454
      %v2535 = vunpack.c.l.b16 %v2455
      %v2536 = vunpack.c.l.b16 %v2456
      %v2537 = vunpack.c.l.b16 %v2457
      %v2538 = vunpack.c.l.b16 %v2458
      %v2539 = vunpack.c.l.b16 %v2459
      %v2540 = vunpack.c.l.b16 %v2460
      %v2541 = vunpack.c.l.b16 %v2461
      %v2542 = vunpack.c.l.b16 %v2462
      %v2543 = vunpack.c.l.b16 %v2463
      %v2544 = vunpack.c.l.b16 %v2464
      %v2545 = vunpack.c.l.b16 %v2465
      %v2546 = vunpack.c.l.b16 %v2466
      %v2547 = vunpack.c.l.b16 %v2467
      %v2548 = vunpack.c.l.b16 %v2468
      %v2549 = vunpack.c.l.b16 %v2469
      %v2550 = vunpack.c.l.b16 %v2470
      %v2551 = vunpack.c.l.b16 %v2471
      %v2552 = vunpack.c.l.b16 %v2472
      %v2553 = vunpack.c.l.b16 %v2473
      %v2554 = vunpack.c.l.b16 %v2474
      %v2555 = vunpack.c.l.b16 %v2475
      %v2556 = vunpack.c.l.b16 %v2476
      %v2557 = vunpack.c.l.b16 %v2477
      %v2558 = vunpack.c.l.b16 %v2478
      %v2559 = vunpack.c.l.b16 %v2479
      %v2560 = vunpack.c.l.b16 %v2480
      %v2561 = vunpack.c.l.b16 %v2481
      %v2562 = vunpack.c.l.b16 %v2482
      %v2563 = vpack.c.b16 %v2532, %v2531
      %v2564 = vpack.c.b16 %v2534, %v2533
      %v2565 = vpack.c.b16 %v2536, %v2535
      %v2566 = vpack.c.b16 %v2538, %v2537
      %v2567 = vpack.c.b16 %v2540, %v2539
      %v2568 = vpack.c.b16 %v2542, %v2541
      %v2569 = vpack.c.b16 %v2544, %v2543
      %v2570 = vpack.c.b16 %v2546, %v2545
      %v2571 = vpack.c.b16 %v2548, %v2547
      %v2572 = vpack.c.b16 %v2550, %v2549
      %v2573 = vpack.c.b16 %v2552, %v2551
      %v2574 = vpack.c.b16 %v2554, %v2553
      %v2575 = vpack.c.b16 %v2556, %v2555
      %v2576 = vpack.c.b16 %v2558, %v2557
      %v2577 = vpack.c.b16 %v2560, %v2559
      %v2578 = vpack.c.b16 %v2562, %v2561
      %v2611 = vunpack.c.l.b16 %v2483
      %v2612 = vunpack.c.l.b16 %v2484
      %v2613 = vunpack.c.l.b16 %v2485
      %v2614 = vunpack.c.l.b16 %v2486
      %v2615 = vunpack.c.l.b16 %v2487
      %v2616 = vunpack.c.l.b16 %v2488
      %v2617 = vunpack.c.l.b16 %v2489
      %v2618 = vunpack.c.l.b16 %v2490
      %v2619 = vunpack.c.l.b16 %v2491
      %v2620 = vunpack.c.l.b16 %v2492
      %v2621 = vunpack.c.l.b16 %v2493
      %v2622 = vunpack.c.l.b16 %v2494
      %v2623 = vunpack.c.l.b16 %v2495
      %v2624 = vunpack.c.l.b16 %v2496
      %v2625 = vunpack.c.l.b16 %v2497
      %v2626 = vunpack.c.l.b16 %v2498
      %v2627 = vpack.c.b16 %v2612, %v2611
      %v2628 = vpack.c.b16 %v2614, %v2613
      %v2629 = vpack.c.b16 %v2616, %v2615
      %v2630 = vpack.c.b16 %v2618, %v2617
      %v2631 = vpack.c.b16 %v2620, %v2619
      %v2632 = vpack.c.b16 %v2622, %v2621
      %v2633 = vpack.c.b16 %v2624, %v2623
      %v2634 = vpack.c.b16 %v2626, %v2625
      %2643 = vmatpush.bf16.msra.mxu0 %v2634
      %2644 = vmatpush.bf16.msra.mxu0 %v2633
      %2645 = vmatpush.bf16.msra.mxu0 %v2632
      %2646 = vmatpush.bf16.msra.mxu0 %v2631
      %2647 = vmatpush.bf16.msra.mxu0 %v2630
      %2648 = vmatpush.bf16.msra.mxu0 %v2629
      %2649 = vmatpush.bf16.msra.mxu0 %v2628
      %2650 = vmatpush.bf16.msra.mxu0 %v2627
      %2651 = vmatmul.bf16.gmra.mxu0 %v2563
      %v2652 = vpop.f32.mrf.mxu0
      %v2653 = vadd.f32 0.0, %v2652
      %v2654 = vpop.f32.mrf.mxu0
      %v2655 = vadd.f32 0.0, %v2654
      %2656 = vmatmul.bf16.gmra.mxu0 %v2564
      %v2657 = vpop.f32.mrf.mxu0
      %v2658 = vadd.f32 0.0, %v2657
      %v2659 = vpop.f32.mrf.mxu0
      %v2660 = vadd.f32 0.0, %v2659
      %2661 = vmatmul.bf16.gmra.mxu0 %v2565
      %v2662 = vpop.f32.mrf.mxu0
      %v2663 = vadd.f32 0.0, %v2662
      %v2664 = vpop.f32.mrf.mxu0
      %v2665 = vadd.f32 0.0, %v2664
      %2666 = vmatmul.bf16.gmra.mxu0 %v2566
      %v2667 = vpop.f32.mrf.mxu0
      %v2668 = vadd.f32 0.0, %v2667
      %v2669 = vpop.f32.mrf.mxu0
      %v2670 = vadd.f32 0.0, %v2669
      %2671 = vmatmul.bf16.gmra.mxu0 %v2567
      %v2672 = vpop.f32.mrf.mxu0
      %v2673 = vadd.f32 0.0, %v2672
      %v2674 = vpop.f32.mrf.mxu0
      %v2675 = vadd.f32 0.0, %v2674
      %2676 = vmatmul.bf16.gmra.mxu0 %v2568
      %v2677 = vpop.f32.mrf.mxu0
      %v2678 = vadd.f32 0.0, %v2677
      %v2679 = vpop.f32.mrf.mxu0
      %v2680 = vadd.f32 0.0, %v2679
      %2681 = vmatmul.bf16.gmra.mxu0 %v2569
      %v2682 = vpop.f32.mrf.mxu0
      %v2683 = vadd.f32 0.0, %v2682
      %v2684 = vpop.f32.mrf.mxu0
      %v2685 = vadd.f32 0.0, %v2684
      %2686 = vmatmul.bf16.gmra.mxu0 %v2570
      %v2687 = vpop.f32.mrf.mxu0
      %v2688 = vadd.f32 0.0, %v2687
      %v2689 = vpop.f32.mrf.mxu0
      %v2690 = vadd.f32 0.0, %v2689
      %2691 = vmatmul.bf16.gmra.mxu0 %v2571
      %v2692 = vpop.f32.mrf.mxu0
      %v2693 = vadd.f32 0.0, %v2692
      %v2694 = vpop.f32.mrf.mxu0
      %v2695 = vadd.f32 0.0, %v2694
      %2696 = vmatmul.bf16.gmra.mxu0 %v2572
      %v2697 = vpop.f32.mrf.mxu0
      %v2698 = vadd.f32 0.0, %v2697
      %v2699 = vpop.f32.mrf.mxu0
      %v2700 = vadd.f32 0.0, %v2699
      %2701 = vmatmul.bf16.gmra.mxu0 %v2573
      %v2702 = vpop.f32.mrf.mxu0
      %v2703 = vadd.f32 0.0, %v2702
      %v2704 = vpop.f32.mrf.mxu0
      %v2705 = vadd.f32 0.0, %v2704
      %2706 = vmatmul.bf16.gmra.mxu0 %v2574
      %v2707 = vpop.f32.mrf.mxu0
      %v2708 = vadd.f32 0.0, %v2707
      %v2709 = vpop.f32.mrf.mxu0
      %v2710 = vadd.f32 0.0, %v2709
      %2711 = vmatmul.bf16.gmra.mxu0 %v2575
      %v2712 = vpop.f32.mrf.mxu0
      %v2713 = vadd.f32 0.0, %v2712
      %v2714 = vpop.f32.mrf.mxu0
      %v2715 = vadd.f32 0.0, %v2714
      %2716 = vmatmul.bf16.gmra.mxu0 %v2576
      %v2717 = vpop.f32.mrf.mxu0
      %v2718 = vadd.f32 0.0, %v2717
      %v2719 = vpop.f32.mrf.mxu0
      %v2720 = vadd.f32 0.0, %v2719
      %2721 = vmatmul.bf16.gmra.mxu0 %v2577
      %v2722 = vpop.f32.mrf.mxu0
      %v2723 = vadd.f32 0.0, %v2722
      %v2724 = vpop.f32.mrf.mxu0
      %v2725 = vadd.f32 0.0, %v2724
      %2726 = vmatmul.bf16.gmra.mxu0 %v2578
      %v2727 = vpop.f32.mrf.mxu0
      %v2728 = vadd.f32 0.0, %v2727
      %v2729 = vpop.f32.mrf.mxu0
      %v2730 = vadd.f32 0.0, %v2729
      %2731 = vdwg.mxu0
      %v2764 = vunpack.c.l.b16 %v2403
      %v2765 = vunpack.c.l.b16 %v2404
      %v2766 = vunpack.c.l.b16 %v2405
      %v2767 = vunpack.c.l.b16 %v2406
      %v2768 = vunpack.c.l.b16 %v2407
      %v2769 = vunpack.c.l.b16 %v2408
      %v2770 = vunpack.c.l.b16 %v2409
      %v2771 = vunpack.c.l.b16 %v2410
      %v2772 = vunpack.c.l.b16 %v2411
      %v2773 = vunpack.c.l.b16 %v2412
      %v2774 = vunpack.c.l.b16 %v2413
      %v2775 = vunpack.c.l.b16 %v2414
      %v2776 = vunpack.c.l.b16 %v2415
      %v2777 = vunpack.c.l.b16 %v2416
      %v2778 = vunpack.c.l.b16 %v2417
      %v2779 = vunpack.c.l.b16 %v2418
      %v2780 = vunpack.c.l.b16 %v2419
      %v2781 = vunpack.c.l.b16 %v2420
      %v2782 = vunpack.c.l.b16 %v2421
      %v2783 = vunpack.c.l.b16 %v2422
      %v2784 = vunpack.c.l.b16 %v2423
      %v2785 = vunpack.c.l.b16 %v2424
      %v2786 = vunpack.c.l.b16 %v2425
      %v2787 = vunpack.c.l.b16 %v2426
      %v2788 = vunpack.c.l.b16 %v2427
      %v2789 = vunpack.c.l.b16 %v2428
      %v2790 = vunpack.c.l.b16 %v2429
      %v2791 = vunpack.c.l.b16 %v2430
      %v2792 = vunpack.c.l.b16 %v2431
      %v2793 = vunpack.c.l.b16 %v2432
      %v2794 = vunpack.c.l.b16 %v2433
      %v2795 = vunpack.c.l.b16 %v2434
      %v2796 = vpack.c.b16 %v2765, %v2764
      %v2797 = vpack.c.b16 %v2767, %v2766
      %v2798 = vpack.c.b16 %v2769, %v2768
      %v2799 = vpack.c.b16 %v2771, %v2770
      %v2800 = vpack.c.b16 %v2773, %v2772
      %v2801 = vpack.c.b16 %v2775, %v2774
      %v2802 = vpack.c.b16 %v2777, %v2776
      %v2803 = vpack.c.b16 %v2779, %v2778
      %v2804 = vpack.c.b16 %v2781, %v2780
      %v2805 = vpack.c.b16 %v2783, %v2782
      %v2806 = vpack.c.b16 %v2785, %v2784
      %v2807 = vpack.c.b16 %v2787, %v2786
      %v2808 = vpack.c.b16 %v2789, %v2788
      %v2809 = vpack.c.b16 %v2791, %v2790
      %v2810 = vpack.c.b16 %v2793, %v2792
      %v2811 = vpack.c.b16 %v2795, %v2794
      %v2844 = vunpack.c.l.b16 %v2435
      %v2845 = vunpack.c.l.b16 %v2436
      %v2846 = vunpack.c.l.b16 %v2437
      %v2847 = vunpack.c.l.b16 %v2438
      %v2848 = vunpack.c.l.b16 %v2439
      %v2849 = vunpack.c.l.b16 %v2440
      %v2850 = vunpack.c.l.b16 %v2441
      %v2851 = vunpack.c.l.b16 %v2442
      %v2852 = vunpack.c.l.b16 %v2443
      %v2853 = vunpack.c.l.b16 %v2444
      %v2854 = vunpack.c.l.b16 %v2445
      %v2855 = vunpack.c.l.b16 %v2446
      %v2856 = vunpack.c.l.b16 %v2447
      %v2857 = vunpack.c.l.b16 %v2448
      %v2858 = vunpack.c.l.b16 %v2449
      %v2859 = vunpack.c.l.b16 %v2450
      %v2860 = vpack.c.b16 %v2845, %v2844
      %v2861 = vpack.c.b16 %v2847, %v2846
      %v2862 = vpack.c.b16 %v2849, %v2848
      %v2863 = vpack.c.b16 %v2851, %v2850
      %v2864 = vpack.c.b16 %v2853, %v2852
      %v2865 = vpack.c.b16 %v2855, %v2854
      %v2866 = vpack.c.b16 %v2857, %v2856
      %v2867 = vpack.c.b16 %v2859, %v2858
      %2876 = vmatpush.bf16.msra.mxu0 %v2867
      %2877 = vmatpush.bf16.msra.mxu0 %v2866
      %2878 = vmatpush.bf16.msra.mxu0 %v2865
      %2879 = vmatpush.bf16.msra.mxu0 %v2864
      %2880 = vmatpush.bf16.msra.mxu0 %v2863
      %2881 = vmatpush.bf16.msra.mxu0 %v2862
      %2882 = vmatpush.bf16.msra.mxu0 %v2861
      %2883 = vmatpush.bf16.msra.mxu0 %v2860
      %2884 = vmatmul.bf16.gmra.mxu0 %v2796
      %v2885 = vpop.f32.mrf.mxu0
      %v2886 = vadd.f32 %v2653, %v2885
      %v2887 = vpop.f32.mrf.mxu0
      %v2888 = vadd.f32 %v2655, %v2887
      %2889 = vmatmul.bf16.gmra.mxu0 %v2797
      %v2890 = vpop.f32.mrf.mxu0
      %v2891 = vadd.f32 %v2658, %v2890
      %v2892 = vpop.f32.mrf.mxu0
      %v2893 = vadd.f32 %v2660, %v2892
      %2894 = vmatmul.bf16.gmra.mxu0 %v2798
      %v2895 = vpop.f32.mrf.mxu0
      %v2896 = vadd.f32 %v2663, %v2895
      %v2897 = vpop.f32.mrf.mxu0
      %v2898 = vadd.f32 %v2665, %v2897
      %2899 = vmatmul.bf16.gmra.mxu0 %v2799
      %v2900 = vpop.f32.mrf.mxu0
      %v2901 = vadd.f32 %v2668, %v2900
      %v2902 = vpop.f32.mrf.mxu0
      %v2903 = vadd.f32 %v2670, %v2902
      %2904 = vmatmul.bf16.gmra.mxu0 %v2800
      %v2905 = vpop.f32.mrf.mxu0
      %v2906 = vadd.f32 %v2673, %v2905
      %v2907 = vpop.f32.mrf.mxu0
      %v2908 = vadd.f32 %v2675, %v2907
      %2909 = vmatmul.bf16.gmra.mxu0 %v2801
      %v2910 = vpop.f32.mrf.mxu0
      %v2911 = vadd.f32 %v2678, %v2910
      %v2912 = vpop.f32.mrf.mxu0
      %v2913 = vadd.f32 %v2680, %v2912
      %2914 = vmatmul.bf16.gmra.mxu0 %v2802
      %v2915 = vpop.f32.mrf.mxu0
      %v2916 = vadd.f32 %v2683, %v2915
      %v2917 = vpop.f32.mrf.mxu0
      %v2918 = vadd.f32 %v2685, %v2917
      %2919 = vmatmul.bf16.gmra.mxu0 %v2803
      %v2920 = vpop.f32.mrf.mxu0
      %v2921 = vadd.f32 %v2688, %v2920
      %v2922 = vpop.f32.mrf.mxu0
      %v2923 = vadd.f32 %v2690, %v2922
      %2924 = vmatmul.bf16.gmra.mxu0 %v2804
      %v2925 = vpop.f32.mrf.mxu0
      %v2926 = vadd.f32 %v2693, %v2925
      %v2927 = vpop.f32.mrf.mxu0
      %v2928 = vadd.f32 %v2695, %v2927
      %2929 = vmatmul.bf16.gmra.mxu0 %v2805
      %v2930 = vpop.f32.mrf.mxu0
      %v2931 = vadd.f32 %v2698, %v2930
      %v2932 = vpop.f32.mrf.mxu0
      %v2933 = vadd.f32 %v2700, %v2932
      %2934 = vmatmul.bf16.gmra.mxu0 %v2806
      %v2935 = vpop.f32.mrf.mxu0
      %v2936 = vadd.f32 %v2703, %v2935
      %v2937 = vpop.f32.mrf.mxu0
      %v2938 = vadd.f32 %v2705, %v2937
      %2939 = vmatmul.bf16.gmra.mxu0 %v2807
      %v2940 = vpop.f32.mrf.mxu0
      %v2941 = vadd.f32 %v2708, %v2940
      %v2942 = vpop.f32.mrf.mxu0
      %v2943 = vadd.f32 %v2710, %v2942
      %2944 = vmatmul.bf16.gmra.mxu0 %v2808
      %v2945 = vpop.f32.mrf.mxu0
      %v2946 = vadd.f32 %v2713, %v2945
      %v2947 = vpop.f32.mrf.mxu0
      %v2948 = vadd.f32 %v2715, %v2947
      %2949 = vmatmul.bf16.gmra.mxu0 %v2809
      %v2950 = vpop.f32.mrf.mxu0
      %v2951 = vadd.f32 %v2718, %v2950
      %v2952 = vpop.f32.mrf.mxu0
      %v2953 = vadd.f32 %v2720, %v2952
      %2954 = vmatmul.bf16.gmra.mxu0 %v2810
      %v2955 = vpop.f32.mrf.mxu0
      %v2956 = vadd.f32 %v2723, %v2955
      %v2957 = vpop.f32.mrf.mxu0
      %v2958 = vadd.f32 %v2725, %v2957
      %2959 = vmatmul.bf16.gmra.mxu0 %v2811
      %v2960 = vpop.f32.mrf.mxu0
      %v2961 = vadd.f32 %v2728, %v2960
      %v2962 = vpop.f32.mrf.mxu0
      %v2963 = vadd.f32 %v2730, %v2962
      %2964 = vdwg.mxu0
      %v2965 = vld [vmem:[%s13] sm:$0x1]
      %v2967 = vperm.slane %v2965, 0
      %v2969 = vadd.f32 %v2886, %v2967
      %v2970 = vadd.f32 %v2888, %v2967
      %v2971 = vadd.f32 %v2891, %v2967
      %v2972 = vadd.f32 %v2893, %v2967
      %v2973 = vadd.f32 %v2896, %v2967
      %v2974 = vadd.f32 %v2898, %v2967
      %v2975 = vadd.f32 %v2901, %v2967
      %v2976 = vadd.f32 %v2903, %v2967
      %v2977 = vadd.f32 %v2906, %v2967
      %v2978 = vadd.f32 %v2908, %v2967
      %v2979 = vadd.f32 %v2911, %v2967
      %v2980 = vadd.f32 %v2913, %v2967
      %v2981 = vadd.f32 %v2916, %v2967
      %v2982 = vadd.f32 %v2918, %v2967
      %v2983 = vadd.f32 %v2921, %v2967
      %v2984 = vadd.f32 %v2923, %v2967
      %v2985 = vadd.f32 %v2926, %v2967
      %v2986 = vadd.f32 %v2928, %v2967
      %v2987 = vadd.f32 %v2931, %v2967
      %v2988 = vadd.f32 %v2933, %v2967
      %v2989 = vadd.f32 %v2936, %v2967
      %v2990 = vadd.f32 %v2938, %v2967
      %v2991 = vadd.f32 %v2941, %v2967
      %v2992 = vadd.f32 %v2943, %v2967
      %v2993 = vadd.f32 %v2946, %v2967
      %v2994 = vadd.f32 %v2948, %v2967
      %v2995 = vadd.f32 %v2951, %v2967
      %v2996 = vadd.f32 %v2953, %v2967
      %v2997 = vadd.f32 %v2956, %v2967
      %v2998 = vadd.f32 %v2958, %v2967
      %v2999 = vadd.f32 %v2961, %v2967
      %v3000 = vadd.f32 %v2963, %v2967
      %v3001 = vmax.f32 %v2969, 0.0
      %v3002 = vmax.f32 %v2970, 0.0
      %v3003 = vmax.f32 %v2971, 0.0
      %v3004 = vmax.f32 %v2972, 0.0
      %v3005 = vmax.f32 %v2973, 0.0
      %v3006 = vmax.f32 %v2974, 0.0
      %v3007 = vmax.f32 %v2975, 0.0
      %v3008 = vmax.f32 %v2976, 0.0
      %v3009 = vmax.f32 %v2977, 0.0
      %v3010 = vmax.f32 %v2978, 0.0
      %v3011 = vmax.f32 %v2979, 0.0
      %v3012 = vmax.f32 %v2980, 0.0
      %v3013 = vmax.f32 %v2981, 0.0
      %v3014 = vmax.f32 %v2982, 0.0
      %v3015 = vmax.f32 %v2983, 0.0
      %v3016 = vmax.f32 %v2984, 0.0
      %v3017 = vmax.f32 %v2985, 0.0
      %v3018 = vmax.f32 %v2986, 0.0
      %v3019 = vmax.f32 %v2987, 0.0
      %v3020 = vmax.f32 %v2988, 0.0
      %v3021 = vmax.f32 %v2989, 0.0
      %v3022 = vmax.f32 %v2990, 0.0
      %v3023 = vmax.f32 %v2991, 0.0
      %v3024 = vmax.f32 %v2992, 0.0
      %v3025 = vmax.f32 %v2993, 0.0
      %v3026 = vmax.f32 %v2994, 0.0
      %v3027 = vmax.f32 %v2995, 0.0
      %v3028 = vmax.f32 %v2996, 0.0
      %v3029 = vmax.f32 %v2997, 0.0
      %v3030 = vmax.f32 %v2998, 0.0
      %v3031 = vmax.f32 %v2999, 0.0
      %v3032 = vmax.f32 %v3000, 0.0
      %v3033 = vpack.c.bf16 %v3002, %v3001
      %v3034 = vpack.c.bf16 %v3004, %v3003
      %v3035 = vpack.c.bf16 %v3006, %v3005
      %v3036 = vpack.c.bf16 %v3008, %v3007
      %v3037 = vpack.c.bf16 %v3010, %v3009
      %v3038 = vpack.c.bf16 %v3012, %v3011
      %v3039 = vpack.c.bf16 %v3014, %v3013
      %v3040 = vpack.c.bf16 %v3016, %v3015
      %v3041 = vpack.c.bf16 %v3018, %v3017
      %v3042 = vpack.c.bf16 %v3020, %v3019
      %v3043 = vpack.c.bf16 %v3022, %v3021
      %v3044 = vpack.c.bf16 %v3024, %v3023
      %v3045 = vpack.c.bf16 %v3026, %v3025
      %v3046 = vpack.c.bf16 %v3028, %v3027
      %v3047 = vpack.c.bf16 %v3030, %v3029
      %v3048 = vpack.c.bf16 %v3032, %v3031
      %v3049 = vld [vmem:[%s14] sm:$0xf]
      %v3050 = vld [vmem:[%s14 + $0x4] sm:$0xf]
      %v3051 = vld [vmem:[%s14 + $0x8] sm:$0xf]
      %v3052 = vld [vmem:[%s14 + $0xc] sm:$0xf]
      %v3053 = vld [vmem:[%s14 + $0x10] sm:$0xf]
      %v3054 = vld [vmem:[%s14 + $0x14] sm:$0xf]
      %v3055 = vld [vmem:[%s14 + $0x18] sm:$0xf]
      %v3056 = vld [vmem:[%s14 + $0x1c] sm:$0xf]
      %v3057 = vld [vmem:[%s14 + $0x20] sm:$0xf]
      %v3058 = vld [vmem:[%s14 + $0x24] sm:$0xf]
      %v3059 = vld [vmem:[%s14 + $0x28] sm:$0xf]
      %v3060 = vld [vmem:[%s14 + $0x2c] sm:$0xf]
      %v3061 = vld [vmem:[%s14 + $0x30] sm:$0xf]
      %v3062 = vld [vmem:[%s14 + $0x34] sm:$0xf]
      %v3063 = vld [vmem:[%s14 + $0x38] sm:$0xf]
      %v3064 = vld [vmem:[%s14 + $0x3c] sm:$0xf]
      %v3065 = vld [vmem:[%s15] sm:$0x1]
      %v3067 = vperm.slane %v3065, 0
      %v3085 = vunpack.c.l.b16 %v3049
      %v3086 = vunpack.c.l.b16 %v3050
      %v3087 = vunpack.c.l.b16 %v3051
      %v3088 = vunpack.c.l.b16 %v3052
      %v3089 = vunpack.c.l.b16 %v3053
      %v3090 = vunpack.c.l.b16 %v3054
      %v3091 = vunpack.c.l.b16 %v3055
      %v3092 = vunpack.c.l.b16 %v3056
      %v3093 = vunpack.c.l.b16 %v3057
      %v3094 = vunpack.c.l.b16 %v3058
      %v3095 = vunpack.c.l.b16 %v3059
      %v3096 = vunpack.c.l.b16 %v3060
      %v3097 = vunpack.c.l.b16 %v3061
      %v3098 = vunpack.c.l.b16 %v3062
      %v3099 = vunpack.c.l.b16 %v3063
      %v3100 = vunpack.c.l.b16 %v3064
      %v3101 = vpack.c.b16 %v3086, %v3085
      %v3102 = vpack.c.b16 %v3088, %v3087
      %v3103 = vpack.c.b16 %v3090, %v3089
      %v3104 = vpack.c.b16 %v3092, %v3091
      %v3105 = vpack.c.b16 %v3094, %v3093
      %v3106 = vpack.c.b16 %v3096, %v3095
      %v3107 = vpack.c.b16 %v3098, %v3097
      %v3108 = vpack.c.b16 %v3100, %v3099
      %3117 = vmatpush.bf16.msra.mxu0 %v3108
      %3118 = vmatpush.bf16.msra.mxu0 %v3107
      %3119 = vmatpush.bf16.msra.mxu0 %v3106
      %3120 = vmatpush.bf16.msra.mxu0 %v3105
      %3121 = vmatpush.bf16.msra.mxu0 %v3104
      %3122 = vmatpush.bf16.msra.mxu0 %v3103
      %3123 = vmatpush.bf16.msra.mxu0 %v3102
      %3124 = vmatpush.bf16.msra.mxu0 %v3101
      %3125 = vmatmul.bf16.gmra.mxu0 %v3033
      %v3126 = vpop.f32.mrf.mxu0
      %v3127 = vadd.f32 %v3067, %v3126
      %v3128 = vpop.f32.mrf.mxu0
      %v3129 = vadd.f32 %v3067, %v3128
      %3130 = vmatmul.bf16.gmra.mxu0 %v3034
      %v3131 = vpop.f32.mrf.mxu0
      %v3132 = vadd.f32 %v3067, %v3131
      %v3133 = vpop.f32.mrf.mxu0
      %v3134 = vadd.f32 %v3067, %v3133
      %3135 = vmatmul.bf16.gmra.mxu0 %v3035
      %v3136 = vpop.f32.mrf.mxu0
      %v3137 = vadd.f32 %v3067, %v3136
      %v3138 = vpop.f32.mrf.mxu0
      %v3139 = vadd.f32 %v3067, %v3138
      %3140 = vmatmul.bf16.gmra.mxu0 %v3036
      %v3141 = vpop.f32.mrf.mxu0
      %v3142 = vadd.f32 %v3067, %v3141
      %v3143 = vpop.f32.mrf.mxu0
      %v3144 = vadd.f32 %v3067, %v3143
      %3145 = vmatmul.bf16.gmra.mxu0 %v3037
      %v3146 = vpop.f32.mrf.mxu0
      %v3147 = vadd.f32 %v3067, %v3146
      %v3148 = vpop.f32.mrf.mxu0
      %v3149 = vadd.f32 %v3067, %v3148
      %3150 = vmatmul.bf16.gmra.mxu0 %v3038
      %v3151 = vpop.f32.mrf.mxu0
      %v3152 = vadd.f32 %v3067, %v3151
      %v3153 = vpop.f32.mrf.mxu0
      %v3154 = vadd.f32 %v3067, %v3153
      %3155 = vmatmul.bf16.gmra.mxu0 %v3039
      %v3156 = vpop.f32.mrf.mxu0
      %v3157 = vadd.f32 %v3067, %v3156
      %v3158 = vpop.f32.mrf.mxu0
      %v3159 = vadd.f32 %v3067, %v3158
      %3160 = vmatmul.bf16.gmra.mxu0 %v3040
      %v3161 = vpop.f32.mrf.mxu0
      %v3162 = vadd.f32 %v3067, %v3161
      %v3163 = vpop.f32.mrf.mxu0
      %v3164 = vadd.f32 %v3067, %v3163
      %3165 = vmatmul.bf16.gmra.mxu0 %v3041
      %v3166 = vpop.f32.mrf.mxu0
      %v3167 = vadd.f32 %v3067, %v3166
      %v3168 = vpop.f32.mrf.mxu0
      %v3169 = vadd.f32 %v3067, %v3168
      %3170 = vmatmul.bf16.gmra.mxu0 %v3042
      %v3171 = vpop.f32.mrf.mxu0
      %v3172 = vadd.f32 %v3067, %v3171
      %v3173 = vpop.f32.mrf.mxu0
      %v3174 = vadd.f32 %v3067, %v3173
      %3175 = vmatmul.bf16.gmra.mxu0 %v3043
      %v3176 = vpop.f32.mrf.mxu0
      %v3177 = vadd.f32 %v3067, %v3176
      %v3178 = vpop.f32.mrf.mxu0
      %v3179 = vadd.f32 %v3067, %v3178
      %3180 = vmatmul.bf16.gmra.mxu0 %v3044
      %v3181 = vpop.f32.mrf.mxu0
      %v3182 = vadd.f32 %v3067, %v3181
      %v3183 = vpop.f32.mrf.mxu0
      %v3184 = vadd.f32 %v3067, %v3183
      %3185 = vmatmul.bf16.gmra.mxu0 %v3045
      %v3186 = vpop.f32.mrf.mxu0
      %v3187 = vadd.f32 %v3067, %v3186
      %v3188 = vpop.f32.mrf.mxu0
      %v3189 = vadd.f32 %v3067, %v3188
      %3190 = vmatmul.bf16.gmra.mxu0 %v3046
      %v3191 = vpop.f32.mrf.mxu0
      %v3192 = vadd.f32 %v3067, %v3191
      %v3193 = vpop.f32.mrf.mxu0
      %v3194 = vadd.f32 %v3067, %v3193
      %3195 = vmatmul.bf16.gmra.mxu0 %v3047
      %v3196 = vpop.f32.mrf.mxu0
      %v3197 = vadd.f32 %v3067, %v3196
      %v3198 = vpop.f32.mrf.mxu0
      %v3199 = vadd.f32 %v3067, %v3198
      %3200 = vmatmul.bf16.gmra.mxu0 %v3048
      %v3201 = vpop.f32.mrf.mxu0
      %v3202 = vadd.f32 %v3067, %v3201
      %v3203 = vpop.f32.mrf.mxu0
      %v3204 = vadd.f32 %v3067, %v3203
      %3205 = vdwg.mxu0
      %v3206 = vmax.f32 %v3127, 0.0
      %v3207 = vmax.f32 %v3129, 0.0
      %v3208 = vmax.f32 %v3132, 0.0
      %v3209 = vmax.f32 %v3134, 0.0
      %v3210 = vmax.f32 %v3137, 0.0
      %v3211 = vmax.f32 %v3139, 0.0
      %v3212 = vmax.f32 %v3142, 0.0
      %v3213 = vmax.f32 %v3144, 0.0
      %v3214 = vmax.f32 %v3147, 0.0
      %v3215 = vmax.f32 %v3149, 0.0
      %v3216 = vmax.f32 %v3152, 0.0
      %v3217 = vmax.f32 %v3154, 0.0
      %v3218 = vmax.f32 %v3157, 0.0
      %v3219 = vmax.f32 %v3159, 0.0
      %v3220 = vmax.f32 %v3162, 0.0
      %v3221 = vmax.f32 %v3164, 0.0
      %v3222 = vmax.f32 %v3167, 0.0
      %v3223 = vmax.f32 %v3169, 0.0
      %v3224 = vmax.f32 %v3172, 0.0
      %v3225 = vmax.f32 %v3174, 0.0
      %v3226 = vmax.f32 %v3177, 0.0
      %v3227 = vmax.f32 %v3179, 0.0
      %v3228 = vmax.f32 %v3182, 0.0
      %v3229 = vmax.f32 %v3184, 0.0
      %v3230 = vmax.f32 %v3187, 0.0
      %v3231 = vmax.f32 %v3189, 0.0
      %v3232 = vmax.f32 %v3192, 0.0
      %v3233 = vmax.f32 %v3194, 0.0
      %v3234 = vmax.f32 %v3197, 0.0
      %v3235 = vmax.f32 %v3199, 0.0
      %v3236 = vmax.f32 %v3202, 0.0
      %v3237 = vmax.f32 %v3204, 0.0
      %3238 = vst [vmem:[%s667 + $0x10] sm:$0xff] %v3206
      %3239 = vst [vmem:[%s667 + $0x30] sm:$0xff] %v3207
      %3240 = vst [vmem:[%s667 + $0x50] sm:$0xff] %v3208
      %3241 = vst [vmem:[%s667 + $0x70] sm:$0xff] %v3209
      %3242 = vst [vmem:[%s667 + $0x90] sm:$0xff] %v3210
      %3243 = vst [vmem:[%s667 + $0xb0] sm:$0xff] %v3211
      %3244 = vst [vmem:[%s667 + $0xd0] sm:$0xff] %v3212
      %3245 = vst [vmem:[%s667 + $0xf0] sm:$0xff] %v3213
      %3246 = vst [vmem:[%s667 + $0x110] sm:$0xff] %v3214
      %3247 = vst [vmem:[%s667 + $0x130] sm:$0xff] %v3215
      %3248 = vst [vmem:[%s667 + $0x150] sm:$0xff] %v3216
      %3249 = vst [vmem:[%s667 + $0x170] sm:$0xff] %v3217
      %3250 = vst [vmem:[%s667 + $0x190] sm:$0xff] %v3218
      %3251 = vst [vmem:[%s667 + $0x1b0] sm:$0xff] %v3219
      %3252 = vst [vmem:[%s667 + $0x1d0] sm:$0xff] %v3220
      %3253 = vst [vmem:[%s667 + $0x1f0] sm:$0xff] %v3221
      %3254 = vst [vmem:[%s667 + $0x210] sm:$0xff] %v3222
      %3255 = vst [vmem:[%s667 + $0x230] sm:$0xff] %v3223
      %3256 = vst [vmem:[%s667 + $0x250] sm:$0xff] %v3224
      %3257 = vst [vmem:[%s667 + $0x270] sm:$0xff] %v3225
      %3258 = vst [vmem:[%s667 + $0x290] sm:$0xff] %v3226
      %3259 = vst [vmem:[%s667 + $0x2b0] sm:$0xff] %v3227
      %3260 = vst [vmem:[%s667 + $0x2d0] sm:$0xff] %v3228
      %3261 = vst [vmem:[%s667 + $0x2f0] sm:$0xff] %v3229
      %3262 = vst [vmem:[%s667 + $0x310] sm:$0xff] %v3230
      %3263 = vst [vmem:[%s667 + $0x330] sm:$0xff] %v3231
      %3264 = vst [vmem:[%s667 + $0x350] sm:$0xff] %v3232
      %3265 = vst [vmem:[%s667 + $0x370] sm:$0xff] %v3233
      %3266 = vst [vmem:[%s667 + $0x390] sm:$0xff] %v3234
      %3267 = vst [vmem:[%s667 + $0x3b0] sm:$0xff] %v3235
      %3268 = vst [vmem:[%s667 + $0x3d0] sm:$0xff] %v3236
      %3269 = vst [vmem:[%s667 + $0x3f0] sm:$0xff] %v3237
      %v3270 = vld [vmem:[%s654] sm:$0xf]
      %v3271 = vld [vmem:[%s654 + $0x4] sm:$0xf]
      %v3272 = vld [vmem:[%s654 + $0x8] sm:$0xf]
      %v3273 = vld [vmem:[%s654 + $0xc] sm:$0xf]
      %v3274 = vld [vmem:[%s654 + $0x10] sm:$0xf]
      %v3275 = vld [vmem:[%s654 + $0x14] sm:$0xf]
      %v3276 = vld [vmem:[%s654 + $0x18] sm:$0xf]
      %v3277 = vld [vmem:[%s654 + $0x1c] sm:$0xf]
      %v3278 = vld [vmem:[%s654 + $0x20] sm:$0xf]
      %v3279 = vld [vmem:[%s654 + $0x24] sm:$0xf]
      %v3280 = vld [vmem:[%s654 + $0x28] sm:$0xf]
      %v3281 = vld [vmem:[%s654 + $0x2c] sm:$0xf]
      %v3282 = vld [vmem:[%s654 + $0x30] sm:$0xf]
      %v3283 = vld [vmem:[%s654 + $0x34] sm:$0xf]
      %v3284 = vld [vmem:[%s654 + $0x38] sm:$0xf]
      %v3285 = vld [vmem:[%s654 + $0x3c] sm:$0xf]
      %v3286 = vld [vmem:[%s654 + $0x40] sm:$0xf]
      %v3287 = vld [vmem:[%s654 + $0x44] sm:$0xf]
      %v3288 = vld [vmem:[%s654 + $0x48] sm:$0xf]
      %v3289 = vld [vmem:[%s654 + $0x4c] sm:$0xf]
      %v3290 = vld [vmem:[%s654 + $0x50] sm:$0xf]
      %v3291 = vld [vmem:[%s654 + $0x54] sm:$0xf]
      %v3292 = vld [vmem:[%s654 + $0x58] sm:$0xf]
      %v3293 = vld [vmem:[%s654 + $0x5c] sm:$0xf]
      %v3294 = vld [vmem:[%s654 + $0x60] sm:$0xf]
      %v3295 = vld [vmem:[%s654 + $0x64] sm:$0xf]
      %v3296 = vld [vmem:[%s654 + $0x68] sm:$0xf]
      %v3297 = vld [vmem:[%s654 + $0x6c] sm:$0xf]
      %v3298 = vld [vmem:[%s654 + $0x70] sm:$0xf]
      %v3299 = vld [vmem:[%s654 + $0x74] sm:$0xf]
      %v3300 = vld [vmem:[%s654 + $0x78] sm:$0xf]
      %v3301 = vld [vmem:[%s654 + $0x7c] sm:$0xf]
      %v3302 = vld [vmem:[%s9] sm:$0xf]
      %v3303 = vld [vmem:[%s9 + $0x4] sm:$0xf]
      %v3304 = vld [vmem:[%s9 + $0x8] sm:$0xf]
      %v3305 = vld [vmem:[%s9 + $0xc] sm:$0xf]
      %v3306 = vld [vmem:[%s9 + $0x10] sm:$0xf]
      %v3307 = vld [vmem:[%s9 + $0x14] sm:$0xf]
      %v3308 = vld [vmem:[%s9 + $0x18] sm:$0xf]
      %v3309 = vld [vmem:[%s9 + $0x1c] sm:$0xf]
      %v3310 = vld [vmem:[%s9 + $0x20] sm:$0xf]
      %v3311 = vld [vmem:[%s9 + $0x24] sm:$0xf]
      %v3312 = vld [vmem:[%s9 + $0x28] sm:$0xf]
      %v3313 = vld [vmem:[%s9 + $0x2c] sm:$0xf]
      %v3314 = vld [vmem:[%s9 + $0x30] sm:$0xf]
      %v3315 = vld [vmem:[%s9 + $0x34] sm:$0xf]
      %v3316 = vld [vmem:[%s9 + $0x38] sm:$0xf]
      %v3317 = vld [vmem:[%s9 + $0x3c] sm:$0xf]
      %v3318 = vld [vmem:[%s648] sm:$0xf]
      %v3319 = vld [vmem:[%s648 + $0x4] sm:$0xf]
      %v3320 = vld [vmem:[%s648 + $0x8] sm:$0xf]
      %v3321 = vld [vmem:[%s648 + $0xc] sm:$0xf]
      %v3322 = vld [vmem:[%s648 + $0x10] sm:$0xf]
      %v3323 = vld [vmem:[%s648 + $0x14] sm:$0xf]
      %v3324 = vld [vmem:[%s648 + $0x18] sm:$0xf]
      %v3325 = vld [vmem:[%s648 + $0x1c] sm:$0xf]
      %v3326 = vld [vmem:[%s648 + $0x20] sm:$0xf]
      %v3327 = vld [vmem:[%s648 + $0x24] sm:$0xf]
      %v3328 = vld [vmem:[%s648 + $0x28] sm:$0xf]
      %v3329 = vld [vmem:[%s648 + $0x2c] sm:$0xf]
      %v3330 = vld [vmem:[%s648 + $0x30] sm:$0xf]
      %v3331 = vld [vmem:[%s648 + $0x34] sm:$0xf]
      %v3332 = vld [vmem:[%s648 + $0x38] sm:$0xf]
      %v3333 = vld [vmem:[%s648 + $0x3c] sm:$0xf]
      %v3334 = vld [vmem:[%s648 + $0x40] sm:$0xf]
      %v3335 = vld [vmem:[%s648 + $0x44] sm:$0xf]
      %v3336 = vld [vmem:[%s648 + $0x48] sm:$0xf]
      %v3337 = vld [vmem:[%s648 + $0x4c] sm:$0xf]
      %v3338 = vld [vmem:[%s648 + $0x50] sm:$0xf]
      %v3339 = vld [vmem:[%s648 + $0x54] sm:$0xf]
      %v3340 = vld [vmem:[%s648 + $0x58] sm:$0xf]
      %v3341 = vld [vmem:[%s648 + $0x5c] sm:$0xf]
      %v3342 = vld [vmem:[%s648 + $0x60] sm:$0xf]
      %v3343 = vld [vmem:[%s648 + $0x64] sm:$0xf]
      %v3344 = vld [vmem:[%s648 + $0x68] sm:$0xf]
      %v3345 = vld [vmem:[%s648 + $0x6c] sm:$0xf]
      %v3346 = vld [vmem:[%s648 + $0x70] sm:$0xf]
      %v3347 = vld [vmem:[%s648 + $0x74] sm:$0xf]
      %v3348 = vld [vmem:[%s648 + $0x78] sm:$0xf]
      %v3349 = vld [vmem:[%s648 + $0x7c] sm:$0xf]
      %v3350 = vld [vmem:[%s10] sm:$0xf]
      %v3351 = vld [vmem:[%s10 + $0x4] sm:$0xf]
      %v3352 = vld [vmem:[%s10 + $0x8] sm:$0xf]
      %v3353 = vld [vmem:[%s10 + $0xc] sm:$0xf]
      %v3354 = vld [vmem:[%s10 + $0x10] sm:$0xf]
      %v3355 = vld [vmem:[%s10 + $0x14] sm:$0xf]
      %v3356 = vld [vmem:[%s10 + $0x18] sm:$0xf]
      %v3357 = vld [vmem:[%s10 + $0x1c] sm:$0xf]
      %v3358 = vld [vmem:[%s10 + $0x20] sm:$0xf]
      %v3359 = vld [vmem:[%s10 + $0x24] sm:$0xf]
      %v3360 = vld [vmem:[%s10 + $0x28] sm:$0xf]
      %v3361 = vld [vmem:[%s10 + $0x2c] sm:$0xf]
      %v3362 = vld [vmem:[%s10 + $0x30] sm:$0xf]
      %v3363 = vld [vmem:[%s10 + $0x34] sm:$0xf]
      %v3364 = vld [vmem:[%s10 + $0x38] sm:$0xf]
      %v3365 = vld [vmem:[%s10 + $0x3c] sm:$0xf]
      %v3398 = vunpack.c.l.b16 %v3318
      %v3399 = vunpack.c.l.b16 %v3319
      %v3400 = vunpack.c.l.b16 %v3320
      %v3401 = vunpack.c.l.b16 %v3321
      %v3402 = vunpack.c.l.b16 %v3322
      %v3403 = vunpack.c.l.b16 %v3323
      %v3404 = vunpack.c.l.b16 %v3324
      %v3405 = vunpack.c.l.b16 %v3325
      %v3406 = vunpack.c.l.b16 %v3326
      %v3407 = vunpack.c.l.b16 %v3327
      %v3408 = vunpack.c.l.b16 %v3328
      %v3409 = vunpack.c.l.b16 %v3329
      %v3410 = vunpack.c.l.b16 %v3330
      %v3411 = vunpack.c.l.b16 %v3331
      %v3412 = vunpack.c.l.b16 %v3332
      %v3413 = vunpack.c.l.b16 %v3333
      %v3414 = vunpack.c.l.b16 %v3334
      %v3415 = vunpack.c.l.b16 %v3335
      %v3416 = vunpack.c.l.b16 %v3336
      %v3417 = vunpack.c.l.b16 %v3337
      %v3418 = vunpack.c.l.b16 %v3338
      %v3419 = vunpack.c.l.b16 %v3339
      %v3420 = vunpack.c.l.b16 %v3340
      %v3421 = vunpack.c.l.b16 %v3341
      %v3422 = vunpack.c.l.b16 %v3342
      %v3423 = vunpack.c.l.b16 %v3343
      %v3424 = vunpack.c.l.b16 %v3344
      %v3425 = vunpack.c.l.b16 %v3345
      %v3426 = vunpack.c.l.b16 %v3346
      %v3427 = vunpack.c.l.b16 %v3347
      %v3428 = vunpack.c.l.b16 %v3348
      %v3429 = vunpack.c.l.b16 %v3349
      %v3430 = vpack.c.b16 %v3399, %v3398
      %v3431 = vpack.c.b16 %v3401, %v3400
      %v3432 = vpack.c.b16 %v3403, %v3402
      %v3433 = vpack.c.b16 %v3405, %v3404
      %v3434 = vpack.c.b16 %v3407, %v3406
      %v3435 = vpack.c.b16 %v3409, %v3408
      %v3436 = vpack.c.b16 %v3411, %v3410
      %v3437 = vpack.c.b16 %v3413, %v3412
      %v3438 = vpack.c.b16 %v3415, %v3414
      %v3439 = vpack.c.b16 %v3417, %v3416
      %v3440 = vpack.c.b16 %v3419, %v3418
      %v3441 = vpack.c.b16 %v3421, %v3420
      %v3442 = vpack.c.b16 %v3423, %v3422
      %v3443 = vpack.c.b16 %v3425, %v3424
      %v3444 = vpack.c.b16 %v3427, %v3426
      %v3445 = vpack.c.b16 %v3429, %v3428
      %v3478 = vunpack.c.l.b16 %v3350
      %v3479 = vunpack.c.l.b16 %v3351
      %v3480 = vunpack.c.l.b16 %v3352
      %v3481 = vunpack.c.l.b16 %v3353
      %v3482 = vunpack.c.l.b16 %v3354
      %v3483 = vunpack.c.l.b16 %v3355
      %v3484 = vunpack.c.l.b16 %v3356
      %v3485 = vunpack.c.l.b16 %v3357
      %v3486 = vunpack.c.l.b16 %v3358
      %v3487 = vunpack.c.l.b16 %v3359
      %v3488 = vunpack.c.l.b16 %v3360
      %v3489 = vunpack.c.l.b16 %v3361
      %v3490 = vunpack.c.l.b16 %v3362
      %v3491 = vunpack.c.l.b16 %v3363
      %v3492 = vunpack.c.l.b16 %v3364
      %v3493 = vunpack.c.l.b16 %v3365
      %v3494 = vpack.c.b16 %v3479, %v3478
      %v3495 = vpack.c.b16 %v3481, %v3480
      %v3496 = vpack.c.b16 %v3483, %v3482
      %v3497 = vpack.c.b16 %v3485, %v3484
      %v3498 = vpack.c.b16 %v3487, %v3486
      %v3499 = vpack.c.b16 %v3489, %v3488
      %v3500 = vpack.c.b16 %v3491, %v3490
      %v3501 = vpack.c.b16 %v3493, %v3492
      %3510 = vmatpush.bf16.msra.mxu0 %v3501
      %3511 = vmatpush.bf16.msra.mxu0 %v3500
      %3512 = vmatpush.bf16.msra.mxu0 %v3499
      %3513 = vmatpush.bf16.msra.mxu0 %v3498
      %3514 = vmatpush.bf16.msra.mxu0 %v3497
      %3515 = vmatpush.bf16.msra.mxu0 %v3496
      %3516 = vmatpush.bf16.msra.mxu0 %v3495
      %3517 = vmatpush.bf16.msra.mxu0 %v3494
      %3518 = vmatmul.bf16.gmra.mxu0 %v3430
      %v3519 = vpop.f32.mrf.mxu0
      %v3520 = vadd.f32 0.0, %v3519
      %v3521 = vpop.f32.mrf.mxu0
      %v3522 = vadd.f32 0.0, %v3521
      %3523 = vmatmul.bf16.gmra.mxu0 %v3431
      %v3524 = vpop.f32.mrf.mxu0
      %v3525 = vadd.f32 0.0, %v3524
      %v3526 = vpop.f32.mrf.mxu0
      %v3527 = vadd.f32 0.0, %v3526
      %3528 = vmatmul.bf16.gmra.mxu0 %v3432
      %v3529 = vpop.f32.mrf.mxu0
      %v3530 = vadd.f32 0.0, %v3529
      %v3531 = vpop.f32.mrf.mxu0
      %v3532 = vadd.f32 0.0, %v3531
      %3533 = vmatmul.bf16.gmra.mxu0 %v3433
      %v3534 = vpop.f32.mrf.mxu0
      %v3535 = vadd.f32 0.0, %v3534
      %v3536 = vpop.f32.mrf.mxu0
      %v3537 = vadd.f32 0.0, %v3536
      %3538 = vmatmul.bf16.gmra.mxu0 %v3434
      %v3539 = vpop.f32.mrf.mxu0
      %v3540 = vadd.f32 0.0, %v3539
      %v3541 = vpop.f32.mrf.mxu0
      %v3542 = vadd.f32 0.0, %v3541
      %3543 = vmatmul.bf16.gmra.mxu0 %v3435
      %v3544 = vpop.f32.mrf.mxu0
      %v3545 = vadd.f32 0.0, %v3544
      %v3546 = vpop.f32.mrf.mxu0
      %v3547 = vadd.f32 0.0, %v3546
      %3548 = vmatmul.bf16.gmra.mxu0 %v3436
      %v3549 = vpop.f32.mrf.mxu0
      %v3550 = vadd.f32 0.0, %v3549
      %v3551 = vpop.f32.mrf.mxu0
      %v3552 = vadd.f32 0.0, %v3551
      %3553 = vmatmul.bf16.gmra.mxu0 %v3437
      %v3554 = vpop.f32.mrf.mxu0
      %v3555 = vadd.f32 0.0, %v3554
      %v3556 = vpop.f32.mrf.mxu0
      %v3557 = vadd.f32 0.0, %v3556
      %3558 = vmatmul.bf16.gmra.mxu0 %v3438
      %v3559 = vpop.f32.mrf.mxu0
      %v3560 = vadd.f32 0.0, %v3559
      %v3561 = vpop.f32.mrf.mxu0
      %v3562 = vadd.f32 0.0, %v3561
      %3563 = vmatmul.bf16.gmra.mxu0 %v3439
      %v3564 = vpop.f32.mrf.mxu0
      %v3565 = vadd.f32 0.0, %v3564
      %v3566 = vpop.f32.mrf.mxu0
      %v3567 = vadd.f32 0.0, %v3566
      %3568 = vmatmul.bf16.gmra.mxu0 %v3440
      %v3569 = vpop.f32.mrf.mxu0
      %v3570 = vadd.f32 0.0, %v3569
      %v3571 = vpop.f32.mrf.mxu0
      %v3572 = vadd.f32 0.0, %v3571
      %3573 = vmatmul.bf16.gmra.mxu0 %v3441
      %v3574 = vpop.f32.mrf.mxu0
      %v3575 = vadd.f32 0.0, %v3574
      %v3576 = vpop.f32.mrf.mxu0
      %v3577 = vadd.f32 0.0, %v3576
      %3578 = vmatmul.bf16.gmra.mxu0 %v3442
      %v3579 = vpop.f32.mrf.mxu0
      %v3580 = vadd.f32 0.0, %v3579
      %v3581 = vpop.f32.mrf.mxu0
      %v3582 = vadd.f32 0.0, %v3581
      %3583 = vmatmul.bf16.gmra.mxu0 %v3443
      %v3584 = vpop.f32.mrf.mxu0
      %v3585 = vadd.f32 0.0, %v3584
      %v3586 = vpop.f32.mrf.mxu0
      %v3587 = vadd.f32 0.0, %v3586
      %3588 = vmatmul.bf16.gmra.mxu0 %v3444
      %v3589 = vpop.f32.mrf.mxu0
      %v3590 = vadd.f32 0.0, %v3589
      %v3591 = vpop.f32.mrf.mxu0
      %v3592 = vadd.f32 0.0, %v3591
      %3593 = vmatmul.bf16.gmra.mxu0 %v3445
      %v3594 = vpop.f32.mrf.mxu0
      %v3595 = vadd.f32 0.0, %v3594
      %v3596 = vpop.f32.mrf.mxu0
      %v3597 = vadd.f32 0.0, %v3596
      %3598 = vdwg.mxu0
      %v3631 = vunpack.c.l.b16 %v3270
      %v3632 = vunpack.c.l.b16 %v3271
      %v3633 = vunpack.c.l.b16 %v3272
      %v3634 = vunpack.c.l.b16 %v3273
      %v3635 = vunpack.c.l.b16 %v3274
      %v3636 = vunpack.c.l.b16 %v3275
      %v3637 = vunpack.c.l.b16 %v3276
      %v3638 = vunpack.c.l.b16 %v3277
      %v3639 = vunpack.c.l.b16 %v3278
      %v3640 = vunpack.c.l.b16 %v3279
      %v3641 = vunpack.c.l.b16 %v3280
      %v3642 = vunpack.c.l.b16 %v3281
      %v3643 = vunpack.c.l.b16 %v3282
      %v3644 = vunpack.c.l.b16 %v3283
      %v3645 = vunpack.c.l.b16 %v3284
      %v3646 = vunpack.c.l.b16 %v3285
      %v3647 = vunpack.c.l.b16 %v3286
      %v3648 = vunpack.c.l.b16 %v3287
      %v3649 = vunpack.c.l.b16 %v3288
      %v3650 = vunpack.c.l.b16 %v3289
      %v3651 = vunpack.c.l.b16 %v3290
      %v3652 = vunpack.c.l.b16 %v3291
      %v3653 = vunpack.c.l.b16 %v3292
      %v3654 = vunpack.c.l.b16 %v3293
      %v3655 = vunpack.c.l.b16 %v3294
      %v3656 = vunpack.c.l.b16 %v3295
      %v3657 = vunpack.c.l.b16 %v3296
      %v3658 = vunpack.c.l.b16 %v3297
      %v3659 = vunpack.c.l.b16 %v3298
      %v3660 = vunpack.c.l.b16 %v3299
      %v3661 = vunpack.c.l.b16 %v3300
      %v3662 = vunpack.c.l.b16 %v3301
      %v3663 = vpack.c.b16 %v3632, %v3631
      %v3664 = vpack.c.b16 %v3634, %v3633
      %v3665 = vpack.c.b16 %v3636, %v3635
      %v3666 = vpack.c.b16 %v3638, %v3637
      %v3667 = vpack.c.b16 %v3640, %v3639
      %v3668 = vpack.c.b16 %v3642, %v3641
      %v3669 = vpack.c.b16 %v3644, %v3643
      %v3670 = vpack.c.b16 %v3646, %v3645
      %v3671 = vpack.c.b16 %v3648, %v3647
      %v3672 = vpack.c.b16 %v3650, %v3649
      %v3673 = vpack.c.b16 %v3652, %v3651
      %v3674 = vpack.c.b16 %v3654, %v3653
      %v3675 = vpack.c.b16 %v3656, %v3655
      %v3676 = vpack.c.b16 %v3658, %v3657
      %v3677 = vpack.c.b16 %v3660, %v3659
      %v3678 = vpack.c.b16 %v3662, %v3661
      %v3711 = vunpack.c.l.b16 %v3302
      %v3712 = vunpack.c.l.b16 %v3303
      %v3713 = vunpack.c.l.b16 %v3304
      %v3714 = vunpack.c.l.b16 %v3305
      %v3715 = vunpack.c.l.b16 %v3306
      %v3716 = vunpack.c.l.b16 %v3307
      %v3717 = vunpack.c.l.b16 %v3308
      %v3718 = vunpack.c.l.b16 %v3309
      %v3719 = vunpack.c.l.b16 %v3310
      %v3720 = vunpack.c.l.b16 %v3311
      %v3721 = vunpack.c.l.b16 %v3312
      %v3722 = vunpack.c.l.b16 %v3313
      %v3723 = vunpack.c.l.b16 %v3314
      %v3724 = vunpack.c.l.b16 %v3315
      %v3725 = vunpack.c.l.b16 %v3316
      %v3726 = vunpack.c.l.b16 %v3317
      %v3727 = vpack.c.b16 %v3712, %v3711
      %v3728 = vpack.c.b16 %v3714, %v3713
      %v3729 = vpack.c.b16 %v3716, %v3715
      %v3730 = vpack.c.b16 %v3718, %v3717
      %v3731 = vpack.c.b16 %v3720, %v3719
      %v3732 = vpack.c.b16 %v3722, %v3721
      %v3733 = vpack.c.b16 %v3724, %v3723
      %v3734 = vpack.c.b16 %v3726, %v3725
      %3743 = vmatpush.bf16.msra.mxu0 %v3734
      %3744 = vmatpush.bf16.msra.mxu0 %v3733
      %3745 = vmatpush.bf16.msra.mxu0 %v3732
      %3746 = vmatpush.bf16.msra.mxu0 %v3731
      %3747 = vmatpush.bf16.msra.mxu0 %v3730
      %3748 = vmatpush.bf16.msra.mxu0 %v3729
      %3749 = vmatpush.bf16.msra.mxu0 %v3728
      %3750 = vmatpush.bf16.msra.mxu0 %v3727
      %3751 = vmatmul.bf16.gmra.mxu0 %v3663
      %v3752 = vpop.f32.mrf.mxu0
      %v3753 = vadd.f32 %v3520, %v3752
      %v3754 = vpop.f32.mrf.mxu0
      %v3755 = vadd.f32 %v3522, %v3754
      %3756 = vmatmul.bf16.gmra.mxu0 %v3664
      %v3757 = vpop.f32.mrf.mxu0
      %v3758 = vadd.f32 %v3525, %v3757
      %v3759 = vpop.f32.mrf.mxu0
      %v3760 = vadd.f32 %v3527, %v3759
      %3761 = vmatmul.bf16.gmra.mxu0 %v3665
      %v3762 = vpop.f32.mrf.mxu0
      %v3763 = vadd.f32 %v3530, %v3762
      %v3764 = vpop.f32.mrf.mxu0
      %v3765 = vadd.f32 %v3532, %v3764
      %3766 = vmatmul.bf16.gmra.mxu0 %v3666
      %v3767 = vpop.f32.mrf.mxu0
      %v3768 = vadd.f32 %v3535, %v3767
      %v3769 = vpop.f32.mrf.mxu0
      %v3770 = vadd.f32 %v3537, %v3769
      %3771 = vmatmul.bf16.gmra.mxu0 %v3667
      %v3772 = vpop.f32.mrf.mxu0
      %v3773 = vadd.f32 %v3540, %v3772
      %v3774 = vpop.f32.mrf.mxu0
      %v3775 = vadd.f32 %v3542, %v3774
      %3776 = vmatmul.bf16.gmra.mxu0 %v3668
      %v3777 = vpop.f32.mrf.mxu0
      %v3778 = vadd.f32 %v3545, %v3777
      %v3779 = vpop.f32.mrf.mxu0
      %v3780 = vadd.f32 %v3547, %v3779
      %3781 = vmatmul.bf16.gmra.mxu0 %v3669
      %v3782 = vpop.f32.mrf.mxu0
      %v3783 = vadd.f32 %v3550, %v3782
      %v3784 = vpop.f32.mrf.mxu0
      %v3785 = vadd.f32 %v3552, %v3784
      %3786 = vmatmul.bf16.gmra.mxu0 %v3670
      %v3787 = vpop.f32.mrf.mxu0
      %v3788 = vadd.f32 %v3555, %v3787
      %v3789 = vpop.f32.mrf.mxu0
      %v3790 = vadd.f32 %v3557, %v3789
      %3791 = vmatmul.bf16.gmra.mxu0 %v3671
      %v3792 = vpop.f32.mrf.mxu0
      %v3793 = vadd.f32 %v3560, %v3792
      %v3794 = vpop.f32.mrf.mxu0
      %v3795 = vadd.f32 %v3562, %v3794
      %3796 = vmatmul.bf16.gmra.mxu0 %v3672
      %v3797 = vpop.f32.mrf.mxu0
      %v3798 = vadd.f32 %v3565, %v3797
      %v3799 = vpop.f32.mrf.mxu0
      %v3800 = vadd.f32 %v3567, %v3799
      %3801 = vmatmul.bf16.gmra.mxu0 %v3673
      %v3802 = vpop.f32.mrf.mxu0
      %v3803 = vadd.f32 %v3570, %v3802
      %v3804 = vpop.f32.mrf.mxu0
      %v3805 = vadd.f32 %v3572, %v3804
      %3806 = vmatmul.bf16.gmra.mxu0 %v3674
      %v3807 = vpop.f32.mrf.mxu0
      %v3808 = vadd.f32 %v3575, %v3807
      %v3809 = vpop.f32.mrf.mxu0
      %v3810 = vadd.f32 %v3577, %v3809
      %3811 = vmatmul.bf16.gmra.mxu0 %v3675
      %v3812 = vpop.f32.mrf.mxu0
      %v3813 = vadd.f32 %v3580, %v3812
      %v3814 = vpop.f32.mrf.mxu0
      %v3815 = vadd.f32 %v3582, %v3814
      %3816 = vmatmul.bf16.gmra.mxu0 %v3676
      %v3817 = vpop.f32.mrf.mxu0
      %v3818 = vadd.f32 %v3585, %v3817
      %v3819 = vpop.f32.mrf.mxu0
      %v3820 = vadd.f32 %v3587, %v3819
      %3821 = vmatmul.bf16.gmra.mxu0 %v3677
      %v3822 = vpop.f32.mrf.mxu0
      %v3823 = vadd.f32 %v3590, %v3822
      %v3824 = vpop.f32.mrf.mxu0
      %v3825 = vadd.f32 %v3592, %v3824
      %3826 = vmatmul.bf16.gmra.mxu0 %v3678
      %v3827 = vpop.f32.mrf.mxu0
      %v3828 = vadd.f32 %v3595, %v3827
      %v3829 = vpop.f32.mrf.mxu0
      %v3830 = vadd.f32 %v3597, %v3829
      %3831 = vdwg.mxu0
      %v3832 = vld [vmem:[%s642] sm:$0xf]
      %v3833 = vld [vmem:[%s642 + $0x4] sm:$0xf]
      %v3834 = vld [vmem:[%s642 + $0x8] sm:$0xf]
      %v3835 = vld [vmem:[%s642 + $0xc] sm:$0xf]
      %v3836 = vld [vmem:[%s642 + $0x10] sm:$0xf]
      %v3837 = vld [vmem:[%s642 + $0x14] sm:$0xf]
      %v3838 = vld [vmem:[%s642 + $0x18] sm:$0xf]
      %v3839 = vld [vmem:[%s642 + $0x1c] sm:$0xf]
      %v3840 = vld [vmem:[%s642 + $0x20] sm:$0xf]
      %v3841 = vld [vmem:[%s642 + $0x24] sm:$0xf]
      %v3842 = vld [vmem:[%s642 + $0x28] sm:$0xf]
      %v3843 = vld [vmem:[%s642 + $0x2c] sm:$0xf]
      %v3844 = vld [vmem:[%s642 + $0x30] sm:$0xf]
      %v3845 = vld [vmem:[%s642 + $0x34] sm:$0xf]
      %v3846 = vld [vmem:[%s642 + $0x38] sm:$0xf]
      %v3847 = vld [vmem:[%s642 + $0x3c] sm:$0xf]
      %v3848 = vld [vmem:[%s642 + $0x40] sm:$0xf]
      %v3849 = vld [vmem:[%s642 + $0x44] sm:$0xf]
      %v3850 = vld [vmem:[%s642 + $0x48] sm:$0xf]
      %v3851 = vld [vmem:[%s642 + $0x4c] sm:$0xf]
      %v3852 = vld [vmem:[%s642 + $0x50] sm:$0xf]
      %v3853 = vld [vmem:[%s642 + $0x54] sm:$0xf]
      %v3854 = vld [vmem:[%s642 + $0x58] sm:$0xf]
      %v3855 = vld [vmem:[%s642 + $0x5c] sm:$0xf]
      %v3856 = vld [vmem:[%s642 + $0x60] sm:$0xf]
      %v3857 = vld [vmem:[%s642 + $0x64] sm:$0xf]
      %v3858 = vld [vmem:[%s642 + $0x68] sm:$0xf]
      %v3859 = vld [vmem:[%s642 + $0x6c] sm:$0xf]
      %v3860 = vld [vmem:[%s642 + $0x70] sm:$0xf]
      %v3861 = vld [vmem:[%s642 + $0x74] sm:$0xf]
      %v3862 = vld [vmem:[%s642 + $0x78] sm:$0xf]
      %v3863 = vld [vmem:[%s642 + $0x7c] sm:$0xf]
      %v3864 = vld [vmem:[%s11] sm:$0xf]
      %v3865 = vld [vmem:[%s11 + $0x4] sm:$0xf]
      %v3866 = vld [vmem:[%s11 + $0x8] sm:$0xf]
      %v3867 = vld [vmem:[%s11 + $0xc] sm:$0xf]
      %v3868 = vld [vmem:[%s11 + $0x10] sm:$0xf]
      %v3869 = vld [vmem:[%s11 + $0x14] sm:$0xf]
      %v3870 = vld [vmem:[%s11 + $0x18] sm:$0xf]
      %v3871 = vld [vmem:[%s11 + $0x1c] sm:$0xf]
      %v3872 = vld [vmem:[%s11 + $0x20] sm:$0xf]
      %v3873 = vld [vmem:[%s11 + $0x24] sm:$0xf]
      %v3874 = vld [vmem:[%s11 + $0x28] sm:$0xf]
      %v3875 = vld [vmem:[%s11 + $0x2c] sm:$0xf]
      %v3876 = vld [vmem:[%s11 + $0x30] sm:$0xf]
      %v3877 = vld [vmem:[%s11 + $0x34] sm:$0xf]
      %v3878 = vld [vmem:[%s11 + $0x38] sm:$0xf]
      %v3879 = vld [vmem:[%s11 + $0x3c] sm:$0xf]
      %v3912 = vunpack.c.l.b16 %v3832
      %v3913 = vunpack.c.l.b16 %v3833
      %v3914 = vunpack.c.l.b16 %v3834
      %v3915 = vunpack.c.l.b16 %v3835
      %v3916 = vunpack.c.l.b16 %v3836
      %v3917 = vunpack.c.l.b16 %v3837
      %v3918 = vunpack.c.l.b16 %v3838
      %v3919 = vunpack.c.l.b16 %v3839
      %v3920 = vunpack.c.l.b16 %v3840
      %v3921 = vunpack.c.l.b16 %v3841
      %v3922 = vunpack.c.l.b16 %v3842
      %v3923 = vunpack.c.l.b16 %v3843
      %v3924 = vunpack.c.l.b16 %v3844
      %v3925 = vunpack.c.l.b16 %v3845
      %v3926 = vunpack.c.l.b16 %v3846
      %v3927 = vunpack.c.l.b16 %v3847
      %v3928 = vunpack.c.l.b16 %v3848
      %v3929 = vunpack.c.l.b16 %v3849
      %v3930 = vunpack.c.l.b16 %v3850
      %v3931 = vunpack.c.l.b16 %v3851
      %v3932 = vunpack.c.l.b16 %v3852
      %v3933 = vunpack.c.l.b16 %v3853
      %v3934 = vunpack.c.l.b16 %v3854
      %v3935 = vunpack.c.l.b16 %v3855
      %v3936 = vunpack.c.l.b16 %v3856
      %v3937 = vunpack.c.l.b16 %v3857
      %v3938 = vunpack.c.l.b16 %v3858
      %v3939 = vunpack.c.l.b16 %v3859
      %v3940 = vunpack.c.l.b16 %v3860
      %v3941 = vunpack.c.l.b16 %v3861
      %v3942 = vunpack.c.l.b16 %v3862
      %v3943 = vunpack.c.l.b16 %v3863
      %v3944 = vpack.c.b16 %v3913, %v3912
      %v3945 = vpack.c.b16 %v3915, %v3914
      %v3946 = vpack.c.b16 %v3917, %v3916
      %v3947 = vpack.c.b16 %v3919, %v3918
      %v3948 = vpack.c.b16 %v3921, %v3920
      %v3949 = vpack.c.b16 %v3923, %v3922
      %v3950 = vpack.c.b16 %v3925, %v3924
      %v3951 = vpack.c.b16 %v3927, %v3926
      %v3952 = vpack.c.b16 %v3929, %v3928
      %v3953 = vpack.c.b16 %v3931, %v3930
      %v3954 = vpack.c.b16 %v3933, %v3932
      %v3955 = vpack.c.b16 %v3935, %v3934
      %v3956 = vpack.c.b16 %v3937, %v3936
      %v3957 = vpack.c.b16 %v3939, %v3938
      %v3958 = vpack.c.b16 %v3941, %v3940
      %v3959 = vpack.c.b16 %v3943, %v3942
      %v3992 = vunpack.c.l.b16 %v3864
      %v3993 = vunpack.c.l.b16 %v3865
      %v3994 = vunpack.c.l.b16 %v3866
      %v3995 = vunpack.c.l.b16 %v3867
      %v3996 = vunpack.c.l.b16 %v3868
      %v3997 = vunpack.c.l.b16 %v3869
      %v3998 = vunpack.c.l.b16 %v3870
      %v3999 = vunpack.c.l.b16 %v3871
      %v4000 = vunpack.c.l.b16 %v3872
      %v4001 = vunpack.c.l.b16 %v3873
      %v4002 = vunpack.c.l.b16 %v3874
      %v4003 = vunpack.c.l.b16 %v3875
      %v4004 = vunpack.c.l.b16 %v3876
      %v4005 = vunpack.c.l.b16 %v3877
      %v4006 = vunpack.c.l.b16 %v3878
      %v4007 = vunpack.c.l.b16 %v3879
      %v4008 = vpack.c.b16 %v3993, %v3992
      %v4009 = vpack.c.b16 %v3995, %v3994
      %v4010 = vpack.c.b16 %v3997, %v3996
      %v4011 = vpack.c.b16 %v3999, %v3998
      %v4012 = vpack.c.b16 %v4001, %v4000
      %v4013 = vpack.c.b16 %v4003, %v4002
      %v4014 = vpack.c.b16 %v4005, %v4004
      %v4015 = vpack.c.b16 %v4007, %v4006
      %4024 = vmatpush.bf16.msra.mxu0 %v4015
      %4025 = vmatpush.bf16.msra.mxu0 %v4014
      %4026 = vmatpush.bf16.msra.mxu0 %v4013
      %4027 = vmatpush.bf16.msra.mxu0 %v4012
      %4028 = vmatpush.bf16.msra.mxu0 %v4011
      %4029 = vmatpush.bf16.msra.mxu0 %v4010
      %4030 = vmatpush.bf16.msra.mxu0 %v4009
      %4031 = vmatpush.bf16.msra.mxu0 %v4008
      %4032 = vmatmul.bf16.gmra.mxu0 %v3944
      %v4033 = vpop.f32.mrf.mxu0
      %v4034 = vadd.f32 0.0, %v4033
      %v4035 = vpop.f32.mrf.mxu0
      %v4036 = vadd.f32 0.0, %v4035
      %4037 = vmatmul.bf16.gmra.mxu0 %v3945
      %v4038 = vpop.f32.mrf.mxu0
      %v4039 = vadd.f32 0.0, %v4038
      %v4040 = vpop.f32.mrf.mxu0
      %v4041 = vadd.f32 0.0, %v4040
      %4042 = vmatmul.bf16.gmra.mxu0 %v3946
      %v4043 = vpop.f32.mrf.mxu0
      %v4044 = vadd.f32 0.0, %v4043
      %v4045 = vpop.f32.mrf.mxu0
      %v4046 = vadd.f32 0.0, %v4045
      %4047 = vmatmul.bf16.gmra.mxu0 %v3947
      %v4048 = vpop.f32.mrf.mxu0
      %v4049 = vadd.f32 0.0, %v4048
      %v4050 = vpop.f32.mrf.mxu0
      %v4051 = vadd.f32 0.0, %v4050
      %4052 = vmatmul.bf16.gmra.mxu0 %v3948
      %v4053 = vpop.f32.mrf.mxu0
      %v4054 = vadd.f32 0.0, %v4053
      %v4055 = vpop.f32.mrf.mxu0
      %v4056 = vadd.f32 0.0, %v4055
      %4057 = vmatmul.bf16.gmra.mxu0 %v3949
      %v4058 = vpop.f32.mrf.mxu0
      %v4059 = vadd.f32 0.0, %v4058
      %v4060 = vpop.f32.mrf.mxu0
      %v4061 = vadd.f32 0.0, %v4060
      %4062 = vmatmul.bf16.gmra.mxu0 %v3950
      %v4063 = vpop.f32.mrf.mxu0
      %v4064 = vadd.f32 0.0, %v4063
      %v4065 = vpop.f32.mrf.mxu0
      %v4066 = vadd.f32 0.0, %v4065
      %4067 = vmatmul.bf16.gmra.mxu0 %v3951
      %v4068 = vpop.f32.mrf.mxu0
      %v4069 = vadd.f32 0.0, %v4068
      %v4070 = vpop.f32.mrf.mxu0
      %v4071 = vadd.f32 0.0, %v4070
      %4072 = vmatmul.bf16.gmra.mxu0 %v3952
      %v4073 = vpop.f32.mrf.mxu0
      %v4074 = vadd.f32 0.0, %v4073
      %v4075 = vpop.f32.mrf.mxu0
      %v4076 = vadd.f32 0.0, %v4075
      %4077 = vmatmul.bf16.gmra.mxu0 %v3953
      %v4078 = vpop.f32.mrf.mxu0
      %v4079 = vadd.f32 0.0, %v4078
      %v4080 = vpop.f32.mrf.mxu0
      %v4081 = vadd.f32 0.0, %v4080
      %4082 = vmatmul.bf16.gmra.mxu0 %v3954
      %v4083 = vpop.f32.mrf.mxu0
      %v4084 = vadd.f32 0.0, %v4083
      %v4085 = vpop.f32.mrf.mxu0
      %v4086 = vadd.f32 0.0, %v4085
      %4087 = vmatmul.bf16.gmra.mxu0 %v3955
      %v4088 = vpop.f32.mrf.mxu0
      %v4089 = vadd.f32 0.0, %v4088
      %v4090 = vpop.f32.mrf.mxu0
      %v4091 = vadd.f32 0.0, %v4090
      %4092 = vmatmul.bf16.gmra.mxu0 %v3956
      %v4093 = vpop.f32.mrf.mxu0
      %v4094 = vadd.f32 0.0, %v4093
      %v4095 = vpop.f32.mrf.mxu0
      %v4096 = vadd.f32 0.0, %v4095
      %4097 = vmatmul.bf16.gmra.mxu0 %v3957
      %v4098 = vpop.f32.mrf.mxu0
      %v4099 = vadd.f32 0.0, %v4098
      %v4100 = vpop.f32.mrf.mxu0
      %v4101 = vadd.f32 0.0, %v4100
      %4102 = vmatmul.bf16.gmra.mxu0 %v3958
      %v4103 = vpop.f32.mrf.mxu0
      %v4104 = vadd.f32 0.0, %v4103
      %v4105 = vpop.f32.mrf.mxu0
      %v4106 = vadd.f32 0.0, %v4105
      %4107 = vmatmul.bf16.gmra.mxu0 %v3959
      %v4108 = vpop.f32.mrf.mxu0
      %v4109 = vadd.f32 0.0, %v4108
      %v4110 = vpop.f32.mrf.mxu0
      %v4111 = vadd.f32 0.0, %v4110
      %4112 = vdwg.mxu0
      %v4113 = vadd.f32 %v3753, %v4034
      %v4114 = vadd.f32 %v3755, %v4036
      %v4115 = vadd.f32 %v3758, %v4039
      %v4116 = vadd.f32 %v3760, %v4041
      %v4117 = vadd.f32 %v3763, %v4044
      %v4118 = vadd.f32 %v3765, %v4046
      %v4119 = vadd.f32 %v3768, %v4049
      %v4120 = vadd.f32 %v3770, %v4051
      %v4121 = vadd.f32 %v3773, %v4054
      %v4122 = vadd.f32 %v3775, %v4056
      %v4123 = vadd.f32 %v3778, %v4059
      %v4124 = vadd.f32 %v3780, %v4061
      %v4125 = vadd.f32 %v3783, %v4064
      %v4126 = vadd.f32 %v3785, %v4066
      %v4127 = vadd.f32 %v3788, %v4069
      %v4128 = vadd.f32 %v3790, %v4071
      %v4129 = vadd.f32 %v3793, %v4074
      %v4130 = vadd.f32 %v3795, %v4076
      %v4131 = vadd.f32 %v3798, %v4079
      %v4132 = vadd.f32 %v3800, %v4081
      %v4133 = vadd.f32 %v3803, %v4084
      %v4134 = vadd.f32 %v3805, %v4086
      %v4135 = vadd.f32 %v3808, %v4089
      %v4136 = vadd.f32 %v3810, %v4091
      %v4137 = vadd.f32 %v3813, %v4094
      %v4138 = vadd.f32 %v3815, %v4096
      %v4139 = vadd.f32 %v3818, %v4099
      %v4140 = vadd.f32 %v3820, %v4101
      %v4141 = vadd.f32 %v3823, %v4104
      %v4142 = vadd.f32 %v3825, %v4106
      %v4143 = vadd.f32 %v3828, %v4109
      %v4144 = vadd.f32 %v3830, %v4111
      %v4145 = vld [vmem:[%s636] sm:$0xf]
      %v4146 = vld [vmem:[%s636 + $0x4] sm:$0xf]
      %v4147 = vld [vmem:[%s636 + $0x8] sm:$0xf]
      %v4148 = vld [vmem:[%s636 + $0xc] sm:$0xf]
      %v4149 = vld [vmem:[%s636 + $0x10] sm:$0xf]
      %v4150 = vld [vmem:[%s636 + $0x14] sm:$0xf]
      %v4151 = vld [vmem:[%s636 + $0x18] sm:$0xf]
      %v4152 = vld [vmem:[%s636 + $0x1c] sm:$0xf]
      %v4153 = vld [vmem:[%s636 + $0x20] sm:$0xf]
      %v4154 = vld [vmem:[%s636 + $0x24] sm:$0xf]
      %v4155 = vld [vmem:[%s636 + $0x28] sm:$0xf]
      %v4156 = vld [vmem:[%s636 + $0x2c] sm:$0xf]
      %v4157 = vld [vmem:[%s636 + $0x30] sm:$0xf]
      %v4158 = vld [vmem:[%s636 + $0x34] sm:$0xf]
      %v4159 = vld [vmem:[%s636 + $0x38] sm:$0xf]
      %v4160 = vld [vmem:[%s636 + $0x3c] sm:$0xf]
      %v4161 = vld [vmem:[%s636 + $0x40] sm:$0xf]
      %v4162 = vld [vmem:[%s636 + $0x44] sm:$0xf]
      %v4163 = vld [vmem:[%s636 + $0x48] sm:$0xf]
      %v4164 = vld [vmem:[%s636 + $0x4c] sm:$0xf]
      %v4165 = vld [vmem:[%s636 + $0x50] sm:$0xf]
      %v4166 = vld [vmem:[%s636 + $0x54] sm:$0xf]
      %v4167 = vld [vmem:[%s636 + $0x58] sm:$0xf]
      %v4168 = vld [vmem:[%s636 + $0x5c] sm:$0xf]
      %v4169 = vld [vmem:[%s636 + $0x60] sm:$0xf]
      %v4170 = vld [vmem:[%s636 + $0x64] sm:$0xf]
      %v4171 = vld [vmem:[%s636 + $0x68] sm:$0xf]
      %v4172 = vld [vmem:[%s636 + $0x6c] sm:$0xf]
      %v4173 = vld [vmem:[%s636 + $0x70] sm:$0xf]
      %v4174 = vld [vmem:[%s636 + $0x74] sm:$0xf]
      %v4175 = vld [vmem:[%s636 + $0x78] sm:$0xf]
      %v4176 = vld [vmem:[%s636 + $0x7c] sm:$0xf]
      %v4177 = vld [vmem:[%s12] sm:$0xf]
      %v4178 = vld [vmem:[%s12 + $0x4] sm:$0xf]
      %v4179 = vld [vmem:[%s12 + $0x8] sm:$0xf]
      %v4180 = vld [vmem:[%s12 + $0xc] sm:$0xf]
      %v4181 = vld [vmem:[%s12 + $0x10] sm:$0xf]
      %v4182 = vld [vmem:[%s12 + $0x14] sm:$0xf]
      %v4183 = vld [vmem:[%s12 + $0x18] sm:$0xf]
      %v4184 = vld [vmem:[%s12 + $0x1c] sm:$0xf]
      %v4185 = vld [vmem:[%s12 + $0x20] sm:$0xf]
      %v4186 = vld [vmem:[%s12 + $0x24] sm:$0xf]
      %v4187 = vld [vmem:[%s12 + $0x28] sm:$0xf]
      %v4188 = vld [vmem:[%s12 + $0x2c] sm:$0xf]
      %v4189 = vld [vmem:[%s12 + $0x30] sm:$0xf]
      %v4190 = vld [vmem:[%s12 + $0x34] sm:$0xf]
      %v4191 = vld [vmem:[%s12 + $0x38] sm:$0xf]
      %v4192 = vld [vmem:[%s12 + $0x3c] sm:$0xf]
      %v4225 = vunpack.c.l.b16 %v4145
      %v4226 = vunpack.c.l.b16 %v4146
      %v4227 = vunpack.c.l.b16 %v4147
      %v4228 = vunpack.c.l.b16 %v4148
      %v4229 = vunpack.c.l.b16 %v4149
      %v4230 = vunpack.c.l.b16 %v4150
      %v4231 = vunpack.c.l.b16 %v4151
      %v4232 = vunpack.c.l.b16 %v4152
      %v4233 = vunpack.c.l.b16 %v4153
      %v4234 = vunpack.c.l.b16 %v4154
      %v4235 = vunpack.c.l.b16 %v4155
      %v4236 = vunpack.c.l.b16 %v4156
      %v4237 = vunpack.c.l.b16 %v4157
      %v4238 = vunpack.c.l.b16 %v4158
      %v4239 = vunpack.c.l.b16 %v4159
      %v4240 = vunpack.c.l.b16 %v4160
      %v4241 = vunpack.c.l.b16 %v4161
      %v4242 = vunpack.c.l.b16 %v4162
      %v4243 = vunpack.c.l.b16 %v4163
      %v4244 = vunpack.c.l.b16 %v4164
      %v4245 = vunpack.c.l.b16 %v4165
      %v4246 = vunpack.c.l.b16 %v4166
      %v4247 = vunpack.c.l.b16 %v4167
      %v4248 = vunpack.c.l.b16 %v4168
      %v4249 = vunpack.c.l.b16 %v4169
      %v4250 = vunpack.c.l.b16 %v4170
      %v4251 = vunpack.c.l.b16 %v4171
      %v4252 = vunpack.c.l.b16 %v4172
      %v4253 = vunpack.c.l.b16 %v4173
      %v4254 = vunpack.c.l.b16 %v4174
      %v4255 = vunpack.c.l.b16 %v4175
      %v4256 = vunpack.c.l.b16 %v4176
      %v4257 = vpack.c.b16 %v4226, %v4225
      %v4258 = vpack.c.b16 %v4228, %v4227
      %v4259 = vpack.c.b16 %v4230, %v4229
      %v4260 = vpack.c.b16 %v4232, %v4231
      %v4261 = vpack.c.b16 %v4234, %v4233
      %v4262 = vpack.c.b16 %v4236, %v4235
      %v4263 = vpack.c.b16 %v4238, %v4237
      %v4264 = vpack.c.b16 %v4240, %v4239
      %v4265 = vpack.c.b16 %v4242, %v4241
      %v4266 = vpack.c.b16 %v4244, %v4243
      %v4267 = vpack.c.b16 %v4246, %v4245
      %v4268 = vpack.c.b16 %v4248, %v4247
      %v4269 = vpack.c.b16 %v4250, %v4249
      %v4270 = vpack.c.b16 %v4252, %v4251
      %v4271 = vpack.c.b16 %v4254, %v4253
      %v4272 = vpack.c.b16 %v4256, %v4255
      %v4305 = vunpack.c.l.b16 %v4177
      %v4306 = vunpack.c.l.b16 %v4178
      %v4307 = vunpack.c.l.b16 %v4179
      %v4308 = vunpack.c.l.b16 %v4180
      %v4309 = vunpack.c.l.b16 %v4181
      %v4310 = vunpack.c.l.b16 %v4182
      %v4311 = vunpack.c.l.b16 %v4183
      %v4312 = vunpack.c.l.b16 %v4184
      %v4313 = vunpack.c.l.b16 %v4185
      %v4314 = vunpack.c.l.b16 %v4186
      %v4315 = vunpack.c.l.b16 %v4187
      %v4316 = vunpack.c.l.b16 %v4188
      %v4317 = vunpack.c.l.b16 %v4189
      %v4318 = vunpack.c.l.b16 %v4190
      %v4319 = vunpack.c.l.b16 %v4191
      %v4320 = vunpack.c.l.b16 %v4192
      %v4321 = vpack.c.b16 %v4306, %v4305
      %v4322 = vpack.c.b16 %v4308, %v4307
      %v4323 = vpack.c.b16 %v4310, %v4309
      %v4324 = vpack.c.b16 %v4312, %v4311
      %v4325 = vpack.c.b16 %v4314, %v4313
      %v4326 = vpack.c.b16 %v4316, %v4315
      %v4327 = vpack.c.b16 %v4318, %v4317
      %v4328 = vpack.c.b16 %v4320, %v4319
      %4337 = vmatpush.bf16.msra.mxu0 %v4328
      %4338 = vmatpush.bf16.msra.mxu0 %v4327
      %4339 = vmatpush.bf16.msra.mxu0 %v4326
      %4340 = vmatpush.bf16.msra.mxu0 %v4325
      %4341 = vmatpush.bf16.msra.mxu0 %v4324
      %4342 = vmatpush.bf16.msra.mxu0 %v4323
      %4343 = vmatpush.bf16.msra.mxu0 %v4322
      %4344 = vmatpush.bf16.msra.mxu0 %v4321
      %4345 = vmatmul.bf16.gmra.mxu0 %v4257
      %v4346 = vpop.f32.mrf.mxu0
      %v4347 = vadd.f32 0.0, %v4346
      %v4348 = vpop.f32.mrf.mxu0
      %v4349 = vadd.f32 0.0, %v4348
      %4350 = vmatmul.bf16.gmra.mxu0 %v4258
      %v4351 = vpop.f32.mrf.mxu0
      %v4352 = vadd.f32 0.0, %v4351
      %v4353 = vpop.f32.mrf.mxu0
      %v4354 = vadd.f32 0.0, %v4353
      %4355 = vmatmul.bf16.gmra.mxu0 %v4259
      %v4356 = vpop.f32.mrf.mxu0
      %v4357 = vadd.f32 0.0, %v4356
      %v4358 = vpop.f32.mrf.mxu0
      %v4359 = vadd.f32 0.0, %v4358
      %4360 = vmatmul.bf16.gmra.mxu0 %v4260
      %v4361 = vpop.f32.mrf.mxu0
      %v4362 = vadd.f32 0.0, %v4361
      %v4363 = vpop.f32.mrf.mxu0
      %v4364 = vadd.f32 0.0, %v4363
      %4365 = vmatmul.bf16.gmra.mxu0 %v4261
      %v4366 = vpop.f32.mrf.mxu0
      %v4367 = vadd.f32 0.0, %v4366
      %v4368 = vpop.f32.mrf.mxu0
      %v4369 = vadd.f32 0.0, %v4368
      %4370 = vmatmul.bf16.gmra.mxu0 %v4262
      %v4371 = vpop.f32.mrf.mxu0
      %v4372 = vadd.f32 0.0, %v4371
      %v4373 = vpop.f32.mrf.mxu0
      %v4374 = vadd.f32 0.0, %v4373
      %4375 = vmatmul.bf16.gmra.mxu0 %v4263
      %v4376 = vpop.f32.mrf.mxu0
      %v4377 = vadd.f32 0.0, %v4376
      %v4378 = vpop.f32.mrf.mxu0
      %v4379 = vadd.f32 0.0, %v4378
      %4380 = vmatmul.bf16.gmra.mxu0 %v4264
      %v4381 = vpop.f32.mrf.mxu0
      %v4382 = vadd.f32 0.0, %v4381
      %v4383 = vpop.f32.mrf.mxu0
      %v4384 = vadd.f32 0.0, %v4383
      %4385 = vmatmul.bf16.gmra.mxu0 %v4265
      %v4386 = vpop.f32.mrf.mxu0
      %v4387 = vadd.f32 0.0, %v4386
      %v4388 = vpop.f32.mrf.mxu0
      %v4389 = vadd.f32 0.0, %v4388
      %4390 = vmatmul.bf16.gmra.mxu0 %v4266
      %v4391 = vpop.f32.mrf.mxu0
      %v4392 = vadd.f32 0.0, %v4391
      %v4393 = vpop.f32.mrf.mxu0
      %v4394 = vadd.f32 0.0, %v4393
      %4395 = vmatmul.bf16.gmra.mxu0 %v4267
      %v4396 = vpop.f32.mrf.mxu0
      %v4397 = vadd.f32 0.0, %v4396
      %v4398 = vpop.f32.mrf.mxu0
      %v4399 = vadd.f32 0.0, %v4398
      %4400 = vmatmul.bf16.gmra.mxu0 %v4268
      %v4401 = vpop.f32.mrf.mxu0
      %v4402 = vadd.f32 0.0, %v4401
      %v4403 = vpop.f32.mrf.mxu0
      %v4404 = vadd.f32 0.0, %v4403
      %4405 = vmatmul.bf16.gmra.mxu0 %v4269
      %v4406 = vpop.f32.mrf.mxu0
      %v4407 = vadd.f32 0.0, %v4406
      %v4408 = vpop.f32.mrf.mxu0
      %v4409 = vadd.f32 0.0, %v4408
      %4410 = vmatmul.bf16.gmra.mxu0 %v4270
      %v4411 = vpop.f32.mrf.mxu0
      %v4412 = vadd.f32 0.0, %v4411
      %v4413 = vpop.f32.mrf.mxu0
      %v4414 = vadd.f32 0.0, %v4413
      %4415 = vmatmul.bf16.gmra.mxu0 %v4271
      %v4416 = vpop.f32.mrf.mxu0
      %v4417 = vadd.f32 0.0, %v4416
      %v4418 = vpop.f32.mrf.mxu0
      %v4419 = vadd.f32 0.0, %v4418
      %4420 = vmatmul.bf16.gmra.mxu0 %v4272
      %v4421 = vpop.f32.mrf.mxu0
      %v4422 = vadd.f32 0.0, %v4421
      %v4423 = vpop.f32.mrf.mxu0
      %v4424 = vadd.f32 0.0, %v4423
      %4425 = vdwg.mxu0
      %v4426 = vadd.f32 %v4113, %v4347
      %v4427 = vadd.f32 %v4114, %v4349
      %v4428 = vadd.f32 %v4115, %v4352
      %v4429 = vadd.f32 %v4116, %v4354
      %v4430 = vadd.f32 %v4117, %v4357
      %v4431 = vadd.f32 %v4118, %v4359
      %v4432 = vadd.f32 %v4119, %v4362
      %v4433 = vadd.f32 %v4120, %v4364
      %v4434 = vadd.f32 %v4121, %v4367
      %v4435 = vadd.f32 %v4122, %v4369
      %v4436 = vadd.f32 %v4123, %v4372
      %v4437 = vadd.f32 %v4124, %v4374
      %v4438 = vadd.f32 %v4125, %v4377
      %v4439 = vadd.f32 %v4126, %v4379
      %v4440 = vadd.f32 %v4127, %v4382
      %v4441 = vadd.f32 %v4128, %v4384
      %v4442 = vadd.f32 %v4129, %v4387
      %v4443 = vadd.f32 %v4130, %v4389
      %v4444 = vadd.f32 %v4131, %v4392
      %v4445 = vadd.f32 %v4132, %v4394
      %v4446 = vadd.f32 %v4133, %v4397
      %v4447 = vadd.f32 %v4134, %v4399
      %v4448 = vadd.f32 %v4135, %v4402
      %v4449 = vadd.f32 %v4136, %v4404
      %v4450 = vadd.f32 %v4137, %v4407
      %v4451 = vadd.f32 %v4138, %v4409
      %v4452 = vadd.f32 %v4139, %v4412
      %v4453 = vadd.f32 %v4140, %v4414
      %v4454 = vadd.f32 %v4141, %v4417
      %v4455 = vadd.f32 %v4142, %v4419
      %v4456 = vadd.f32 %v4143, %v4422
      %v4457 = vadd.f32 %v4144, %v4424
      %v4458 = vld [vmem:[%s13] sm:$0x1]
      %v4460 = vperm.slane %v4458, 0
      %v4462 = vadd.f32 %v4426, %v4460
      %v4463 = vadd.f32 %v4427, %v4460
      %v4464 = vadd.f32 %v4428, %v4460
      %v4465 = vadd.f32 %v4429, %v4460
      %v4466 = vadd.f32 %v4430, %v4460
      %v4467 = vadd.f32 %v4431, %v4460
      %v4468 = vadd.f32 %v4432, %v4460
      %v4469 = vadd.f32 %v4433, %v4460
      %v4470 = vadd.f32 %v4434, %v4460
      %v4471 = vadd.f32 %v4435, %v4460
      %v4472 = vadd.f32 %v4436, %v4460
      %v4473 = vadd.f32 %v4437, %v4460
      %v4474 = vadd.f32 %v4438, %v4460
      %v4475 = vadd.f32 %v4439, %v4460
      %v4476 = vadd.f32 %v4440, %v4460
      %v4477 = vadd.f32 %v4441, %v4460
      %v4478 = vadd.f32 %v4442, %v4460
      %v4479 = vadd.f32 %v4443, %v4460
      %v4480 = vadd.f32 %v4444, %v4460
      %v4481 = vadd.f32 %v4445, %v4460
      %v4482 = vadd.f32 %v4446, %v4460
      %v4483 = vadd.f32 %v4447, %v4460
      %v4484 = vadd.f32 %v4448, %v4460
      %v4485 = vadd.f32 %v4449, %v4460
      %v4486 = vadd.f32 %v4450, %v4460
      %v4487 = vadd.f32 %v4451, %v4460
      %v4488 = vadd.f32 %v4452, %v4460
      %v4489 = vadd.f32 %v4453, %v4460
      %v4490 = vadd.f32 %v4454, %v4460
      %v4491 = vadd.f32 %v4455, %v4460
      %v4492 = vadd.f32 %v4456, %v4460
      %v4493 = vadd.f32 %v4457, %v4460
      %v4494 = vmax.f32 %v4462, 0.0
      %v4495 = vmax.f32 %v4463, 0.0
      %v4496 = vmax.f32 %v4464, 0.0
      %v4497 = vmax.f32 %v4465, 0.0
      %v4498 = vmax.f32 %v4466, 0.0
      %v4499 = vmax.f32 %v4467, 0.0
      %v4500 = vmax.f32 %v4468, 0.0
      %v4501 = vmax.f32 %v4469, 0.0
      %v4502 = vmax.f32 %v4470, 0.0
      %v4503 = vmax.f32 %v4471, 0.0
      %v4504 = vmax.f32 %v4472, 0.0
      %v4505 = vmax.f32 %v4473, 0.0
      %v4506 = vmax.f32 %v4474, 0.0
      %v4507 = vmax.f32 %v4475, 0.0
      %v4508 = vmax.f32 %v4476, 0.0
      %v4509 = vmax.f32 %v4477, 0.0
      %v4510 = vmax.f32 %v4478, 0.0
      %v4511 = vmax.f32 %v4479, 0.0
      %v4512 = vmax.f32 %v4480, 0.0
      %v4513 = vmax.f32 %v4481, 0.0
      %v4514 = vmax.f32 %v4482, 0.0
      %v4515 = vmax.f32 %v4483, 0.0
      %v4516 = vmax.f32 %v4484, 0.0
      %v4517 = vmax.f32 %v4485, 0.0
      %v4518 = vmax.f32 %v4486, 0.0
      %v4519 = vmax.f32 %v4487, 0.0
      %v4520 = vmax.f32 %v4488, 0.0
      %v4521 = vmax.f32 %v4489, 0.0
      %v4522 = vmax.f32 %v4490, 0.0
      %v4523 = vmax.f32 %v4491, 0.0
      %v4524 = vmax.f32 %v4492, 0.0
      %v4525 = vmax.f32 %v4493, 0.0
      %v4526 = vpack.c.bf16 %v4495, %v4494
      %v4527 = vpack.c.bf16 %v4497, %v4496
      %v4528 = vpack.c.bf16 %v4499, %v4498
      %v4529 = vpack.c.bf16 %v4501, %v4500
      %v4530 = vpack.c.bf16 %v4503, %v4502
      %v4531 = vpack.c.bf16 %v4505, %v4504
      %v4532 = vpack.c.bf16 %v4507, %v4506
      %v4533 = vpack.c.bf16 %v4509, %v4508
      %v4534 = vpack.c.bf16 %v4511, %v4510
      %v4535 = vpack.c.bf16 %v4513, %v4512
      %v4536 = vpack.c.bf16 %v4515, %v4514
      %v4537 = vpack.c.bf16 %v4517, %v4516
      %v4538 = vpack.c.bf16 %v4519, %v4518
      %v4539 = vpack.c.bf16 %v4521, %v4520
      %v4540 = vpack.c.bf16 %v4523, %v4522
      %v4541 = vpack.c.bf16 %v4525, %v4524
      %v4542 = vld [vmem:[%s14] sm:$0xf]
      %v4543 = vld [vmem:[%s14 + $0x4] sm:$0xf]
      %v4544 = vld [vmem:[%s14 + $0x8] sm:$0xf]
      %v4545 = vld [vmem:[%s14 + $0xc] sm:$0xf]
      %v4546 = vld [vmem:[%s14 + $0x10] sm:$0xf]
      %v4547 = vld [vmem:[%s14 + $0x14] sm:$0xf]
      %v4548 = vld [vmem:[%s14 + $0x18] sm:$0xf]
      %v4549 = vld [vmem:[%s14 + $0x1c] sm:$0xf]
      %v4550 = vld [vmem:[%s14 + $0x20] sm:$0xf]
      %v4551 = vld [vmem:[%s14 + $0x24] sm:$0xf]
      %v4552 = vld [vmem:[%s14 + $0x28] sm:$0xf]
      %v4553 = vld [vmem:[%s14 + $0x2c] sm:$0xf]
      %v4554 = vld [vmem:[%s14 + $0x30] sm:$0xf]
      %v4555 = vld [vmem:[%s14 + $0x34] sm:$0xf]
      %v4556 = vld [vmem:[%s14 + $0x38] sm:$0xf]
      %v4557 = vld [vmem:[%s14 + $0x3c] sm:$0xf]
      %v4558 = vld [vmem:[%s15] sm:$0x1]
      %v4560 = vperm.slane %v4558, 0
      %v4578 = vunpack.c.l.b16 %v4542
      %v4579 = vunpack.c.l.b16 %v4543
      %v4580 = vunpack.c.l.b16 %v4544
      %v4581 = vunpack.c.l.b16 %v4545
      %v4582 = vunpack.c.l.b16 %v4546
      %v4583 = vunpack.c.l.b16 %v4547
      %v4584 = vunpack.c.l.b16 %v4548
      %v4585 = vunpack.c.l.b16 %v4549
      %v4586 = vunpack.c.l.b16 %v4550
      %v4587 = vunpack.c.l.b16 %v4551
      %v4588 = vunpack.c.l.b16 %v4552
      %v4589 = vunpack.c.l.b16 %v4553
      %v4590 = vunpack.c.l.b16 %v4554
      %v4591 = vunpack.c.l.b16 %v4555
      %v4592 = vunpack.c.l.b16 %v4556
      %v4593 = vunpack.c.l.b16 %v4557
      %v4594 = vpack.c.b16 %v4579, %v4578
      %v4595 = vpack.c.b16 %v4581, %v4580
      %v4596 = vpack.c.b16 %v4583, %v4582
      %v4597 = vpack.c.b16 %v4585, %v4584
      %v4598 = vpack.c.b16 %v4587, %v4586
      %v4599 = vpack.c.b16 %v4589, %v4588
      %v4600 = vpack.c.b16 %v4591, %v4590
      %v4601 = vpack.c.b16 %v4593, %v4592
      %4610 = vmatpush.bf16.msra.mxu0 %v4601
      %4611 = vmatpush.bf16.msra.mxu0 %v4600
      %4612 = vmatpush.bf16.msra.mxu0 %v4599
      %4613 = vmatpush.bf16.msra.mxu0 %v4598
      %4614 = vmatpush.bf16.msra.mxu0 %v4597
      %4615 = vmatpush.bf16.msra.mxu0 %v4596
      %4616 = vmatpush.bf16.msra.mxu0 %v4595
      %4617 = vmatpush.bf16.msra.mxu0 %v4594
      %4618 = vmatmul.bf16.gmra.mxu0 %v4526
      %v4619 = vpop.f32.mrf.mxu0
      %v4620 = vadd.f32 %v4560, %v4619
      %v4621 = vpop.f32.mrf.mxu0
      %v4622 = vadd.f32 %v4560, %v4621
      %4623 = vmatmul.bf16.gmra.mxu0 %v4527
      %v4624 = vpop.f32.mrf.mxu0
      %v4625 = vadd.f32 %v4560, %v4624
      %v4626 = vpop.f32.mrf.mxu0
      %v4627 = vadd.f32 %v4560, %v4626
      %4628 = vmatmul.bf16.gmra.mxu0 %v4528
      %v4629 = vpop.f32.mrf.mxu0
      %v4630 = vadd.f32 %v4560, %v4629
      %v4631 = vpop.f32.mrf.mxu0
      %v4632 = vadd.f32 %v4560, %v4631
      %4633 = vmatmul.bf16.gmra.mxu0 %v4529
      %v4634 = vpop.f32.mrf.mxu0
      %v4635 = vadd.f32 %v4560, %v4634
      %v4636 = vpop.f32.mrf.mxu0
      %v4637 = vadd.f32 %v4560, %v4636
      %4638 = vmatmul.bf16.gmra.mxu0 %v4530
      %v4639 = vpop.f32.mrf.mxu0
      %v4640 = vadd.f32 %v4560, %v4639
      %v4641 = vpop.f32.mrf.mxu0
      %v4642 = vadd.f32 %v4560, %v4641
      %4643 = vmatmul.bf16.gmra.mxu0 %v4531
      %v4644 = vpop.f32.mrf.mxu0
      %v4645 = vadd.f32 %v4560, %v4644
      %v4646 = vpop.f32.mrf.mxu0
      %v4647 = vadd.f32 %v4560, %v4646
      %4648 = vmatmul.bf16.gmra.mxu0 %v4532
      %v4649 = vpop.f32.mrf.mxu0
      %v4650 = vadd.f32 %v4560, %v4649
      %v4651 = vpop.f32.mrf.mxu0
      %v4652 = vadd.f32 %v4560, %v4651
      %4653 = vmatmul.bf16.gmra.mxu0 %v4533
      %v4654 = vpop.f32.mrf.mxu0
      %v4655 = vadd.f32 %v4560, %v4654
      %v4656 = vpop.f32.mrf.mxu0
      %v4657 = vadd.f32 %v4560, %v4656
      %4658 = vmatmul.bf16.gmra.mxu0 %v4534
      %v4659 = vpop.f32.mrf.mxu0
      %v4660 = vadd.f32 %v4560, %v4659
      %v4661 = vpop.f32.mrf.mxu0
      %v4662 = vadd.f32 %v4560, %v4661
      %4663 = vmatmul.bf16.gmra.mxu0 %v4535
      %v4664 = vpop.f32.mrf.mxu0
      %v4665 = vadd.f32 %v4560, %v4664
      %v4666 = vpop.f32.mrf.mxu0
      %v4667 = vadd.f32 %v4560, %v4666
      %4668 = vmatmul.bf16.gmra.mxu0 %v4536
      %v4669 = vpop.f32.mrf.mxu0
      %v4670 = vadd.f32 %v4560, %v4669
      %v4671 = vpop.f32.mrf.mxu0
      %v4672 = vadd.f32 %v4560, %v4671
      %4673 = vmatmul.bf16.gmra.mxu0 %v4537
      %v4674 = vpop.f32.mrf.mxu0
      %v4675 = vadd.f32 %v4560, %v4674
      %v4676 = vpop.f32.mrf.mxu0
      %v4677 = vadd.f32 %v4560, %v4676
      %4678 = vmatmul.bf16.gmra.mxu0 %v4538
      %v4679 = vpop.f32.mrf.mxu0
      %v4680 = vadd.f32 %v4560, %v4679
      %v4681 = vpop.f32.mrf.mxu0
      %v4682 = vadd.f32 %v4560, %v4681
      %4683 = vmatmul.bf16.gmra.mxu0 %v4539
      %v4684 = vpop.f32.mrf.mxu0
      %v4685 = vadd.f32 %v4560, %v4684
      %v4686 = vpop.f32.mrf.mxu0
      %v4687 = vadd.f32 %v4560, %v4686
      %4688 = vmatmul.bf16.gmra.mxu0 %v4540
      %v4689 = vpop.f32.mrf.mxu0
      %v4690 = vadd.f32 %v4560, %v4689
      %v4691 = vpop.f32.mrf.mxu0
      %v4692 = vadd.f32 %v4560, %v4691
      %4693 = vmatmul.bf16.gmra.mxu0 %v4541
      %v4694 = vpop.f32.mrf.mxu0
      %v4695 = vadd.f32 %v4560, %v4694
      %v4696 = vpop.f32.mrf.mxu0
      %v4697 = vadd.f32 %v4560, %v4696
      %4698 = vdwg.mxu0
      %v4699 = vmax.f32 %v4620, 0.0
      %v4700 = vmax.f32 %v4622, 0.0
      %v4701 = vmax.f32 %v4625, 0.0
      %v4702 = vmax.f32 %v4627, 0.0
      %v4703 = vmax.f32 %v4630, 0.0
      %v4704 = vmax.f32 %v4632, 0.0
      %v4705 = vmax.f32 %v4635, 0.0
      %v4706 = vmax.f32 %v4637, 0.0
      %v4707 = vmax.f32 %v4640, 0.0
      %v4708 = vmax.f32 %v4642, 0.0
      %v4709 = vmax.f32 %v4645, 0.0
      %v4710 = vmax.f32 %v4647, 0.0
      %v4711 = vmax.f32 %v4650, 0.0
      %v4712 = vmax.f32 %v4652, 0.0
      %v4713 = vmax.f32 %v4655, 0.0
      %v4714 = vmax.f32 %v4657, 0.0
      %v4715 = vmax.f32 %v4660, 0.0
      %v4716 = vmax.f32 %v4662, 0.0
      %v4717 = vmax.f32 %v4665, 0.0
      %v4718 = vmax.f32 %v4667, 0.0
      %v4719 = vmax.f32 %v4670, 0.0
      %v4720 = vmax.f32 %v4672, 0.0
      %v4721 = vmax.f32 %v4675, 0.0
      %v4722 = vmax.f32 %v4677, 0.0
      %v4723 = vmax.f32 %v4680, 0.0
      %v4724 = vmax.f32 %v4682, 0.0
      %v4725 = vmax.f32 %v4685, 0.0
      %v4726 = vmax.f32 %v4687, 0.0
      %v4727 = vmax.f32 %v4690, 0.0
      %v4728 = vmax.f32 %v4692, 0.0
      %v4729 = vmax.f32 %v4695, 0.0
      %v4730 = vmax.f32 %v4697, 0.0
      %4731 = vst [vmem:[%s667 + $0x18] sm:$0xff] %v4699
      %4732 = vst [vmem:[%s667 + $0x38] sm:$0xff] %v4700
      %4733 = vst [vmem:[%s667 + $0x58] sm:$0xff] %v4701
      %4734 = vst [vmem:[%s667 + $0x78] sm:$0xff] %v4702
      %4735 = vst [vmem:[%s667 + $0x98] sm:$0xff] %v4703
      %4736 = vst [vmem:[%s667 + $0xb8] sm:$0xff] %v4704
      %4737 = vst [vmem:[%s667 + $0xd8] sm:$0xff] %v4705
      %4738 = vst [vmem:[%s667 + $0xf8] sm:$0xff] %v4706
      %4739 = vst [vmem:[%s667 + $0x118] sm:$0xff] %v4707
      %4740 = vst [vmem:[%s667 + $0x138] sm:$0xff] %v4708
      %4741 = vst [vmem:[%s667 + $0x158] sm:$0xff] %v4709
      %4742 = vst [vmem:[%s667 + $0x178] sm:$0xff] %v4710
      %4743 = vst [vmem:[%s667 + $0x198] sm:$0xff] %v4711
      %4744 = vst [vmem:[%s667 + $0x1b8] sm:$0xff] %v4712
      %4745 = vst [vmem:[%s667 + $0x1d8] sm:$0xff] %v4713
      %4746 = vst [vmem:[%s667 + $0x1f8] sm:$0xff] %v4714
      %4747 = vst [vmem:[%s667 + $0x218] sm:$0xff] %v4715
      %4748 = vst [vmem:[%s667 + $0x238] sm:$0xff] %v4716
      %4749 = vst [vmem:[%s667 + $0x258] sm:$0xff] %v4717
      %4750 = vst [vmem:[%s667 + $0x278] sm:$0xff] %v4718
      %4751 = vst [vmem:[%s667 + $0x298] sm:$0xff] %v4719
      %4752 = vst [vmem:[%s667 + $0x2b8] sm:$0xff] %v4720
      %4753 = vst [vmem:[%s667 + $0x2d8] sm:$0xff] %v4721
      %4754 = vst [vmem:[%s667 + $0x2f8] sm:$0xff] %v4722
      %4755 = vst [vmem:[%s667 + $0x318] sm:$0xff] %v4723
      %4756 = vst [vmem:[%s667 + $0x338] sm:$0xff] %v4724
      %4757 = vst [vmem:[%s667 + $0x358] sm:$0xff] %v4725
      %4758 = vst [vmem:[%s667 + $0x378] sm:$0xff] %v4726
      %4759 = vst [vmem:[%s667 + $0x398] sm:$0xff] %v4727
      %4760 = vst [vmem:[%s667 + $0x3b8] sm:$0xff] %v4728
      %4761 = vst [vmem:[%s667 + $0x3d8] sm:$0xff] %v4729
      %4762 = vst [vmem:[%s667 + $0x3f8] sm:$0xff] %v4730
      %s4763 = smul.u32 32, %s29
      %p4764 = scmp.lt.s32.totalorder %s4763, 63
      %s4765 = scalar_select %p4764, %s4763, 63
      %s4766 = smul.addr %s4765, 4
      %s4767 = smul.addr %s4766, 8
      %s4768 = scalar_lea.vmem %s18, %s4767
      // Predicated region
      $region93: #{bottleneck_forward.3} parent=91 // pred_check
        %p4769 = pneg %p450
      $region94: #{bottleneck_forward.3} parent=91 // pred_check_branch
        %4771 = sbr.rel (%p4769) target = $region96
      $region95: #{bottleneck_forward.3} parent=91 // pred_region
        %s4772 = smul.u32 32, %s29
      $region96: #{bottleneck_forward.3} parent=91 // pred_fallthru
        _
    $region92: #{bottleneck_forward.3} parent=5 // pred_fallthru
      _
    %p4773 = scmp.le.s32.totalorder 2, %s24
    // Predicated region
    $region97: #{bottleneck_forward.3} parent=5 // pred_check
      %p4774 = pneg %p4773
    $region98: #{bottleneck_forward.3} parent=5 // pred_check_branch
      %4776 = sbr.rel (%p4774) target = $region100
    $region99: #{bottleneck_forward.3} parent=5 // pred_region
      %s4777 = ssub.s32 %s24, 2
      // Predicated region
      $region101: #{bottleneck_forward.3} parent=99 // pred_check
        %p4778 = pneg %p456
      $region102: #{bottleneck_forward.3} parent=99 // pred_check_branch
        %4780 = sbr.rel (%p4778) target = $region104
      $region103: #{bottleneck_forward.3} parent=99 // pred_region
        %s4781 = smul.u32 32, %s30
        %p4782 = scmp.lt.s32.totalorder %s4781, 63
        %s4783 = scalar_select %p4782, %s4781, 63
        %s4784 = smul.addr %s4783, 4
        %s4785 = smul.addr %s4784, 8
        %s4786 = scalar_lea.vmem %s18, %s4785
      $region104: #{bottleneck_forward.3} parent=99 // pred_fallthru
        _
    $region100: #{bottleneck_forward.3} parent=5 // pred_fallthru
      _
  $region6: #{bottleneck_forward.3} parent=0 // loop_footer
    %s28 = sadd.s32 1, %s24
  $region7: #{bottleneck_forward.3} parent=0 // loop_footer_branch
    %23 = sbr.rel target = $region3
  $region8: #{bottleneck_forward.3} parent=0 // loop_exit
    _

</llo_original>
